<compile_context>
chip_gen: v5e
topology: v5e:2x2
jax: 0.10.0
libtpu: 0.0.40
codegen_flags: <defaults>
</compile_context>

<pallas_src>
import math

import jax
import jax.numpy as jnp
from jax.experimental import pallas as pl
from jax.experimental.pallas import tpu as pltpu

# ----------------------------- synthetic config -----------------------------
B = 2             # batch
S = 8             # sequence length
H = 32            # bert.config.hidden_size
NH = 2            # attention heads
DH = H // NH      # head dim
INTER = 64        # FFN intermediate size
VOCAB = 100
MAX_POS = 16
N_LAYERS = 2
N_ENTITY_TYPES = 9
CLS_HIDDEN = 1024
CLS_PAD = 128     # lane-dense padded logits width (sliced back to 9 outside)
LN_EPS = 1e-12
NEG_INF = -1e9

# vector-slab layout: row 0 = emb LN gamma, row 1 = emb LN beta,
# then per layer l (base = 2 + 8*l):
#   +0 bqkv(3H) ; +1 bo(H) ; +2 bi(INTER) ; +3 bf(H)
#   +4 ln1 gamma ; +5 ln1 beta ; +6 ln2 gamma ; +7 ln2 beta
NVEC_PER_LAYER = 8
VEC_ROWS = 2 + N_LAYERS * NVEC_PER_LAYER
VEC_W = 128
WA_W = 3 * H + H + INTER   # wq|wk|wv | wo | wi  -> 192 lanes


# ------------------------------ kernel helpers ------------------------------
def _layer_norm(x, g, b):
    mu = jnp.mean(x, axis=-1, keepdims=True)
    var = jnp.mean(jnp.square(x - mu), axis=-1, keepdims=True)
    return (x - mu) * jax.lax.rsqrt(var + LN_EPS) * g + b


def _gelu_tanh(x):
    # TODO(synk): HF BertIntermediate default is exact erf-GELU; tanh approx
    # kept for guaranteed Mosaic lowering (backbone is a synthetic module).
    c = math.sqrt(2.0 / math.pi)
    return 0.5 * x * (1.0 + jnp.tanh(c * (x + 0.044715 * x * x * x)))


# ----------------------------- fused forward kernel --------------------------
def fused_kernel(emb_ref, bias_ref, vec_ref, wa_ref, wfs_ref, w1_ref, clsb_ref,
                 w23_hbm, out_ref, w23_vmem, w23_sem):
    """Embedding LN + N_LAYERS encoder layers + entity-classifier MLP, one call."""
    # Start the dominant classifier-weight (w2|w3, 2.25 MiB bf16) DMA first so
    # it overlaps the whole encoder + first classifier layer; wait just before
    # the hc @ w2 matmul.
    w23_copy = pltpu.make_async_copy(w23_hbm, w23_vmem, w23_sem)
    w23_copy.start()

    vecs = vec_ref[...]                                   # [VEC_ROWS, 128] f32

    def vrow(r, n):                                       # [1, n] static slice
        return vecs[r:r + 1, :n]

    x = _layer_norm(emb_ref[...], vrow(0, H), vrow(1, H))  # [B*S, H] f32
    bias = bias_ref[...][:, None, :]                       # [B*NH, 1, S] additive key bias
    scale = 1.0 / math.sqrt(DH)

    def heads_bh(mat):                                     # [B*S, H] -> [B*NH, S, DH]
        return jnp.concatenate(
            [mat[:, h * DH:(h + 1) * DH].reshape(B, S, DH) for h in range(NH)],
            axis=0)

    for l in range(N_LAYERS):                              # static unroll over layers
        base = 2 + l * NVEC_PER_LAYER
        wa = wa_ref[l]                                     # [H, 192] bf16
        wqkv = wa[:, :3 * H]                               # [H, 3H]
        wo = wa[:, 3 * H:4 * H]                            # [H, H]
        wi = wa[:, 4 * H:4 * H + INTER]                    # [H, INTER]
        wf = wfs_ref[l]                                    # [INTER, H] bf16

        # Fused lane-dense QKV projection: bf16 MXU operands, f32 accumulation.
        qkv = (jnp.dot(x.astype(jnp.bfloat16), wqkv,
                       preferred_element_type=jnp.float32)
               + vrow(base, 3 * H))                        # [B*S, 3H] f32
        q = heads_bh(qkv[:, :H])                           # [B*NH, S, DH]
        k = heads_bh(qkv[:, H:2 * H])
        v = heads_bh(qkv[:, 2 * H:3 * H])

        # Head-batched attention: single scores einsum / softmax / ctx einsum.
        scores = jnp.einsum('bqd,bkd->bqk', q, k,
                            preferred_element_type=jnp.float32) * scale + bias
        m = jnp.max(scores, axis=-1, keepdims=True)
        p = jnp.exp(scores - m)
        p = p * pl.reciprocal(jnp.sum(p, axis=-1, keepdims=True), approx=True)
        ctx = jnp.einsum('bqk,bkd->bqd', p, v,
                         preferred_element_type=jnp.float32)   # [B*NH, S, DH]

        # Re-concatenate heads on the lane axis -> one K=H output projection.
        ctx = jnp.concatenate([ctx[h * B:(h + 1) * B] for h in range(NH)],
                              axis=-1).reshape(B * S, H)
        attn_out = (jnp.dot(ctx.astype(jnp.bfloat16), wo,
                            preferred_element_type=jnp.float32)
                    + vrow(base + 1, H))
        h1 = _layer_norm(x + attn_out, vrow(base + 4, H), vrow(base + 5, H))

        ffn = _gelu_tanh(jnp.dot(h1.astype(jnp.bfloat16), wi,
                                 preferred_element_type=jnp.float32)
                         + vrow(base + 2, INTER))
        ffn_out = (jnp.dot(ffn.astype(jnp.bfloat16), wf,
                           preferred_element_type=jnp.float32)
                   + vrow(base + 3, H))
        x = _layer_norm(h1 + ffn_out, vrow(base + 6, H), vrow(base + 7, H))

    # ---- entity classifier head on sequence_output (= x): bf16 MXU, f32 acc ----
    hc = jnp.tanh(jnp.dot(x.astype(jnp.bfloat16), w1_ref[...],
                          preferred_element_type=jnp.float32)
                  + clsb_ref[0:1, :])
    w23_copy.wait()                                        # w2|w3 now resident in VMEM
    hc = jnp.tanh(jnp.dot(hc.astype(jnp.bfloat16), w23_vmem[:, :CLS_HIDDEN],
                          preferred_element_type=jnp.float32)
                  + clsb_ref[1:2, :])
    out_ref[...] = (jnp.dot(hc.astype(jnp.bfloat16), w23_vmem[:, CLS_HIDDEN:],
                            preferred_element_type=jnp.float32)
                    + clsb_ref[2:3, :CLS_PAD])


def forward(params, input_ids, attention_mask):
    # TODO(synk): embedding-table gather kept in plain JAX glue (no clean
    # rectangular BlockSpec for a vocab gather at these shapes).
    emb = (jnp.take(params['word_emb'], input_ids, axis=0)
           + params['pos_emb'][:S][None, :, :]
           + params['type_emb'][0][None, None, :])
    emb2 = emb.reshape(B * S, H)

    # Additive key bias precomputed in XLA (review item): [B*NH, S] ordered to
    # match the head-batched concat order [b0h0, b1h0, b0h1, b1h1].
    mask = attention_mask.astype(jnp.float32)
    attn_bias = jnp.tile((1.0 - mask) * NEG_INF, (NH, 1))

    vmem = pl.BlockSpec(memory_space=pltpu.MemorySpace.VMEM)
    hbm = pl.BlockSpec(memory_space=pl.ANY)

    logits_pad = pl.pallas_call(
        fused_kernel,
        out_shape=jax.ShapeDtypeStruct((B * S, CLS_PAD), jnp.float32),
        in_specs=[vmem] * 7 + [hbm],
        out_specs=vmem,
        scratch_shapes=[
            pltpu.VMEM((CLS_HIDDEN, CLS_HIDDEN + CLS_PAD), jnp.bfloat16),
            pltpu.SemaphoreType.DMA,
        ],
    )(emb2, attn_bias, params['vec_slab'], params['wA'], params['wF'],
      params['cls_w1'], params['cls_b'], params['cls_w23'])

    # Frozen BERT (torch.no_grad) is a forward no-op here; zero-padded logit
    # columns are provably zero-contribution and sliced off.
    return logits_pad[:, :N_ENTITY_TYPES].reshape(B, S, N_ENTITY_TYPES)


# ------------------------------- parameters ---------------------------------
def xavier_uniform(key, shape):
    fan_in, fan_out = shape
    bound = math.sqrt(6.0 / (fan_in + fan_out))
    return jax.random.uniform(key, shape, jnp.float32, -bound, bound)


def linear_bias(key, fan_in, fan_out):
    # mimics torch.nn.Linear default bias init: U(-1/sqrt(fan_in), 1/sqrt(fan_in))
    bound = 1.0 / math.sqrt(fan_in)
    return jax.random.uniform(key, (1, fan_out), jnp.float32, -bound, bound)


def init_params(key):
    keys = jax.random.split(key, 4 + N_LAYERS)

    def normal(k, shape, std=0.02):
        return std * jax.random.normal(k, shape, jnp.float32)

    word_emb = normal(keys[0], (VOCAB, H))
    pos_emb = normal(keys[1], (MAX_POS, H))
    type_emb = normal(keys[2], (2, H))

    # One f32 vector slab for all biases / LayerNorm params (see layout above).
    vec = jnp.zeros((VEC_ROWS, VEC_W), jnp.float32)
    vec = vec.at[0, :H].set(1.0)                 # embedding LN gamma (beta = 0)

    wa_list, wf_list = [], []
    for l in range(N_LAYERS):
        lk = jax.random.split(keys[3 + l], 6)
        wq = normal(lk[0], (H, H))
        wk = normal(lk[1], (H, H))
        wv = normal(lk[2], (H, H))
        wo = normal(lk[3], (H, H))
        wi = normal(lk[4], (H, INTER))
        wf = normal(lk[5], (INTER, H))
        wa_list.append(jnp.concatenate([wq, wk, wv, wo, wi], axis=1))  # [H, 192]
        wf_list.append(wf)
        base = 2 + l * NVEC_PER_LAYER
        # attention / FFN biases stay zero; LN gammas = 1, betas = 0
        vec = vec.at[base + 4, :H].set(1.0)      # ln1 gamma
        vec = vec.at[base + 6, :H].set(1.0)      # ln2 gamma

    wA = jnp.stack(wa_list).astype(jnp.bfloat16)      # [L, H, 192]
    wF = jnp.stack(wf_list).astype(jnp.bfloat16)      # [L, INTER, H]

    # Trainable head; weights stored [in, out] (transposed vs torch Linear),
    # Xavier-init in f32 then cast to bf16 for the MXU.  w3/b3 zero-padded to a
    # lane-dense 128-wide block; w2 and padded w3 concatenated into one slab
    # that is streamed via manual async copy.
    ck = jax.random.split(keys[3 + N_LAYERS], 6)
    w1 = xavier_uniform(ck[0], (H, CLS_HIDDEN))
    b1 = linear_bias(ck[1], H, CLS_HIDDEN)
    w2 = xavier_uniform(ck[2], (CLS_HIDDEN, CLS_HIDDEN))
    b2 = linear_bias(ck[3], CLS_HIDDEN, CLS_HIDDEN)
    w3 = xavier_uniform(ck[4], (CLS_HIDDEN, N_ENTITY_TYPES))
    b3 = linear_bias(ck[5], CLS_HIDDEN, N_ENTITY_TYPES)

    w3p = jnp.zeros((CLS_HIDDEN, CLS_PAD), jnp.float32).at[:, :N_ENTITY_TYPES].set(w3)
    w23 = jnp.concatenate([w2, w3p], axis=1).astype(jnp.bfloat16)   # [1024, 1152]

    cls_b = jnp.zeros((3, CLS_HIDDEN), jnp.float32)
    cls_b = cls_b.at[0].set(b1[0]).at[1].set(b2[0]).at[2, :N_ENTITY_TYPES].set(b3[0])

    return dict(word_emb=word_emb, pos_emb=pos_emb, type_emb=type_emb,
                vec_slab=vec, wA=wA, wF=wF,
                cls_w1=w1.astype(jnp.bfloat16), cls_b=cls_b, cls_w23=w23)


# ----------------------------------- main ------------------------------------
if __name__ == "__main__":
    key = jax.random.PRNGKey(0)
    k_ids, k_params = jax.random.split(key)
    input_ids = jax.random.randint(k_ids, (B, S), 0, VOCAB, dtype=jnp.int32)
    attention_mask = jnp.ones((B, S), dtype=jnp.int32).at[:, -2:].set(0)  # pad tail

    params = init_params(k_params)
    logits = jax.jit(forward)(params, input_ids, attention_mask)
    logits = jax.block_until_ready(logits)

    assert logits.shape == (B, S, N_ENTITY_TYPES)
    assert logits.dtype == jnp.float32
    assert bool(jnp.all(jnp.isfinite(logits)))
    print("KERNEL_OK")
</pallas_src>

<mosaic_0001>
module attributes {stable_mosaic.version = 11 : i64} {
  func.func @fused_kernel(%arg0: memref<16x32xf32, #tpu.memory_space<vmem>>, %arg1: memref<4x8xf32, #tpu.memory_space<vmem>>, %arg2: memref<18x128xf32, #tpu.memory_space<vmem>>, %arg3: memref<2x32x192xbf16, #tpu.memory_space<vmem>>, %arg4: memref<2x64x32xbf16, #tpu.memory_space<vmem>>, %arg5: memref<32x1024xbf16, #tpu.memory_space<vmem>>, %arg6: memref<3x1024xf32, #tpu.memory_space<vmem>>, %arg7: memref<1024x1152xbf16, #tpu.memory_space<any>>, %arg8: memref<16x128xf32, #tpu.memory_space<vmem>>, %arg9: memref<1024x1152xbf16, #tpu.memory_space<vmem>>, %arg10: memref<!tpu.dma_semaphore, #tpu.memory_space<semaphore_mem>>) attributes {dimension_semantics = [], scalar_prefetch = 0 : i64, scratch_operands = 2 : i64, tpu.core_type = #tpu.core_type<tc>} {
    tpu.enqueue_dma source(%arg7 : memref<1024x1152xbf16, #tpu.memory_space<any>>) target(%arg9 : memref<1024x1152xbf16, #tpu.memory_space<vmem>>) target_semaphore(%arg10 : memref<!tpu.dma_semaphore, #tpu.memory_space<semaphore_mem>>)
    %c0 = arith.constant 0 : index
    %c0_0 = arith.constant 0 : index
    %0 = vector.load %arg2[%c0, %c0_0] : memref<18x128xf32, #tpu.memory_space<vmem>>, vector<18x128xf32>
    %c0_1 = arith.constant 0 : index
    %c0_2 = arith.constant 0 : index
    %1 = vector.load %arg0[%c0_1, %c0_2] : memref<16x32xf32, #tpu.memory_space<vmem>>, vector<16x32xf32>
    %2 = vector.extract_strided_slice %0 {offsets = [0, 0], sizes = [1, 32], strides = [1, 1]} : vector<18x128xf32> to vector<1x32xf32>
    %3 = vector.extract_strided_slice %0 {offsets = [1, 0], sizes = [1, 32], strides = [1, 1]} : vector<18x128xf32> to vector<1x32xf32>
    %cst = arith.constant dense<0.000000e+00> : vector<16xf32>
    %4 = vector.multi_reduction <add>, %1, %cst [1] : vector<16x32xf32> to vector<16xf32>
    %5 = vector.shape_cast %4 : vector<16xf32> to vector<16x1xf32>
    %cst_3 = arith.constant 3.200000e+01 : f32
    %6 = vector.broadcast %cst_3 : f32 to vector<16x1xf32>
    %7 = arith.divf %5, %6 : vector<16x1xf32>
    %8 = vector.broadcast %7 : vector<16x1xf32> to vector<16x32xf32>
    %9 = arith.subf %1, %8 : vector<16x32xf32>
    %10 = arith.mulf %9, %9 : vector<16x32xf32>
    %cst_4 = arith.constant dense<0.000000e+00> : vector<16xf32>
    %11 = vector.multi_reduction <add>, %10, %cst_4 [1] : vector<16x32xf32> to vector<16xf32>
    %12 = vector.shape_cast %11 : vector<16xf32> to vector<16x1xf32>
    %cst_5 = arith.constant 3.200000e+01 : f32
    %13 = vector.broadcast %cst_5 : f32 to vector<16x1xf32>
    %14 = arith.divf %12, %13 : vector<16x1xf32>
    %15 = vector.broadcast %7 : vector<16x1xf32> to vector<16x32xf32>
    %16 = arith.subf %1, %15 : vector<16x32xf32>
    %cst_6 = arith.constant 9.99999996E-13 : f32
    %17 = vector.broadcast %cst_6 : f32 to vector<16x1xf32>
    %18 = arith.addf %14, %17 : vector<16x1xf32>
    %19 = math.rsqrt %18 : vector<16x1xf32>
    %20 = vector.broadcast %19 : vector<16x1xf32> to vector<16x32xf32>
    %21 = arith.mulf %16, %20 : vector<16x32xf32>
    %22 = vector.broadcast %2 : vector<1x32xf32> to vector<16x32xf32>
    %23 = arith.mulf %21, %22 : vector<16x32xf32>
    %24 = vector.broadcast %3 : vector<1x32xf32> to vector<16x32xf32>
    %25 = arith.addf %23, %24 : vector<16x32xf32>
    %c0_7 = arith.constant 0 : index
    %c0_8 = arith.constant 0 : index
    %26 = vector.load %arg1[%c0_7, %c0_8] : memref<4x8xf32, #tpu.memory_space<vmem>>, vector<4x8xf32>
    %27 = vector.shape_cast %26 : vector<4x8xf32> to vector<4x1x8xf32>
    %c0_9 = arith.constant 0 : index
    %c0_10 = arith.constant 0 : index
    %c0_11 = arith.constant 0 : index
    %28 = vector.load %arg3[%c0_9, %c0_10, %c0_11] : memref<2x32x192xbf16, #tpu.memory_space<vmem>>, vector<1x32x192xbf16>
    %29 = vector.shape_cast %28 : vector<1x32x192xbf16> to vector<32x192xbf16>
    %30 = vector.extract_strided_slice %29 {offsets = [0, 0], sizes = [32, 96], strides = [1, 1]} : vector<32x192xbf16> to vector<32x96xbf16>
    %31 = vector.extract_strided_slice %29 {offsets = [0, 96], sizes = [32, 32], strides = [1, 1]} : vector<32x192xbf16> to vector<32x32xbf16>
    %32 = vector.extract_strided_slice %29 {offsets = [0, 128], sizes = [32, 64], strides = [1, 1]} : vector<32x192xbf16> to vector<32x64xbf16>
    %c0_12 = arith.constant 0 : index
    %c0_13 = arith.constant 0 : index
    %c0_14 = arith.constant 0 : index
    %33 = vector.load %arg4[%c0_12, %c0_13, %c0_14] : memref<2x64x32xbf16, #tpu.memory_space<vmem>>, vector<1x64x32xbf16>
    %34 = vector.shape_cast %33 : vector<1x64x32xbf16> to vector<64x32xbf16>
    %35 = arith.truncf %25 : vector<16x32xf32> to vector<16x32xbf16>
    %cst_15 = arith.constant dense<0.000000e+00> : vector<16x96xf32>
    %36 = tpu.matmul %35, %30, %cst_15 {dimension_numbers = #tpu.dot_dimension_numbers<[1], [0], [0], [1], [0, 0, 1, 1], [], []>} : vector<16x32xbf16>, vector<32x96xbf16>, vector<16x96xf32> -> vector<16x96xf32>
    %37 = vector.extract_strided_slice %0 {offsets = [2, 0], sizes = [1, 96], strides = [1, 1]} : vector<18x128xf32> to vector<1x96xf32>
    %38 = vector.broadcast %37 : vector<1x96xf32> to vector<16x96xf32>
    %39 = arith.addf %36, %38 : vector<16x96xf32>
    %40 = vector.extract_strided_slice %39 {offsets = [0, 0], sizes = [16, 32], strides = [1, 1]} : vector<16x96xf32> to vector<16x32xf32>
    %41 = vector.extract_strided_slice %40 {offsets = [0, 0], sizes = [16, 16], strides = [1, 1]} : vector<16x32xf32> to vector<16x16xf32>
    %42 = vector.shape_cast %41 : vector<16x16xf32> to vector<2x8x16xf32>
    %43 = vector.extract_strided_slice %40 {offsets = [0, 16], sizes = [16, 16], strides = [1, 1]} : vector<16x32xf32> to vector<16x16xf32>
    %44 = vector.shape_cast %43 : vector<16x16xf32> to vector<2x8x16xf32>
    %45 = tpu.concatenate %42, %44 in 0 : vector<2x8x16xf32>, vector<2x8x16xf32> -> vector<4x8x16xf32>
    %46 = vector.extract_strided_slice %39 {offsets = [0, 32], sizes = [16, 32], strides = [1, 1]} : vector<16x96xf32> to vector<16x32xf32>
    %47 = vector.extract_strided_slice %46 {offsets = [0, 0], sizes = [16, 16], strides = [1, 1]} : vector<16x32xf32> to vector<16x16xf32>
    %48 = vector.shape_cast %47 : vector<16x16xf32> to vector<2x8x16xf32>
    %49 = vector.extract_strided_slice %46 {offsets = [0, 16], sizes = [16, 16], strides = [1, 1]} : vector<16x32xf32> to vector<16x16xf32>
    %50 = vector.shape_cast %49 : vector<16x16xf32> to vector<2x8x16xf32>
    %51 = tpu.concatenate %48, %50 in 0 : vector<2x8x16xf32>, vector<2x8x16xf32> -> vector<4x8x16xf32>
    %52 = vector.extract_strided_slice %39 {offsets = [0, 64], sizes = [16, 32], strides = [1, 1]} : vector<16x96xf32> to vector<16x32xf32>
    %53 = vector.extract_strided_slice %52 {offsets = [0, 0], sizes = [16, 16], strides = [1, 1]} : vector<16x32xf32> to vector<16x16xf32>
    %54 = vector.shape_cast %53 : vector<16x16xf32> to vector<2x8x16xf32>
    %55 = vector.extract_strided_slice %52 {offsets = [0, 16], sizes = [16, 16], strides = [1, 1]} : vector<16x32xf32> to vector<16x16xf32>
    %56 = vector.shape_cast %55 : vector<16x16xf32> to vector<2x8x16xf32>
    %57 = tpu.concatenate %54, %56 in 0 : vector<2x8x16xf32>, vector<2x8x16xf32> -> vector<4x8x16xf32>
    "tpu.trace_start"() <{level = 10 : i32, message = "bqd,bkd->bqk"}> : () -> ()
    %cst_16 = arith.constant dense<0.000000e+00> : vector<4x8x8xf32>
    %58 = tpu.matmul %45, %51, %cst_16 {dimension_numbers = #tpu.dot_dimension_numbers<[2], [2], [1], [1], [0, 0, 0, 1, 1, 1], [0], [0]>} : vector<4x8x16xf32>, vector<4x8x16xf32>, vector<4x8x8xf32> -> vector<4x8x8xf32>
    "tpu.trace_stop"() : () -> ()
    %cst_17 = arith.constant 2.500000e-01 : f32
    %59 = vector.broadcast %cst_17 : f32 to vector<4x8x8xf32>
    %60 = arith.mulf %58, %59 : vector<4x8x8xf32>
    %61 = vector.broadcast %27 : vector<4x1x8xf32> to vector<4x8x8xf32>
    %62 = arith.addf %60, %61 : vector<4x8x8xf32>
    %cst_18 = arith.constant dense<0xFF800000> : vector<4x8xf32>
    %63 = vector.multi_reduction <maximumf>, %62, %cst_18 [2] : vector<4x8x8xf32> to vector<4x8xf32>
    %64 = vector.shape_cast %63 : vector<4x8xf32> to vector<4x8x1xf32>
    %65 = vector.broadcast %64 : vector<4x8x1xf32> to vector<4x8x8xf32>
    %66 = arith.subf %62, %65 : vector<4x8x8xf32>
    %67 = math.exp %66 : vector<4x8x8xf32>
    %cst_19 = arith.constant dense<0.000000e+00> : vector<4x8xf32>
    %68 = vector.multi_reduction <add>, %67, %cst_19 [2] : vector<4x8x8xf32> to vector<4x8xf32>
    %69 = vector.shape_cast %68 : vector<4x8xf32> to vector<4x8x1xf32>
    %70 = tpu.reciprocal %69 {approx = true} : vector<4x8x1xf32> -> vector<4x8x1xf32>
    %71 = vector.broadcast %70 : vector<4x8x1xf32> to vector<4x8x8xf32>
    %72 = arith.mulf %67, %71 : vector<4x8x8xf32>
    "tpu.trace_start"() <{level = 10 : i32, message = "bqk,bkd->bqd"}> : () -> ()
    %cst_20 = arith.constant dense<0.000000e+00> : vector<4x8x16xf32>
    %73 = tpu.matmul %72, %57, %cst_20 {dimension_numbers = #tpu.dot_dimension_numbers<[2], [1], [1], [2], [0, 0, 0, 1, 1, 2], [0], [0]>} : vector<4x8x8xf32>, vector<4x8x16xf32>, vector<4x8x16xf32> -> vector<4x8x16xf32>
    "tpu.trace_stop"() : () -> ()
    %74 = vector.extract_strided_slice %73 {offsets = [0, 0, 0], sizes = [2, 8, 16], strides = [1, 1, 1]} : vector<4x8x16xf32> to vector<2x8x16xf32>
    %75 = vector.extract_strided_slice %73 {offsets = [2, 0, 0], sizes = [2, 8, 16], strides = [1, 1, 1]} : vector<4x8x16xf32> to vector<2x8x16xf32>
    %76 = tpu.concatenate %74, %75 in 2 : vector<2x8x16xf32>, vector<2x8x16xf32> -> vector<2x8x32xf32>
    %77 = vector.shape_cast %76 : vector<2x8x32xf32> to vector<16x32xf32>
    %78 = arith.truncf %77 : vector<16x32xf32> to vector<16x32xbf16>
    %cst_21 = arith.constant dense<0.000000e+00> : vector<16x32xf32>
    %79 = tpu.matmul %78, %31, %cst_21 {dimension_numbers = #tpu.dot_dimension_numbers<[1], [0], [0], [1], [0, 0, 1, 1], [], []>} : vector<16x32xbf16>, vector<32x32xbf16>, vector<16x32xf32> -> vector<16x32xf32>
    %80 = vector.extract_strided_slice %0 {offsets = [3, 0], sizes = [1, 32], strides = [1, 1]} : vector<18x128xf32> to vector<1x32xf32>
    %81 = vector.broadcast %80 : vector<1x32xf32> to vector<16x32xf32>
    %82 = arith.addf %79, %81 : vector<16x32xf32>
    %83 = arith.addf %25, %82 : vector<16x32xf32>
    %84 = vector.extract_strided_slice %0 {offsets = [6, 0], sizes = [1, 32], strides = [1, 1]} : vector<18x128xf32> to vector<1x32xf32>
    %85 = vector.extract_strided_slice %0 {offsets = [7, 0], sizes = [1, 32], strides = [1, 1]} : vector<18x128xf32> to vector<1x32xf32>
    %cst_22 = arith.constant dense<0.000000e+00> : vector<16xf32>
    %86 = vector.multi_reduction <add>, %83, %cst_22 [1] : vector<16x32xf32> to vector<16xf32>
    %87 = vector.shape_cast %86 : vector<16xf32> to vector<16x1xf32>
    %cst_23 = arith.constant 3.200000e+01 : f32
    %88 = vector.broadcast %cst_23 : f32 to vector<16x1xf32>
    %89 = arith.divf %87, %88 : vector<16x1xf32>
    %90 = vector.broadcast %89 : vector<16x1xf32> to vector<16x32xf32>
    %91 = arith.subf %83, %90 : vector<16x32xf32>
    %92 = arith.mulf %91, %91 : vector<16x32xf32>
    %cst_24 = arith.constant dense<0.000000e+00> : vector<16xf32>
    %93 = vector.multi_reduction <add>, %92, %cst_24 [1] : vector<16x32xf32> to vector<16xf32>
    %94 = vector.shape_cast %93 : vector<16xf32> to vector<16x1xf32>
    %cst_25 = arith.constant 3.200000e+01 : f32
    %95 = vector.broadcast %cst_25 : f32 to vector<16x1xf32>
    %96 = arith.divf %94, %95 : vector<16x1xf32>
    %97 = vector.broadcast %89 : vector<16x1xf32> to vector<16x32xf32>
    %98 = arith.subf %83, %97 : vector<16x32xf32>
    %cst_26 = arith.constant 9.99999996E-13 : f32
    %99 = vector.broadcast %cst_26 : f32 to vector<16x1xf32>
    %100 = arith.addf %96, %99 : vector<16x1xf32>
    %101 = math.rsqrt %100 : vector<16x1xf32>
    %102 = vector.broadcast %101 : vector<16x1xf32> to vector<16x32xf32>
    %103 = arith.mulf %98, %102 : vector<16x32xf32>
    %104 = vector.broadcast %84 : vector<1x32xf32> to vector<16x32xf32>
    %105 = arith.mulf %103, %104 : vector<16x32xf32>
    %106 = vector.broadcast %85 : vector<1x32xf32> to vector<16x32xf32>
    %107 = arith.addf %105, %106 : vector<16x32xf32>
    %108 = arith.truncf %107 : vector<16x32xf32> to vector<16x32xbf16>
    %cst_27 = arith.constant dense<0.000000e+00> : vector<16x64xf32>
    %109 = tpu.matmul %108, %32, %cst_27 {dimension_numbers = #tpu.dot_dimension_numbers<[1], [0], [0], [1], [0, 0, 1, 1], [], []>} : vector<16x32xbf16>, vector<32x64xbf16>, vector<16x64xf32> -> vector<16x64xf32>
    %110 = vector.extract_strided_slice %0 {offsets = [4, 0], sizes = [1, 64], strides = [1, 1]} : vector<18x128xf32> to vector<1x64xf32>
    %111 = vector.broadcast %110 : vector<1x64xf32> to vector<16x64xf32>
    %112 = arith.addf %109, %111 : vector<16x64xf32>
    %cst_28 = arith.constant 5.000000e-01 : f32
    %113 = vector.broadcast %cst_28 : f32 to vector<16x64xf32>
    %114 = arith.mulf %113, %112 : vector<16x64xf32>
    %cst_29 = arith.constant 4.471500e-02 : f32
    %115 = vector.broadcast %cst_29 : f32 to vector<16x64xf32>
    %116 = arith.mulf %115, %112 : vector<16x64xf32>
    %117 = arith.mulf %116, %112 : vector<16x64xf32>
    %118 = arith.mulf %117, %112 : vector<16x64xf32>
    %119 = arith.addf %112, %118 : vector<16x64xf32>
    %cst_30 = arith.constant 0.797884583 : f32
    %120 = vector.broadcast %cst_30 : f32 to vector<16x64xf32>
    %121 = arith.mulf %120, %119 : vector<16x64xf32>
    %122 = math.tanh %121 : vector<16x64xf32>
    %cst_31 = arith.constant 1.000000e+00 : f32
    %123 = vector.broadcast %cst_31 : f32 to vector<16x64xf32>
    %124 = arith.addf %123, %122 : vector<16x64xf32>
    %125 = arith.mulf %114, %124 : vector<16x64xf32>
    %126 = arith.truncf %125 : vector<16x64xf32> to vector<16x64xbf16>
    %cst_32 = arith.constant dense<0.000000e+00> : vector<16x32xf32>
    %127 = tpu.matmul %126, %34, %cst_32 {dimension_numbers = #tpu.dot_dimension_numbers<[1], [0], [0], [1], [0, 0, 1, 1], [], []>} : vector<16x64xbf16>, vector<64x32xbf16>, vector<16x32xf32> -> vector<16x32xf32>
    %128 = vector.extract_strided_slice %0 {offsets = [5, 0], sizes = [1, 32], strides = [1, 1]} : vector<18x128xf32> to vector<1x32xf32>
    %129 = vector.broadcast %128 : vector<1x32xf32> to vector<16x32xf32>
    %130 = arith.addf %127, %129 : vector<16x32xf32>
    %131 = arith.addf %107, %130 : vector<16x32xf32>
    %132 = vector.extract_strided_slice %0 {offsets = [8, 0], sizes = [1, 32], strides = [1, 1]} : vector<18x128xf32> to vector<1x32xf32>
    %133 = vector.extract_strided_slice %0 {offsets = [9, 0], sizes = [1, 32], strides = [1, 1]} : vector<18x128xf32> to vector<1x32xf32>
    %cst_33 = arith.constant dense<0.000000e+00> : vector<16xf32>
    %134 = vector.multi_reduction <add>, %131, %cst_33 [1] : vector<16x32xf32> to vector<16xf32>
    %135 = vector.shape_cast %134 : vector<16xf32> to vector<16x1xf32>
    %cst_34 = arith.constant 3.200000e+01 : f32
    %136 = vector.broadcast %cst_34 : f32 to vector<16x1xf32>
    %137 = arith.divf %135, %136 : vector<16x1xf32>
    %138 = vector.broadcast %137 : vector<16x1xf32> to vector<16x32xf32>
    %139 = arith.subf %131, %138 : vector<16x32xf32>
    %140 = arith.mulf %139, %139 : vector<16x32xf32>
    %cst_35 = arith.constant dense<0.000000e+00> : vector<16xf32>
    %141 = vector.multi_reduction <add>, %140, %cst_35 [1] : vector<16x32xf32> to vector<16xf32>
    %142 = vector.shape_cast %141 : vector<16xf32> to vector<16x1xf32>
    %cst_36 = arith.constant 3.200000e+01 : f32
    %143 = vector.broadcast %cst_36 : f32 to vector<16x1xf32>
    %144 = arith.divf %142, %143 : vector<16x1xf32>
    %145 = vector.broadcast %137 : vector<16x1xf32> to vector<16x32xf32>
    %146 = arith.subf %131, %145 : vector<16x32xf32>
    %cst_37 = arith.constant 9.99999996E-13 : f32
    %147 = vector.broadcast %cst_37 : f32 to vector<16x1xf32>
    %148 = arith.addf %144, %147 : vector<16x1xf32>
    %149 = math.rsqrt %148 : vector<16x1xf32>
    %150 = vector.broadcast %149 : vector<16x1xf32> to vector<16x32xf32>
    %151 = arith.mulf %146, %150 : vector<16x32xf32>
    %152 = vector.broadcast %132 : vector<1x32xf32> to vector<16x32xf32>
    %153 = arith.mulf %151, %152 : vector<16x32xf32>
    %154 = vector.broadcast %133 : vector<1x32xf32> to vector<16x32xf32>
    %155 = arith.addf %153, %154 : vector<16x32xf32>
    %c1 = arith.constant 1 : index
    %c0_38 = arith.constant 0 : index
    %c0_39 = arith.constant 0 : index
    %156 = vector.load %arg3[%c1, %c0_38, %c0_39] : memref<2x32x192xbf16, #tpu.memory_space<vmem>>, vector<1x32x192xbf16>
    %157 = vector.shape_cast %156 : vector<1x32x192xbf16> to vector<32x192xbf16>
    %158 = vector.extract_strided_slice %157 {offsets = [0, 0], sizes = [32, 96], strides = [1, 1]} : vector<32x192xbf16> to vector<32x96xbf16>
    %159 = vector.extract_strided_slice %157 {offsets = [0, 96], sizes = [32, 32], strides = [1, 1]} : vector<32x192xbf16> to vector<32x32xbf16>
    %160 = vector.extract_strided_slice %157 {offsets = [0, 128], sizes = [32, 64], strides = [1, 1]} : vector<32x192xbf16> to vector<32x64xbf16>
    %c1_40 = arith.constant 1 : index
    %c0_41 = arith.constant 0 : index
    %c0_42 = arith.constant 0 : index
    %161 = vector.load %arg4[%c1_40, %c0_41, %c0_42] : memref<2x64x32xbf16, #tpu.memory_space<vmem>>, vector<1x64x32xbf16>
    %162 = vector.shape_cast %161 : vector<1x64x32xbf16> to vector<64x32xbf16>
    %163 = arith.truncf %155 : vector<16x32xf32> to vector<16x32xbf16>
    %cst_43 = arith.constant dense<0.000000e+00> : vector<16x96xf32>
    %164 = tpu.matmul %163, %158, %cst_43 {dimension_numbers = #tpu.dot_dimension_numbers<[1], [0], [0], [1], [0, 0, 1, 1], [], []>} : vector<16x32xbf16>, vector<32x96xbf16>, vector<16x96xf32> -> vector<16x96xf32>
    %165 = vector.extract_strided_slice %0 {offsets = [10, 0], sizes = [1, 96], strides = [1, 1]} : vector<18x128xf32> to vector<1x96xf32>
    %166 = vector.broadcast %165 : vector<1x96xf32> to vector<16x96xf32>
    %167 = arith.addf %164, %166 : vector<16x96xf32>
    %168 = vector.extract_strided_slice %167 {offsets = [0, 0], sizes = [16, 32], strides = [1, 1]} : vector<16x96xf32> to vector<16x32xf32>
    %169 = vector.extract_strided_slice %168 {offsets = [0, 0], sizes = [16, 16], strides = [1, 1]} : vector<16x32xf32> to vector<16x16xf32>
    %170 = vector.shape_cast %169 : vector<16x16xf32> to vector<2x8x16xf32>
    %171 = vector.extract_strided_slice %168 {offsets = [0, 16], sizes = [16, 16], strides = [1, 1]} : vector<16x32xf32> to vector<16x16xf32>
    %172 = vector.shape_cast %171 : vector<16x16xf32> to vector<2x8x16xf32>
    %173 = tpu.concatenate %170, %172 in 0 : vector<2x8x16xf32>, vector<2x8x16xf32> -> vector<4x8x16xf32>
    %174 = vector.extract_strided_slice %167 {offsets = [0, 32], sizes = [16, 32], strides = [1, 1]} : vector<16x96xf32> to vector<16x32xf32>
    %175 = vector.extract_strided_slice %174 {offsets = [0, 0], sizes = [16, 16], strides = [1, 1]} : vector<16x32xf32> to vector<16x16xf32>
    %176 = vector.shape_cast %175 : vector<16x16xf32> to vector<2x8x16xf32>
    %177 = vector.extract_strided_slice %174 {offsets = [0, 16], sizes = [16, 16], strides = [1, 1]} : vector<16x32xf32> to vector<16x16xf32>
    %178 = vector.shape_cast %177 : vector<16x16xf32> to vector<2x8x16xf32>
    %179 = tpu.concatenate %176, %178 in 0 : vector<2x8x16xf32>, vector<2x8x16xf32> -> vector<4x8x16xf32>
    %180 = vector.extract_strided_slice %167 {offsets = [0, 64], sizes = [16, 32], strides = [1, 1]} : vector<16x96xf32> to vector<16x32xf32>
    %181 = vector.extract_strided_slice %180 {offsets = [0, 0], sizes = [16, 16], strides = [1, 1]} : vector<16x32xf32> to vector<16x16xf32>
    %182 = vector.shape_cast %181 : vector<16x16xf32> to vector<2x8x16xf32>
    %183 = vector.extract_strided_slice %180 {offsets = [0, 16], sizes = [16, 16], strides = [1, 1]} : vector<16x32xf32> to vector<16x16xf32>
    %184 = vector.shape_cast %183 : vector<16x16xf32> to vector<2x8x16xf32>
    %185 = tpu.concatenate %182, %184 in 0 : vector<2x8x16xf32>, vector<2x8x16xf32> -> vector<4x8x16xf32>
    "tpu.trace_start"() <{level = 10 : i32, message = "bqd,bkd->bqk"}> : () -> ()
    %cst_44 = arith.constant dense<0.000000e+00> : vector<4x8x8xf32>
    %186 = tpu.matmul %173, %179, %cst_44 {dimension_numbers = #tpu.dot_dimension_numbers<[2], [2], [1], [1], [0, 0, 0, 1, 1, 1], [0], [0]>} : vector<4x8x16xf32>, vector<4x8x16xf32>, vector<4x8x8xf32> -> vector<4x8x8xf32>
    "tpu.trace_stop"() : () -> ()
    %cst_45 = arith.constant 2.500000e-01 : f32
    %187 = vector.broadcast %cst_45 : f32 to vector<4x8x8xf32>
    %188 = arith.mulf %186, %187 : vector<4x8x8xf32>
    %189 = vector.broadcast %27 : vector<4x1x8xf32> to vector<4x8x8xf32>
    %190 = arith.addf %188, %189 : vector<4x8x8xf32>
    %cst_46 = arith.constant dense<0xFF800000> : vector<4x8xf32>
    %191 = vector.multi_reduction <maximumf>, %190, %cst_46 [2] : vector<4x8x8xf32> to vector<4x8xf32>
    %192 = vector.shape_cast %191 : vector<4x8xf32> to vector<4x8x1xf32>
    %193 = vector.broadcast %192 : vector<4x8x1xf32> to vector<4x8x8xf32>
    %194 = arith.subf %190, %193 : vector<4x8x8xf32>
    %195 = math.exp %194 : vector<4x8x8xf32>
    %cst_47 = arith.constant dense<0.000000e+00> : vector<4x8xf32>
    %196 = vector.multi_reduction <add>, %195, %cst_47 [2] : vector<4x8x8xf32> to vector<4x8xf32>
    %197 = vector.shape_cast %196 : vector<4x8xf32> to vector<4x8x1xf32>
    %198 = tpu.reciprocal %197 {approx = true} : vector<4x8x1xf32> -> vector<4x8x1xf32>
    %199 = vector.broadcast %198 : vector<4x8x1xf32> to vector<4x8x8xf32>
    %200 = arith.mulf %195, %199 : vector<4x8x8xf32>
    "tpu.trace_start"() <{level = 10 : i32, message = "bqk,bkd->bqd"}> : () -> ()
    %cst_48 = arith.constant dense<0.000000e+00> : vector<4x8x16xf32>
    %201 = tpu.matmul %200, %185, %cst_48 {dimension_numbers = #tpu.dot_dimension_numbers<[2], [1], [1], [2], [0, 0, 0, 1, 1, 2], [0], [0]>} : vector<4x8x8xf32>, vector<4x8x16xf32>, vector<4x8x16xf32> -> vector<4x8x16xf32>
    "tpu.trace_stop"() : () -> ()
    %202 = vector.extract_strided_slice %201 {offsets = [0, 0, 0], sizes = [2, 8, 16], strides = [1, 1, 1]} : vector<4x8x16xf32> to vector<2x8x16xf32>
    %203 = vector.extract_strided_slice %201 {offsets = [2, 0, 0], sizes = [2, 8, 16], strides = [1, 1, 1]} : vector<4x8x16xf32> to vector<2x8x16xf32>
    %204 = tpu.concatenate %202, %203 in 2 : vector<2x8x16xf32>, vector<2x8x16xf32> -> vector<2x8x32xf32>
    %205 = vector.shape_cast %204 : vector<2x8x32xf32> to vector<16x32xf32>
    %206 = arith.truncf %205 : vector<16x32xf32> to vector<16x32xbf16>
    %cst_49 = arith.constant dense<0.000000e+00> : vector<16x32xf32>
    %207 = tpu.matmul %206, %159, %cst_49 {dimension_numbers = #tpu.dot_dimension_numbers<[1], [0], [0], [1], [0, 0, 1, 1], [], []>} : vector<16x32xbf16>, vector<32x32xbf16>, vector<16x32xf32> -> vector<16x32xf32>
    %208 = vector.extract_strided_slice %0 {offsets = [11, 0], sizes = [1, 32], strides = [1, 1]} : vector<18x128xf32> to vector<1x32xf32>
    %209 = vector.broadcast %208 : vector<1x32xf32> to vector<16x32xf32>
    %210 = arith.addf %207, %209 : vector<16x32xf32>
    %211 = arith.addf %155, %210 : vector<16x32xf32>
    %212 = vector.extract_strided_slice %0 {offsets = [14, 0], sizes = [1, 32], strides = [1, 1]} : vector<18x128xf32> to vector<1x32xf32>
    %213 = vector.extract_strided_slice %0 {offsets = [15, 0], sizes = [1, 32], strides = [1, 1]} : vector<18x128xf32> to vector<1x32xf32>
    %cst_50 = arith.constant dense<0.000000e+00> : vector<16xf32>
    %214 = vector.multi_reduction <add>, %211, %cst_50 [1] : vector<16x32xf32> to vector<16xf32>
    %215 = vector.shape_cast %214 : vector<16xf32> to vector<16x1xf32>
    %cst_51 = arith.constant 3.200000e+01 : f32
    %216 = vector.broadcast %cst_51 : f32 to vector<16x1xf32>
    %217 = arith.divf %215, %216 : vector<16x1xf32>
    %218 = vector.broadcast %217 : vector<16x1xf32> to vector<16x32xf32>
    %219 = arith.subf %211, %218 : vector<16x32xf32>
    %220 = arith.mulf %219, %219 : vector<16x32xf32>
    %cst_52 = arith.constant dense<0.000000e+00> : vector<16xf32>
    %221 = vector.multi_reduction <add>, %220, %cst_52 [1] : vector<16x32xf32> to vector<16xf32>
    %222 = vector.shape_cast %221 : vector<16xf32> to vector<16x1xf32>
    %cst_53 = arith.constant 3.200000e+01 : f32
    %223 = vector.broadcast %cst_53 : f32 to vector<16x1xf32>
    %224 = arith.divf %222, %223 : vector<16x1xf32>
    %225 = vector.broadcast %217 : vector<16x1xf32> to vector<16x32xf32>
    %226 = arith.subf %211, %225 : vector<16x32xf32>
    %cst_54 = arith.constant 9.99999996E-13 : f32
    %227 = vector.broadcast %cst_54 : f32 to vector<16x1xf32>
    %228 = arith.addf %224, %227 : vector<16x1xf32>
    %229 = math.rsqrt %228 : vector<16x1xf32>
    %230 = vector.broadcast %229 : vector<16x1xf32> to vector<16x32xf32>
    %231 = arith.mulf %226, %230 : vector<16x32xf32>
    %232 = vector.broadcast %212 : vector<1x32xf32> to vector<16x32xf32>
    %233 = arith.mulf %231, %232 : vector<16x32xf32>
    %234 = vector.broadcast %213 : vector<1x32xf32> to vector<16x32xf32>
    %235 = arith.addf %233, %234 : vector<16x32xf32>
    %236 = arith.truncf %235 : vector<16x32xf32> to vector<16x32xbf16>
    %cst_55 = arith.constant dense<0.000000e+00> : vector<16x64xf32>
    %237 = tpu.matmul %236, %160, %cst_55 {dimension_numbers = #tpu.dot_dimension_numbers<[1], [0], [0], [1], [0, 0, 1, 1], [], []>} : vector<16x32xbf16>, vector<32x64xbf16>, vector<16x64xf32> -> vector<16x64xf32>
    %238 = vector.extract_strided_slice %0 {offsets = [12, 0], sizes = [1, 64], strides = [1, 1]} : vector<18x128xf32> to vector<1x64xf32>
    %239 = vector.broadcast %238 : vector<1x64xf32> to vector<16x64xf32>
    %240 = arith.addf %237, %239 : vector<16x64xf32>
    %cst_56 = arith.constant 5.000000e-01 : f32
    %241 = vector.broadcast %cst_56 : f32 to vector<16x64xf32>
    %242 = arith.mulf %241, %240 : vector<16x64xf32>
    %cst_57 = arith.constant 4.471500e-02 : f32
    %243 = vector.broadcast %cst_57 : f32 to vector<16x64xf32>
    %244 = arith.mulf %243, %240 : vector<16x64xf32>
    %245 = arith.mulf %244, %240 : vector<16x64xf32>
    %246 = arith.mulf %245, %240 : vector<16x64xf32>
    %247 = arith.addf %240, %246 : vector<16x64xf32>
    %cst_58 = arith.constant 0.797884583 : f32
    %248 = vector.broadcast %cst_58 : f32 to vector<16x64xf32>
    %249 = arith.mulf %248, %247 : vector<16x64xf32>
    %250 = math.tanh %249 : vector<16x64xf32>
    %cst_59 = arith.constant 1.000000e+00 : f32
    %251 = vector.broadcast %cst_59 : f32 to vector<16x64xf32>
    %252 = arith.addf %251, %250 : vector<16x64xf32>
    %253 = arith.mulf %242, %252 : vector<16x64xf32>
    %254 = arith.truncf %253 : vector<16x64xf32> to vector<16x64xbf16>
    %cst_60 = arith.constant dense<0.000000e+00> : vector<16x32xf32>
    %255 = tpu.matmul %254, %162, %cst_60 {dimension_numbers = #tpu.dot_dimension_numbers<[1], [0], [0], [1], [0, 0, 1, 1], [], []>} : vector<16x64xbf16>, vector<64x32xbf16>, vector<16x32xf32> -> vector<16x32xf32>
    %256 = vector.extract_strided_slice %0 {offsets = [13, 0], sizes = [1, 32], strides = [1, 1]} : vector<18x128xf32> to vector<1x32xf32>
    %257 = vector.broadcast %256 : vector<1x32xf32> to vector<16x32xf32>
    %258 = arith.addf %255, %257 : vector<16x32xf32>
    %259 = arith.addf %235, %258 : vector<16x32xf32>
    %260 = vector.extract_strided_slice %0 {offsets = [16, 0], sizes = [1, 32], strides = [1, 1]} : vector<18x128xf32> to vector<1x32xf32>
    %261 = vector.extract_strided_slice %0 {offsets = [17, 0], sizes = [1, 32], strides = [1, 1]} : vector<18x128xf32> to vector<1x32xf32>
    %cst_61 = arith.constant dense<0.000000e+00> : vector<16xf32>
    %262 = vector.multi_reduction <add>, %259, %cst_61 [1] : vector<16x32xf32> to vector<16xf32>
    %263 = vector.shape_cast %262 : vector<16xf32> to vector<16x1xf32>
    %cst_62 = arith.constant 3.200000e+01 : f32
    %264 = vector.broadcast %cst_62 : f32 to vector<16x1xf32>
    %265 = arith.divf %263, %264 : vector<16x1xf32>
    %266 = vector.broadcast %265 : vector<16x1xf32> to vector<16x32xf32>
    %267 = arith.subf %259, %266 : vector<16x32xf32>
    %268 = arith.mulf %267, %267 : vector<16x32xf32>
    %cst_63 = arith.constant dense<0.000000e+00> : vector<16xf32>
    %269 = vector.multi_reduction <add>, %268, %cst_63 [1] : vector<16x32xf32> to vector<16xf32>
    %270 = vector.shape_cast %269 : vector<16xf32> to vector<16x1xf32>
    %cst_64 = arith.constant 3.200000e+01 : f32
    %271 = vector.broadcast %cst_64 : f32 to vector<16x1xf32>
    %272 = arith.divf %270, %271 : vector<16x1xf32>
    %273 = vector.broadcast %265 : vector<16x1xf32> to vector<16x32xf32>
    %274 = arith.subf %259, %273 : vector<16x32xf32>
    %cst_65 = arith.constant 9.99999996E-13 : f32
    %275 = vector.broadcast %cst_65 : f32 to vector<16x1xf32>
    %276 = arith.addf %272, %275 : vector<16x1xf32>
    %277 = math.rsqrt %276 : vector<16x1xf32>
    %278 = vector.broadcast %277 : vector<16x1xf32> to vector<16x32xf32>
    %279 = arith.mulf %274, %278 : vector<16x32xf32>
    %280 = vector.broadcast %260 : vector<1x32xf32> to vector<16x32xf32>
    %281 = arith.mulf %279, %280 : vector<16x32xf32>
    %282 = vector.broadcast %261 : vector<1x32xf32> to vector<16x32xf32>
    %283 = arith.addf %281, %282 : vector<16x32xf32>
    %284 = arith.truncf %283 : vector<16x32xf32> to vector<16x32xbf16>
    %c0_66 = arith.constant 0 : index
    %c0_67 = arith.constant 0 : index
    %285 = vector.load %arg5[%c0_66, %c0_67] : memref<32x1024xbf16, #tpu.memory_space<vmem>>, vector<32x1024xbf16>
    %cst_68 = arith.constant dense<0.000000e+00> : vector<16x1024xf32>
    %286 = tpu.matmul %284, %285, %cst_68 {dimension_numbers = #tpu.dot_dimension_numbers<[1], [0], [0], [1], [0, 0, 1, 1], [], []>} : vector<16x32xbf16>, vector<32x1024xbf16>, vector<16x1024xf32> -> vector<16x1024xf32>
    %c0_69 = arith.constant 0 : index
    %c0_70 = arith.constant 0 : index
    %287 = vector.load %arg6[%c0_69, %c0_70] : memref<3x1024xf32, #tpu.memory_space<vmem>>, vector<1x1024xf32>
    %288 = vector.broadcast %287 : vector<1x1024xf32> to vector<16x1024xf32>
    %289 = arith.addf %286, %288 : vector<16x1024xf32>
    %290 = math.tanh %289 : vector<16x1024xf32>
    tpu.wait_dma2 semaphore(%arg10 : memref<!tpu.dma_semaphore, #tpu.memory_space<semaphore_mem>>) src(%arg7 : memref<1024x1152xbf16, #tpu.memory_space<any>>) dst(%arg9 : memref<1024x1152xbf16, #tpu.memory_space<vmem>>)
    %291 = arith.truncf %290 : vector<16x1024xf32> to vector<16x1024xbf16>
    %c0_71 = arith.constant 0 : index
    %c0_72 = arith.constant 0 : index
    %292 = vector.load %arg9[%c0_71, %c0_72] : memref<1024x1152xbf16, #tpu.memory_space<vmem>>, vector<1024x1024xbf16>
    %cst_73 = arith.constant dense<0.000000e+00> : vector<16x1024xf32>
    %293 = tpu.matmul %291, %292, %cst_73 {dimension_numbers = #tpu.dot_dimension_numbers<[1], [0], [0], [1], [0, 0, 1, 1], [], []>} : vector<16x1024xbf16>, vector<1024x1024xbf16>, vector<16x1024xf32> -> vector<16x1024xf32>
    %c1_74 = arith.constant 1 : index
    %c0_75 = arith.constant 0 : index
    %294 = vector.load %arg6[%c1_74, %c0_75] : memref<3x1024xf32, #tpu.memory_space<vmem>>, vector<1x1024xf32>
    %295 = vector.broadcast %294 : vector<1x1024xf32> to vector<16x1024xf32>
    %296 = arith.addf %293, %295 : vector<16x1024xf32>
    %297 = math.tanh %296 : vector<16x1024xf32>
    %298 = arith.truncf %297 : vector<16x1024xf32> to vector<16x1024xbf16>
    %c0_76 = arith.constant 0 : index
    %c1024 = arith.constant 1024 : index
    %299 = vector.load %arg9[%c0_76, %c1024] : memref<1024x1152xbf16, #tpu.memory_space<vmem>>, vector<1024x128xbf16>
    %cst_77 = arith.constant dense<0.000000e+00> : vector<16x128xf32>
    %300 = tpu.matmul %298, %299, %cst_77 {dimension_numbers = #tpu.dot_dimension_numbers<[1], [0], [0], [1], [0, 0, 1, 1], [], []>} : vector<16x1024xbf16>, vector<1024x128xbf16>, vector<16x128xf32> -> vector<16x128xf32>
    %c2 = arith.constant 2 : index
    %c0_78 = arith.constant 0 : index
    %301 = vector.load %arg6[%c2, %c0_78] : memref<3x1024xf32, #tpu.memory_space<vmem>>, vector<1x128xf32>
    %302 = vector.broadcast %301 : vector<1x128xf32> to vector<16x128xf32>
    %303 = arith.addf %300, %302 : vector<16x128xf32>
    %c0_79 = arith.constant 0 : index
    %c0_80 = arith.constant 0 : index
    %304 = vector.load %arg8[%c0_79, %c0_80] : memref<16x128xf32, #tpu.memory_space<vmem>>, vector<16x128xf32>
    tpu.vector_store %arg8[%c0_79, %c0_80], %303 {strides = array<i32>} : memref<16x128xf32, #tpu.memory_space<vmem>>, vector<16x128xf32>,
    return
  }
}

</mosaic_0001>

<llo_original>
// kernel: forward.1
$region0: #{forward.1}
  #allocation0 [shape = 'u32[]', space=smem, size = 0x4, offset = 0x4, fixed_abs, tag = 'smem constant byte address 0x4 - core index']
  #allocation1 [shape = 'u32[72,128]{1,0:T(1,128)}', space=vmem, size = 0x9000, scoped, tag = 'internal scratch']
  #allocation2 [shape = 'bf16[1024,1152]{1,0:T(8,128)(2,1)}', space=vmem, size = 0x240000, scoped, tag = 'scratch operand']
  #allocation3 [shape = 's32[1]{0}', space=sflag, size = 0x4, scoped, tag = 'scratch operand']
  #allocation11 [shape = 's32[]', space=sflag, size = 0x4, offset = 0, fixed_abs, tag = 'sflag constant byte address 0x0 - dummy sync flag']
  #allocation12 [shape = 's32[]', space=sflag, size = 0x4, offset = 0, fixed_abs, tag = 'sflag constant byte address 0x0 - dummy sync flag']
  #allocation13 [shape = 'u32[]', space=smem, size = 0x4, offset = 0x44, fixed_abs, tag = 'smem constant byte address 0x44 - assertion arg 0']
  #allocation14 [shape = 'u32[]', space=smem, size = 0x4, offset = 0x48, fixed_abs, tag = 'smem constant byte address 0x48 - assertion arg 1']
  %s0 = inlined_call_operand.vmem [shape: f32[16,32], index: 0, kind: input, shape index: {}]
  %s1 = inlined_call_operand.vmem [shape: f32[4,8], index: 1, kind: input, shape index: {}]
  %s2 = inlined_call_operand.hbm [shape: f32[18,128], index: 2, kind: input, shape index: {}]
  %s3 = inlined_call_operand.hbm [shape: bf16[2,32,192], index: 3, kind: input, shape index: {}]
  %s4 = inlined_call_operand.vmem [shape: bf16[2,64,32], index: 4, kind: input, shape index: {}]
  %s5 = inlined_call_operand.hbm [shape: bf16[32,1024], index: 5, kind: input, shape index: {}]
  %s6 = inlined_call_operand.hbm [shape: f32[3,1024], index: 6, kind: input, shape index: {}]
  %s7 = inlined_call_operand.hbm [shape: bf16[1024,1152], index: 7, kind: input, shape index: {}]
  %s8 = inlined_call_operand.vmem [shape: f32[16,128], index: 8, kind: output, shape index: {}]
  %s9 = sld [smem:[#allocation0]]
  $region58: #{forward.1} parent=0
    _
  %s11 = ssub.s32 1, %s9
  %s12 = scalar_select 0, %s11, %s9
  $region1: #{forward.1} parent=0
    #allocation4 [shape = 'u8[12288]{0}', space=vmem, size = 0x3000, scoped, tag = 'input window, operand 2, single buffered']
    #allocation5 [shape = 's32[1]{0}', space=sflag, size = 0x4, scoped, tag = 'scoped memory for forward.1']
    #allocation6 [shape = 'u8[32768]{0}', space=vmem, size = 0x8000, scoped, tag = 'input window, operand 3, single buffered']
    #allocation7 [shape = 's32[1]{0}', space=sflag, size = 0x4, scoped, tag = 'scoped memory for forward.1']
    #allocation8 [shape = 'u8[65536]{0}', space=vmem, size = 0x10000, scoped, tag = 'input window, operand 5, single buffered']
    #allocation9 [shape = 'u8[16384]{0}', space=vmem, size = 0x4000, scoped, tag = 'input window, operand 6, single buffered']
    #allocation10 [shape = 's32[1]{0}', space=sflag, size = 0x4, scoped, tag = 'scoped memory for forward.1']
    %13 = vsyncpa [#allocation5], 0
    %14 = vsyncpa [#allocation7], 0
    %15 = vsyncpa [#allocation10], 0
    // Predicated region
    $region2: #{forward.1} parent=1 // pred_check
      _
    $region3: #{forward.1} parent=1 // pred_check_branch
      %17 = sbr.rel (0) target = $region5
    $region4: #{forward.1} parent=1 // pred_region
      _
    $region5: #{forward.1} parent=1 // pred_fallthru
      _
    // Predicated region
    $region6: #{forward.1} parent=1 // pred_check
      _
    $region7: #{forward.1} parent=1 // pred_check_branch
      %19 = sbr.rel (0) target = $region9
    $region8: #{forward.1} parent=1 // pred_region
      _
    $region9: #{forward.1} parent=1 // pred_fallthru
      _
    // Predicated region
    $region10: #{forward.1} parent=1 // pred_check
      _
    $region11: #{forward.1} parent=1 // pred_check_branch
      %21 = sbr.rel (0) target = $region13
    $region12: #{forward.1} parent=1 // pred_region
      %23 = vsyncadd [#allocation5], 0
      %s24 = sshll.u32 %s2, 4
      %s25 = int_to_ptr.hbm [resolvable:$true] %s24
      %s26 = sshll.u32 [#allocation4], 4
      %s27 = int_to_ptr.vmem [resolvable:$true] %s26
      %32 = dma.hbm_to_vmem [thread:$0]  %s25, 384, %s27, [#allocation5], 128, 128, 8
    $region13: #{forward.1} parent=1 // pred_fallthru
      _
    // Predicated region
    $region14: #{forward.1} parent=1 // pred_check
      _
    $region15: #{forward.1} parent=1 // pred_check_branch
      %34 = sbr.rel (0) target = $region17
    $region16: #{forward.1} parent=1 // pred_region
      %36 = vsyncadd [#allocation7], 0
      %s37 = sshll.u32 %s3, 4
      %s38 = int_to_ptr.hbm [resolvable:$true] %s37
      %s39 = sshll.u32 [#allocation6], 4
      %s40 = int_to_ptr.vmem [resolvable:$true] %s39
      %45 = dma.hbm_to_vmem [thread:$0]  %s38, 1024, %s40, [#allocation7], 128, 128, 8
    $region17: #{forward.1} parent=1 // pred_fallthru
      _
    // Predicated region
    $region18: #{forward.1} parent=1 // pred_check
      _
    $region19: #{forward.1} parent=1 // pred_check_branch
      %47 = sbr.rel (0) target = $region21
    $region20: #{forward.1} parent=1 // pred_region
      _
    $region21: #{forward.1} parent=1 // pred_fallthru
      _
    // Predicated region
    $region22: #{forward.1} parent=1 // pred_check
      _
    $region23: #{forward.1} parent=1 // pred_check_branch
      %49 = sbr.rel (0) target = $region25
    $region24: #{forward.1} parent=1 // pred_region
      %51 = vsyncadd [#allocation7], 0
      %s52 = sshll.u32 %s5, 4
      %s53 = int_to_ptr.hbm [resolvable:$true] %s52
      %s54 = sshll.u32 [#allocation8], 4
      %s55 = int_to_ptr.vmem [resolvable:$true] %s54
      %60 = dma.hbm_to_vmem [thread:$0]  %s53, 2048, %s55, [#allocation7], 512, 512, 32
    $region25: #{forward.1} parent=1 // pred_fallthru
      _
    // Predicated region
    $region26: #{forward.1} parent=1 // pred_check
      _
    $region27: #{forward.1} parent=1 // pred_check_branch
      %62 = sbr.rel (0) target = $region29
    $region28: #{forward.1} parent=1 // pred_region
      %64 = vsyncadd [#allocation10], 0
      %s66 = sshll.u32 %s6, 4
      %s67 = int_to_ptr.hbm [resolvable:$true] %s66
      %s68 = sshll.u32 [#allocation9], 4
      %s69 = int_to_ptr.vmem [resolvable:$true] %s68
      %71 = dma.hbm_to_vmem [thread:$0]  %s67, 512, %s69, [#allocation10]
    $region29: #{forward.1} parent=1 // pred_fallthru
      _
    // Predicated region
    $region30: #{forward.1} parent=1 // pred_check
      _
    $region31: #{forward.1} parent=1 // pred_check_branch
      %73 = sbr.rel (0) target = $region33
    $region32: #{forward.1} parent=1 // pred_region
      %75 = dma.done [#allocation5], 384
    $region33: #{forward.1} parent=1 // pred_fallthru
      _
    // Predicated region
    $region34: #{forward.1} parent=1 // pred_check
      _
    $region35: #{forward.1} parent=1 // pred_check_branch
      %77 = sbr.rel (0) target = $region37
    $region36: #{forward.1} parent=1 // pred_region
      %79 = dma.done [#allocation7], 1024
    $region37: #{forward.1} parent=1 // pred_fallthru
      _
    // Predicated region
    $region38: #{forward.1} parent=1 // pred_check
      _
    $region39: #{forward.1} parent=1 // pred_check_branch
      %81 = sbr.rel (0) target = $region41
    $region40: #{forward.1} parent=1 // pred_region
      %83 = dma.done [#allocation7], 2048
    $region41: #{forward.1} parent=1 // pred_fallthru
      _
    // Predicated region
    $region42: #{forward.1} parent=1 // pred_check
      _
    $region43: #{forward.1} parent=1 // pred_check_branch
      %85 = sbr.rel (0) target = $region45
    $region44: #{forward.1} parent=1 // pred_region
      %87 = dma.done [#allocation10], 512
    $region45: #{forward.1} parent=1 // pred_fallthru
      _
    // Predicated region
    $region46: #{forward.1} parent=1 // pred_check
      _
    $region47: #{forward.1} parent=1 // pred_check_branch
      %90 = sbr.rel target = $region49
    $region48: #{forward.1} parent=1 // pred_region
      %91 = sst [smem:[#allocation13]] [#allocation12]
      %92 = sst [smem:[#allocation14]] [#allocation11]
    $region49: #{forward.1} parent=1 // pred_fallthru
      _
    %94 = shalt.err (0)
    %s96 = sshll.u32 %s7, 4
    %s97 = int_to_ptr.hbm [resolvable:$true] %s96
    %s98 = sshll.u32 [#allocation2], 4
    %s99 = int_to_ptr.vmem [resolvable:$true] %s98
    %101 = dma.hbm_to_vmem [thread:$0]  %s97, 73728, %s99, [#allocation3]
    %v102 = vld [vmem:[#allocation4] sm:$0xff]
    %v103 = vld [vmem:[#allocation4 + $0x8] sm:$0xff]
    %v104 = vld [vmem:[#allocation4 + $0x10] sm:$0x3]
    %v105 = vld [vmem:[%s0] sm:$0xff]
    %v106 = vld [vmem:[%s0 + $0x8] sm:$0xff]
    %vm107 = vcmask 261120
    %v108 = vsel %vm107, %v105, 0.0
    %109 = vadd.xlane.f32.xlu0 %v108
    %v110 = vpop.xlane.xlu0 %109
    %v111 = vsel %vm107, %v106, 0.0
    %112 = vadd.xlane.f32.xlu0 %v111
    %v113 = vpop.xlane.xlu0 %112
    %v114 = vrcp.pop 32.0
    %v115 = vmul.f32 32.0, %v114
    %v116 = vsub.f32 1.0, %v115
    %v117 = vmul.f32 %v114, %v116
    %v118 = vadd.f32 %v114, %v117
    %vm119 = vweird.f32 %v114
    %v120 = vsel %vm119, %v114, %v118
    %v121 = vmul.f32 %v110, %v120
    %v122 = vmul.f32 %v113, %v120
    %v123 = vsub.f32 %v105, %v121
    %v124 = vsub.f32 %v106, %v122
    %v125 = vmul.f32 %v123, %v123
    %v126 = vmul.f32 %v124, %v124
    %v127 = vsel %vm107, %v125, 0.0
    %128 = vadd.xlane.f32.xlu0 %v127
    %v129 = vpop.xlane.xlu0 %128
    %v130 = vsel %vm107, %v126, 0.0
    %131 = vadd.xlane.f32.xlu0 %v130
    %v132 = vpop.xlane.xlu0 %131
    %v133 = vmul.f32 %v129, %v120
    %v134 = vmul.f32 %v132, %v120
    %v135 = vadd.f32 %v133, 1e-12
    %v136 = vadd.f32 %v134, 1e-12
    %v137 = vrsqrt.pop %v135
    %v138 = vmul.f32 %v137, %v135
    %v139 = vmul.f32 %v138, %v137
    %v140 = vmul.f32 0.5, %v139
    %v141 = vsub.f32 1.5, %v140
    %v142 = vmul.f32 %v137, %v141
    %vm143 = vweird.f32 %v135
    %vm144 = vweird.f32 %v137
    %vm145 = vmor %vm143, %vm144
    %v146 = vsel %vm145, %v137, %v142
    %v147 = vrsqrt.pop %v136
    %v148 = vmul.f32 %v147, %v136
    %v149 = vmul.f32 %v148, %v147
    %v150 = vmul.f32 0.5, %v149
    %v151 = vsub.f32 1.5, %v150
    %v152 = vmul.f32 %v147, %v151
    %vm153 = vweird.f32 %v136
    %vm154 = vweird.f32 %v147
    %vm155 = vmor %vm153, %vm154
    %v156 = vsel %vm155, %v147, %v152
    %v157 = vmul.f32 %v123, %v146
    %v158 = vmul.f32 %v124, %v156
    %v159 = vperm.slane %v102, 0
    %v160 = vmul.f32 %v157, %v159
    %v161 = vmul.f32 %v158, %v159
    %v162 = vperm.slane %v102, 1
    %v163 = vadd.f32 %v160, %v162
    %v164 = vadd.f32 %v161, %v162
    %v165 = vld [vmem:[%s1] sm:$0xf]
    %v167 = vrot.slane %v165, 1
    %v168 = vrot.slane %v165, 2
    %v169 = vrot.slane %v165, 3
    %v170 = vld [vmem:[#allocation6] sm:$0xff]
    %v171 = vld [vmem:[#allocation6 + $0x8] sm:$0xff]
    %v172 = vld [vmem:[#allocation6 + $0x10] sm:$0xff]
    %v173 = vld [vmem:[#allocation6 + $0x18] sm:$0xff]
    %v174 = vld [vmem:[%s4] sm:$0xf]
    %v175 = vld [vmem:[%s4 + $0x4] sm:$0xf]
    %v176 = vld [vmem:[%s4 + $0x8] sm:$0xf]
    %v177 = vld [vmem:[%s4 + $0xc] sm:$0xf]
    %v178 = vld [vmem:[%s4 + $0x10] sm:$0xf]
    %v179 = vld [vmem:[%s4 + $0x14] sm:$0xf]
    %v180 = vld [vmem:[%s4 + $0x18] sm:$0xf]
    %v181 = vld [vmem:[%s4 + $0x1c] sm:$0xf]
    %v182 = vpack.c.bf16 %v164, %v163
    %v183 = vperm.slane %v102, 2
    %v188 = vunpack.c.l.b16 %v170
    %v189 = vunpack.c.l.b16 %v171
    %v190 = vunpack.c.l.b16 %v172
    %v191 = vunpack.c.l.b16 %v173
    %v192 = vpack.c.b16 %v189, %v188
    %v193 = vpack.c.b16 %v191, %v190
    %v197 = vsel %vm107, %v182, 0
    %199 = vmatpush.bf16.msra.mxu0 0
    %200 = vmatpush.bf16.msra.mxu0 0
    %201 = vmatpush.bf16.msra.mxu0 0
    %202 = vmatpush.bf16.msra.mxu0 0
    %203 = vmatpush.bf16.msra.mxu0 0
    %204 = vmatpush.bf16.msra.mxu0 0
    %205 = vmatpush.bf16.msra.mxu0 %v193
    %206 = vmatpush.bf16.msra.mxu0 %v192
    %207 = vmatmul.bf16.gmra.mxu0 %v197
    %v208 = vpop.f32.mrf.mxu0
    %v209 = vadd.f32 %v183, %v208
    %v210 = vpop.f32.mrf.mxu0
    %v211 = vadd.f32 %v183, %v210
    %212 = vdwg.mxu0
    %215 = vrot.lane.b32.xlu0 %v209, 112
    %v216 = vpop.permute.xlu0 %215
    %217 = vrot.lane.b32.xlu0 %v211, 112
    %v218 = vpop.permute.xlu0 %217
    %219 = vrot.lane.b32.xlu0 %v209, 96
    %v220 = vpop.permute.xlu0 %219
    %vm221 = vcmask 130048
    %v222 = vsel %vm221, %v209, 0
    %v224 = vsel %vm221, %v220, 0
    %226 = vmatpush.xpose.msra.mxu0 0.0
    %227 = vmatpush.xpose.msra.mxu0 0.0
    %228 = vmatpush.xpose.msra.mxu0 0.0
    %229 = vmatpush.xpose.msra.mxu0 0.0
    %230 = vmatpush.xpose.msra.mxu0 0.0
    %231 = vmatpush.xpose.msra.mxu0 0.0
    %232 = vmatpush.xpose.msra.mxu0 0.0
    %233 = vmatpush.xpose.msra.mxu0 0.0
    %234 = vmatpush.xpose.msra.mxu0 0.0
    %235 = vmatpush.xpose.msra.mxu0 0.0
    %236 = vmatpush.xpose.msra.mxu0 0.0
    %237 = vmatpush.xpose.msra.mxu0 0.0
    %238 = vmatpush.xpose.msra.mxu0 0.0
    %239 = vmatpush.xpose.msra.mxu0 0.0
    %240 = vmatpush.xpose.msra.mxu0 0.0
    %241 = vmatpush.xpose.msra.mxu0 %v224
    %242 = vmatmul.f32.gmra.mxu0 %v222
    %v243 = vpop.f32.mrf.mxu0
    %v244 = vadd.f32 0.0, %v243
    %245 = vdwg.mxu0
    %246 = vrot.lane.b32.xlu0 %v211, 96
    %v247 = vpop.permute.xlu0 %246
    %v248 = vsel %vm221, %v211, 0
    %v250 = vsel %vm221, %v247, 0
    %252 = vmatpush.xpose.msra.mxu0 0.0
    %253 = vmatpush.xpose.msra.mxu0 0.0
    %254 = vmatpush.xpose.msra.mxu0 0.0
    %255 = vmatpush.xpose.msra.mxu0 0.0
    %256 = vmatpush.xpose.msra.mxu0 0.0
    %257 = vmatpush.xpose.msra.mxu0 0.0
    %258 = vmatpush.xpose.msra.mxu0 0.0
    %259 = vmatpush.xpose.msra.mxu0 0.0
    %260 = vmatpush.xpose.msra.mxu0 0.0
    %261 = vmatpush.xpose.msra.mxu0 0.0
    %262 = vmatpush.xpose.msra.mxu0 0.0
    %263 = vmatpush.xpose.msra.mxu0 0.0
    %264 = vmatpush.xpose.msra.mxu0 0.0
    %265 = vmatpush.xpose.msra.mxu0 0.0
    %266 = vmatpush.xpose.msra.mxu0 0.0
    %267 = vmatpush.xpose.msra.mxu0 %v250
    %268 = vmatmul.f32.gmra.mxu0 %v248
    %v269 = vpop.f32.mrf.mxu0
    %v270 = vadd.f32 0.0, %v269
    %271 = vdwg.mxu0
    %272 = vrot.lane.b32.xlu0 %v216, 96
    %v273 = vpop.permute.xlu0 %272
    %v274 = vsel %vm221, %v216, 0
    %v276 = vsel %vm221, %v273, 0
    %278 = vmatpush.xpose.msra.mxu0 0.0
    %279 = vmatpush.xpose.msra.mxu0 0.0
    %280 = vmatpush.xpose.msra.mxu0 0.0
    %281 = vmatpush.xpose.msra.mxu0 0.0
    %282 = vmatpush.xpose.msra.mxu0 0.0
    %283 = vmatpush.xpose.msra.mxu0 0.0
    %284 = vmatpush.xpose.msra.mxu0 0.0
    %285 = vmatpush.xpose.msra.mxu0 0.0
    %286 = vmatpush.xpose.msra.mxu0 0.0
    %287 = vmatpush.xpose.msra.mxu0 0.0
    %288 = vmatpush.xpose.msra.mxu0 0.0
    %289 = vmatpush.xpose.msra.mxu0 0.0
    %290 = vmatpush.xpose.msra.mxu0 0.0
    %291 = vmatpush.xpose.msra.mxu0 0.0
    %292 = vmatpush.xpose.msra.mxu0 0.0
    %293 = vmatpush.xpose.msra.mxu0 %v276
    %294 = vmatmul.f32.gmra.mxu0 %v274
    %v295 = vpop.f32.mrf.mxu0
    %v296 = vadd.f32 0.0, %v295
    %297 = vdwg.mxu0
    %298 = vrot.lane.b32.xlu0 %v218, 96
    %v299 = vpop.permute.xlu0 %298
    %v300 = vsel %vm221, %v218, 0
    %v302 = vsel %vm221, %v299, 0
    %304 = vmatpush.xpose.msra.mxu0 0.0
    %305 = vmatpush.xpose.msra.mxu0 0.0
    %306 = vmatpush.xpose.msra.mxu0 0.0
    %307 = vmatpush.xpose.msra.mxu0 0.0
    %308 = vmatpush.xpose.msra.mxu0 0.0
    %309 = vmatpush.xpose.msra.mxu0 0.0
    %310 = vmatpush.xpose.msra.mxu0 0.0
    %311 = vmatpush.xpose.msra.mxu0 0.0
    %312 = vmatpush.xpose.msra.mxu0 0.0
    %313 = vmatpush.xpose.msra.mxu0 0.0
    %314 = vmatpush.xpose.msra.mxu0 0.0
    %315 = vmatpush.xpose.msra.mxu0 0.0
    %316 = vmatpush.xpose.msra.mxu0 0.0
    %317 = vmatpush.xpose.msra.mxu0 0.0
    %318 = vmatpush.xpose.msra.mxu0 0.0
    %319 = vmatpush.xpose.msra.mxu0 %v302
    %320 = vmatmul.f32.gmra.mxu0 %v300
    %v321 = vpop.f32.mrf.mxu0
    %v322 = vadd.f32 0.0, %v321
    %323 = vdwg.mxu0
    %v324 = vmul.f32 %v244, 0.25
    %v325 = vmul.f32 %v270, 0.25
    %v326 = vmul.f32 %v296, 0.25
    %v327 = vmul.f32 %v322, 0.25
    %v328 = vperm.slane %v165, 0
    %v329 = vperm.slane %v167, 0
    %v330 = vperm.slane %v168, 0
    %v331 = vperm.slane %v169, 0
    %v336 = vadd.f32 %v324, %v328
    %v337 = vadd.f32 %v325, %v329
    %v338 = vadd.f32 %v326, %v330
    %v339 = vadd.f32 %v327, %v331
    %vm340 = vcmask 64512
    %v341 = vsel %vm340, %v336, -inf
    %342 = vmax.xlane.f32.xlu0 %v341
    %v343 = vpop.xlane.xlu0 %342
    %v344 = vsel %vm340, %v337, -inf
    %345 = vmax.xlane.f32.xlu0 %v344
    %v346 = vpop.xlane.xlu0 %345
    %v347 = vsel %vm340, %v338, -inf
    %348 = vmax.xlane.f32.xlu0 %v347
    %v349 = vpop.xlane.xlu0 %348
    %v350 = vsel %vm340, %v339, -inf
    %351 = vmax.xlane.f32.xlu0 %v350
    %v352 = vpop.xlane.xlu0 %351
    %v353 = vsub.f32 %v336, %v343
    %v354 = vsub.f32 %v337, %v346
    %v355 = vsub.f32 %v338, %v349
    %v356 = vsub.f32 %v339, %v352
    %v357 = vmul.f32 %v353, 1.442695
    %v358 = vpow.pop %v357
    %v359 = vmul.f32 %v354, 1.442695
    %v360 = vpow.pop %v359
    %v361 = vmul.f32 %v355, 1.442695
    %v362 = vpow.pop %v361
    %v363 = vmul.f32 %v356, 1.442695
    %v364 = vpow.pop %v363
    %v365 = vsel %vm340, %v358, 0.0
    %366 = vadd.xlane.f32.xlu0 %v365
    %v367 = vpop.xlane.xlu0 %366
    %v368 = vsel %vm340, %v360, 0.0
    %369 = vadd.xlane.f32.xlu0 %v368
    %v370 = vpop.xlane.xlu0 %369
    %v371 = vsel %vm340, %v362, 0.0
    %372 = vadd.xlane.f32.xlu0 %v371
    %v373 = vpop.xlane.xlu0 %372
    %v374 = vsel %vm340, %v364, 0.0
    %375 = vadd.xlane.f32.xlu0 %v374
    %v376 = vpop.xlane.xlu0 %375
    %v377 = vrcp.pop %v367
    %v378 = vrcp.pop %v370
    %v379 = vrcp.pop %v373
    %v380 = vrcp.pop %v376
    %v381 = vmul.f32 %v358, %v377
    %v382 = vmul.f32 %v360, %v378
    %v383 = vmul.f32 %v362, %v379
    %v384 = vmul.f32 %v364, %v380
    %385 = vrot.lane.b32.xlu0 %v209, 64
    %v386 = vpop.permute.xlu0 %385
    %v389 = vsel %vm340, %v381, 0
    %391 = vmatpush.msra.mxu0 0.0
    %392 = vmatpush.msra.mxu0 0.0
    %393 = vmatpush.msra.mxu0 0.0
    %394 = vmatpush.msra.mxu0 0.0
    %395 = vmatpush.msra.mxu0 0.0
    %396 = vmatpush.msra.mxu0 0.0
    %397 = vmatpush.msra.mxu0 0.0
    %398 = vmatpush.msra.mxu0 0.0
    %399 = vmatpush.msra.mxu0 0.0
    %400 = vmatpush.msra.mxu0 0.0
    %401 = vmatpush.msra.mxu0 0.0
    %402 = vmatpush.msra.mxu0 0.0
    %403 = vmatpush.msra.mxu0 0.0
    %404 = vmatpush.msra.mxu0 0.0
    %405 = vmatpush.msra.mxu0 0.0
    %406 = vmatpush.msra.mxu0 %v386
    %407 = vmatmul.f32.gmra.mxu0 %v389
    %v408 = vpop.f32.mrf.mxu0
    %v409 = vadd.f32 0.0, %v408
    %410 = vdwg.mxu0
    %411 = vrot.lane.b32.xlu0 %v211, 64
    %v412 = vpop.permute.xlu0 %411
    %v415 = vsel %vm340, %v382, 0
    %417 = vmatpush.msra.mxu0 0.0
    %418 = vmatpush.msra.mxu0 0.0
    %419 = vmatpush.msra.mxu0 0.0
    %420 = vmatpush.msra.mxu0 0.0
    %421 = vmatpush.msra.mxu0 0.0
    %422 = vmatpush.msra.mxu0 0.0
    %423 = vmatpush.msra.mxu0 0.0
    %424 = vmatpush.msra.mxu0 0.0
    %425 = vmatpush.msra.mxu0 0.0
    %426 = vmatpush.msra.mxu0 0.0
    %427 = vmatpush.msra.mxu0 0.0
    %428 = vmatpush.msra.mxu0 0.0
    %429 = vmatpush.msra.mxu0 0.0
    %430 = vmatpush.msra.mxu0 0.0
    %431 = vmatpush.msra.mxu0 0.0
    %432 = vmatpush.msra.mxu0 %v412
    %433 = vmatmul.f32.gmra.mxu0 %v415
    %v434 = vpop.f32.mrf.mxu0
    %v435 = vadd.f32 0.0, %v434
    %436 = vdwg.mxu0
    %437 = vrot.lane.b32.xlu0 %v216, 64
    %v438 = vpop.permute.xlu0 %437
    %v441 = vsel %vm340, %v383, 0
    %443 = vmatpush.msra.mxu0 0.0
    %444 = vmatpush.msra.mxu0 0.0
    %445 = vmatpush.msra.mxu0 0.0
    %446 = vmatpush.msra.mxu0 0.0
    %447 = vmatpush.msra.mxu0 0.0
    %448 = vmatpush.msra.mxu0 0.0
    %449 = vmatpush.msra.mxu0 0.0
    %450 = vmatpush.msra.mxu0 0.0
    %451 = vmatpush.msra.mxu0 0.0
    %452 = vmatpush.msra.mxu0 0.0
    %453 = vmatpush.msra.mxu0 0.0
    %454 = vmatpush.msra.mxu0 0.0
    %455 = vmatpush.msra.mxu0 0.0
    %456 = vmatpush.msra.mxu0 0.0
    %457 = vmatpush.msra.mxu0 0.0
    %458 = vmatpush.msra.mxu0 %v438
    %459 = vmatmul.f32.gmra.mxu0 %v441
    %v460 = vpop.f32.mrf.mxu0
    %v461 = vadd.f32 0.0, %v460
    %462 = vdwg.mxu0
    %463 = vrot.lane.b32.xlu0 %v218, 64
    %v464 = vpop.permute.xlu0 %463
    %v467 = vsel %vm340, %v384, 0
    %469 = vmatpush.msra.mxu0 0.0
    %470 = vmatpush.msra.mxu0 0.0
    %471 = vmatpush.msra.mxu0 0.0
    %472 = vmatpush.msra.mxu0 0.0
    %473 = vmatpush.msra.mxu0 0.0
    %474 = vmatpush.msra.mxu0 0.0
    %475 = vmatpush.msra.mxu0 0.0
    %476 = vmatpush.msra.mxu0 0.0
    %477 = vmatpush.msra.mxu0 0.0
    %478 = vmatpush.msra.mxu0 0.0
    %479 = vmatpush.msra.mxu0 0.0
    %480 = vmatpush.msra.mxu0 0.0
    %481 = vmatpush.msra.mxu0 0.0
    %482 = vmatpush.msra.mxu0 0.0
    %483 = vmatpush.msra.mxu0 0.0
    %484 = vmatpush.msra.mxu0 %v464
    %485 = vmatmul.f32.gmra.mxu0 %v467
    %v486 = vpop.f32.mrf.mxu0
    %v487 = vadd.f32 0.0, %v486
    %488 = vdwg.mxu0
    %491 = vrot.lane.b32.xlu0 %v461, 16
    %v492 = vpop.permute.xlu0 %491
    %493 = vrot.lane.b32.xlu0 %v487, 16
    %v494 = vpop.permute.xlu0 %493
    %v497 = vsel %vm221, %v409, %v492
    %v498 = vsel %vm221, %v435, %v494
    %v499 = vpack.c.bf16 %v498, %v497
    %v500 = vperm.slane %v102, 3
    %501 = vrot.lane.b32.xlu0 %v192, 32
    %v502 = vpop.permute.xlu0 %501
    %503 = vrot.lane.b32.xlu0 %v193, 32
    %v504 = vpop.permute.xlu0 %503
    %v508 = vsel %vm107, %v499, 0
    %510 = vmatpush.bf16.msra.mxu0 0
    %511 = vmatpush.bf16.msra.mxu0 0
    %512 = vmatpush.bf16.msra.mxu0 0
    %513 = vmatpush.bf16.msra.mxu0 0
    %514 = vmatpush.bf16.msra.mxu0 0
    %515 = vmatpush.bf16.msra.mxu0 0
    %516 = vmatpush.bf16.msra.mxu0 %v504
    %517 = vmatpush.bf16.msra.mxu0 %v502
    %518 = vmatmul.bf16.gmra.mxu0 %v508
    %v519 = vpop.f32.mrf.mxu0
    %v520 = vadd.f32 %v500, %v519
    %v521 = vpop.f32.mrf.mxu0
    %v522 = vadd.f32 %v500, %v521
    %523 = vdwg.mxu0
    %v524 = vadd.f32 %v163, %v520
    %v525 = vadd.f32 %v164, %v522
    %v526 = vsel %vm107, %v524, 0.0
    %527 = vadd.xlane.f32.xlu0 %v526
    %v528 = vpop.xlane.xlu0 %527
    %v529 = vsel %vm107, %v525, 0.0
    %530 = vadd.xlane.f32.xlu0 %v529
    %v531 = vpop.xlane.xlu0 %530
    %v532 = vmul.f32 %v528, %v120
    %v533 = vmul.f32 %v531, %v120
    %v534 = vsub.f32 %v524, %v532
    %v535 = vsub.f32 %v525, %v533
    %v536 = vmul.f32 %v534, %v534
    %v537 = vmul.f32 %v535, %v535
    %v538 = vsel %vm107, %v536, 0.0
    %539 = vadd.xlane.f32.xlu0 %v538
    %v540 = vpop.xlane.xlu0 %539
    %v541 = vsel %vm107, %v537, 0.0
    %542 = vadd.xlane.f32.xlu0 %v541
    %v543 = vpop.xlane.xlu0 %542
    %v544 = vmul.f32 %v540, %v120
    %v545 = vmul.f32 %v543, %v120
    %v546 = vadd.f32 %v544, 1e-12
    %v547 = vadd.f32 %v545, 1e-12
    %v548 = vrsqrt.pop %v546
    %v549 = vmul.f32 %v548, %v546
    %v550 = vmul.f32 %v549, %v548
    %v551 = vmul.f32 0.5, %v550
    %v552 = vsub.f32 1.5, %v551
    %v553 = vmul.f32 %v548, %v552
    %vm554 = vweird.f32 %v546
    %vm555 = vweird.f32 %v548
    %vm556 = vmor %vm554, %vm555
    %v557 = vsel %vm556, %v548, %v553
    %v558 = vrsqrt.pop %v547
    %v559 = vmul.f32 %v558, %v547
    %v560 = vmul.f32 %v559, %v558
    %v561 = vmul.f32 0.5, %v560
    %v562 = vsub.f32 1.5, %v561
    %v563 = vmul.f32 %v558, %v562
    %vm564 = vweird.f32 %v547
    %vm565 = vweird.f32 %v558
    %vm566 = vmor %vm564, %vm565
    %v567 = vsel %vm566, %v558, %v563
    %v568 = vmul.f32 %v534, %v557
    %v569 = vmul.f32 %v535, %v567
    %v570 = vperm.slane %v102, 6
    %v571 = vmul.f32 %v568, %v570
    %v572 = vmul.f32 %v569, %v570
    %v573 = vperm.slane %v102, 7
    %v574 = vadd.f32 %v571, %v573
    %v575 = vadd.f32 %v572, %v573
    %v576 = vpack.c.bf16 %v575, %v574
    %v577 = vperm.slane %v102, 4
    %v578 = vunpack.c.h.b16 %v170
    %v579 = vunpack.c.h.b16 %v171
    %v580 = vunpack.c.h.b16 %v172
    %v581 = vunpack.c.h.b16 %v173
    %v582 = vpack.c.b16 %v579, %v578
    %v583 = vpack.c.b16 %v581, %v580
    %v587 = vsel %vm107, %v576, 0
    %589 = vmatpush.bf16.msra.mxu0 0
    %590 = vmatpush.bf16.msra.mxu0 0
    %591 = vmatpush.bf16.msra.mxu0 0
    %592 = vmatpush.bf16.msra.mxu0 0
    %593 = vmatpush.bf16.msra.mxu0 0
    %594 = vmatpush.bf16.msra.mxu0 0
    %595 = vmatpush.bf16.msra.mxu0 %v583
    %596 = vmatpush.bf16.msra.mxu0 %v582
    %597 = vmatmul.bf16.gmra.mxu0 %v587
    %v598 = vpop.f32.mrf.mxu0
    %v599 = vadd.f32 %v577, %v598
    %v600 = vpop.f32.mrf.mxu0
    %v601 = vadd.f32 %v577, %v600
    %602 = vdwg.mxu0
    %v603 = vmul.f32 %v599, 0.5
    %v604 = vmul.f32 %v601, 0.5
    %v605 = vmul.f32 %v599, 0.044715
    %v606 = vmul.f32 %v601, 0.044715
    %v607 = vmul.f32 %v605, %v599
    %v608 = vmul.f32 %v606, %v601
    %v609 = vmul.f32 %v607, %v599
    %v610 = vmul.f32 %v608, %v601
    %v611 = vadd.f32 %v599, %v609
    %v612 = vadd.f32 %v601, %v610
    %v613 = vmul.f32 %v611, 0.7978846
    %v614 = vmul.f32 %v612, 0.7978846
    %v615 = vtanh.pop %v613
    %v616 = vtanh.pop %v614
    %v617 = vadd.f32 %v615, 1.0
    %v618 = vadd.f32 %v616, 1.0
    %v619 = vmul.f32 %v603, %v617
    %v620 = vmul.f32 %v604, %v618
    %v621 = vpack.c.bf16 %v620, %v619
    %v622 = vperm.slane %v102, 5
    %v631 = vunpack.c.l.b16 %v174
    %v632 = vunpack.c.l.b16 %v175
    %v633 = vunpack.c.l.b16 %v176
    %v634 = vunpack.c.l.b16 %v177
    %v635 = vunpack.c.l.b16 %v178
    %v636 = vunpack.c.l.b16 %v179
    %v637 = vunpack.c.l.b16 %v180
    %v638 = vunpack.c.l.b16 %v181
    %v639 = vpack.c.b16 %v632, %v631
    %v640 = vpack.c.b16 %v634, %v633
    %v641 = vpack.c.b16 %v636, %v635
    %v642 = vpack.c.b16 %v638, %v637
    %vm647 = vcmask 523264
    %v649 = vsel %vm647, %v621, 0
    %651 = vmatpush.bf16.msra.mxu0 0
    %652 = vmatpush.bf16.msra.mxu0 0
    %653 = vmatpush.bf16.msra.mxu0 0
    %654 = vmatpush.bf16.msra.mxu0 0
    %655 = vmatpush.bf16.msra.mxu0 %v642
    %656 = vmatpush.bf16.msra.mxu0 %v641
    %657 = vmatpush.bf16.msra.mxu0 %v640
    %658 = vmatpush.bf16.msra.mxu0 %v639
    %659 = vmatmul.bf16.gmra.mxu0 %v649
    %v660 = vpop.f32.mrf.mxu0
    %v661 = vadd.f32 %v622, %v660
    %v662 = vpop.f32.mrf.mxu0
    %v663 = vadd.f32 %v622, %v662
    %664 = vdwg.mxu0
    %v665 = vadd.f32 %v574, %v661
    %v666 = vadd.f32 %v575, %v663
    %v667 = vsel %vm107, %v665, 0.0
    %668 = vadd.xlane.f32.xlu0 %v667
    %v669 = vpop.xlane.xlu0 %668
    %v670 = vsel %vm107, %v666, 0.0
    %671 = vadd.xlane.f32.xlu0 %v670
    %v672 = vpop.xlane.xlu0 %671
    %v673 = vmul.f32 %v669, %v120
    %v674 = vmul.f32 %v672, %v120
    %v675 = vsub.f32 %v665, %v673
    %v676 = vsub.f32 %v666, %v674
    %v677 = vmul.f32 %v675, %v675
    %v678 = vmul.f32 %v676, %v676
    %v679 = vsel %vm107, %v677, 0.0
    %680 = vadd.xlane.f32.xlu0 %v679
    %v681 = vpop.xlane.xlu0 %680
    %v682 = vsel %vm107, %v678, 0.0
    %683 = vadd.xlane.f32.xlu0 %v682
    %v684 = vpop.xlane.xlu0 %683
    %v685 = vmul.f32 %v681, %v120
    %v686 = vmul.f32 %v684, %v120
    %v687 = vadd.f32 %v685, 1e-12
    %v688 = vadd.f32 %v686, 1e-12
    %v689 = vrsqrt.pop %v687
    %v690 = vmul.f32 %v689, %v687
    %v691 = vmul.f32 %v690, %v689
    %v692 = vmul.f32 0.5, %v691
    %v693 = vsub.f32 1.5, %v692
    %v694 = vmul.f32 %v689, %v693
    %vm695 = vweird.f32 %v687
    %vm696 = vweird.f32 %v689
    %vm697 = vmor %vm695, %vm696
    %v698 = vsel %vm697, %v689, %v694
    %v699 = vrsqrt.pop %v688
    %v700 = vmul.f32 %v699, %v688
    %v701 = vmul.f32 %v700, %v699
    %v702 = vmul.f32 0.5, %v701
    %v703 = vsub.f32 1.5, %v702
    %v704 = vmul.f32 %v699, %v703
    %vm705 = vweird.f32 %v688
    %vm706 = vweird.f32 %v699
    %vm707 = vmor %vm705, %vm706
    %v708 = vsel %vm707, %v699, %v704
    %v709 = vmul.f32 %v675, %v698
    %v710 = vmul.f32 %v676, %v708
    %v711 = vperm.slane %v103, 0
    %v712 = vmul.f32 %v709, %v711
    %v713 = vmul.f32 %v710, %v711
    %v714 = vperm.slane %v103, 1
    %v715 = vadd.f32 %v712, %v714
    %v716 = vadd.f32 %v713, %v714
    %s717 = scalar_lea.vmem [#allocation6], 32
    %v718 = vld [vmem:[%s717] sm:$0xff]
    %v719 = vld [vmem:[%s717 + $0x8] sm:$0xff]
    %v720 = vld [vmem:[%s717 + $0x10] sm:$0xff]
    %v721 = vld [vmem:[%s717 + $0x18] sm:$0xff]
    %s722 = scalar_lea.vmem %s4, 32
    %v723 = vld [vmem:[%s722] sm:$0xf]
    %v724 = vld [vmem:[%s722 + $0x4] sm:$0xf]
    %v725 = vld [vmem:[%s722 + $0x8] sm:$0xf]
    %v726 = vld [vmem:[%s722 + $0xc] sm:$0xf]
    %v727 = vld [vmem:[%s722 + $0x10] sm:$0xf]
    %v728 = vld [vmem:[%s722 + $0x14] sm:$0xf]
    %v729 = vld [vmem:[%s722 + $0x18] sm:$0xf]
    %v730 = vld [vmem:[%s722 + $0x1c] sm:$0xf]
    %v731 = vpack.c.bf16 %v716, %v715
    %v732 = vperm.slane %v103, 2
    %v737 = vunpack.c.l.b16 %v718
    %v738 = vunpack.c.l.b16 %v719
    %v739 = vunpack.c.l.b16 %v720
    %v740 = vunpack.c.l.b16 %v721
    %v741 = vpack.c.b16 %v738, %v737
    %v742 = vpack.c.b16 %v740, %v739
    %v746 = vsel %vm107, %v731, 0
    %748 = vmatpush.bf16.msra.mxu0 0
    %749 = vmatpush.bf16.msra.mxu0 0
    %750 = vmatpush.bf16.msra.mxu0 0
    %751 = vmatpush.bf16.msra.mxu0 0
    %752 = vmatpush.bf16.msra.mxu0 0
    %753 = vmatpush.bf16.msra.mxu0 0
    %754 = vmatpush.bf16.msra.mxu0 %v742
    %755 = vmatpush.bf16.msra.mxu0 %v741
    %756 = vmatmul.bf16.gmra.mxu0 %v746
    %v757 = vpop.f32.mrf.mxu0
    %v758 = vadd.f32 %v732, %v757
    %v759 = vpop.f32.mrf.mxu0
    %v760 = vadd.f32 %v732, %v759
    %761 = vdwg.mxu0
    %764 = vrot.lane.b32.xlu0 %v758, 112
    %v765 = vpop.permute.xlu0 %764
    %766 = vrot.lane.b32.xlu0 %v760, 112
    %v767 = vpop.permute.xlu0 %766
    %768 = vrot.lane.b32.xlu0 %v758, 96
    %v769 = vpop.permute.xlu0 %768
    %v770 = vsel %vm221, %v758, 0
    %v772 = vsel %vm221, %v769, 0
    %774 = vmatpush.xpose.msra.mxu0 0.0
    %775 = vmatpush.xpose.msra.mxu0 0.0
    %776 = vmatpush.xpose.msra.mxu0 0.0
    %777 = vmatpush.xpose.msra.mxu0 0.0
    %778 = vmatpush.xpose.msra.mxu0 0.0
    %779 = vmatpush.xpose.msra.mxu0 0.0
    %780 = vmatpush.xpose.msra.mxu0 0.0
    %781 = vmatpush.xpose.msra.mxu0 0.0
    %782 = vmatpush.xpose.msra.mxu0 0.0
    %783 = vmatpush.xpose.msra.mxu0 0.0
    %784 = vmatpush.xpose.msra.mxu0 0.0
    %785 = vmatpush.xpose.msra.mxu0 0.0
    %786 = vmatpush.xpose.msra.mxu0 0.0
    %787 = vmatpush.xpose.msra.mxu0 0.0
    %788 = vmatpush.xpose.msra.mxu0 0.0
    %789 = vmatpush.xpose.msra.mxu0 %v772
    %790 = vmatmul.f32.gmra.mxu0 %v770
    %v791 = vpop.f32.mrf.mxu0
    %v792 = vadd.f32 0.0, %v791
    %793 = vdwg.mxu0
    %794 = vrot.lane.b32.xlu0 %v760, 96
    %v795 = vpop.permute.xlu0 %794
    %v796 = vsel %vm221, %v760, 0
    %v798 = vsel %vm221, %v795, 0
    %800 = vmatpush.xpose.msra.mxu0 0.0
    %801 = vmatpush.xpose.msra.mxu0 0.0
    %802 = vmatpush.xpose.msra.mxu0 0.0
    %803 = vmatpush.xpose.msra.mxu0 0.0
    %804 = vmatpush.xpose.msra.mxu0 0.0
    %805 = vmatpush.xpose.msra.mxu0 0.0
    %806 = vmatpush.xpose.msra.mxu0 0.0
    %807 = vmatpush.xpose.msra.mxu0 0.0
    %808 = vmatpush.xpose.msra.mxu0 0.0
    %809 = vmatpush.xpose.msra.mxu0 0.0
    %810 = vmatpush.xpose.msra.mxu0 0.0
    %811 = vmatpush.xpose.msra.mxu0 0.0
    %812 = vmatpush.xpose.msra.mxu0 0.0
    %813 = vmatpush.xpose.msra.mxu0 0.0
    %814 = vmatpush.xpose.msra.mxu0 0.0
    %815 = vmatpush.xpose.msra.mxu0 %v798
    %816 = vmatmul.f32.gmra.mxu0 %v796
    %v817 = vpop.f32.mrf.mxu0
    %v818 = vadd.f32 0.0, %v817
    %819 = vdwg.mxu0
    %820 = vrot.lane.b32.xlu0 %v765, 96
    %v821 = vpop.permute.xlu0 %820
    %v822 = vsel %vm221, %v765, 0
    %v824 = vsel %vm221, %v821, 0
    %826 = vmatpush.xpose.msra.mxu0 0.0
    %827 = vmatpush.xpose.msra.mxu0 0.0
    %828 = vmatpush.xpose.msra.mxu0 0.0
    %829 = vmatpush.xpose.msra.mxu0 0.0
    %830 = vmatpush.xpose.msra.mxu0 0.0
    %831 = vmatpush.xpose.msra.mxu0 0.0
    %832 = vmatpush.xpose.msra.mxu0 0.0
    %833 = vmatpush.xpose.msra.mxu0 0.0
    %834 = vmatpush.xpose.msra.mxu0 0.0
    %835 = vmatpush.xpose.msra.mxu0 0.0
    %836 = vmatpush.xpose.msra.mxu0 0.0
    %837 = vmatpush.xpose.msra.mxu0 0.0
    %838 = vmatpush.xpose.msra.mxu0 0.0
    %839 = vmatpush.xpose.msra.mxu0 0.0
    %840 = vmatpush.xpose.msra.mxu0 0.0
    %841 = vmatpush.xpose.msra.mxu0 %v824
    %842 = vmatmul.f32.gmra.mxu0 %v822
    %v843 = vpop.f32.mrf.mxu0
    %v844 = vadd.f32 0.0, %v843
    %845 = vdwg.mxu0
    %846 = vrot.lane.b32.xlu0 %v767, 96
    %v847 = vpop.permute.xlu0 %846
    %v848 = vsel %vm221, %v767, 0
    %v850 = vsel %vm221, %v847, 0
    %852 = vmatpush.xpose.msra.mxu0 0.0
    %853 = vmatpush.xpose.msra.mxu0 0.0
    %854 = vmatpush.xpose.msra.mxu0 0.0
    %855 = vmatpush.xpose.msra.mxu0 0.0
    %856 = vmatpush.xpose.msra.mxu0 0.0
    %857 = vmatpush.xpose.msra.mxu0 0.0
    %858 = vmatpush.xpose.msra.mxu0 0.0
    %859 = vmatpush.xpose.msra.mxu0 0.0
    %860 = vmatpush.xpose.msra.mxu0 0.0
    %861 = vmatpush.xpose.msra.mxu0 0.0
    %862 = vmatpush.xpose.msra.mxu0 0.0
    %863 = vmatpush.xpose.msra.mxu0 0.0
    %864 = vmatpush.xpose.msra.mxu0 0.0
    %865 = vmatpush.xpose.msra.mxu0 0.0
    %866 = vmatpush.xpose.msra.mxu0 0.0
    %867 = vmatpush.xpose.msra.mxu0 %v850
    %868 = vmatmul.f32.gmra.mxu0 %v848
    %v869 = vpop.f32.mrf.mxu0
    %v870 = vadd.f32 0.0, %v869
    %871 = vdwg.mxu0
    %v872 = vmul.f32 %v792, 0.25
    %v873 = vmul.f32 %v818, 0.25
    %v874 = vmul.f32 %v844, 0.25
    %v875 = vmul.f32 %v870, 0.25
    %v876 = vadd.f32 %v872, %v328
    %v877 = vadd.f32 %v873, %v329
    %v878 = vadd.f32 %v874, %v330
    %v879 = vadd.f32 %v875, %v331
    %v880 = vsel %vm340, %v876, -inf
    %881 = vmax.xlane.f32.xlu0 %v880
    %v882 = vpop.xlane.xlu0 %881
    %v883 = vsel %vm340, %v877, -inf
    %884 = vmax.xlane.f32.xlu0 %v883
    %v885 = vpop.xlane.xlu0 %884
    %v886 = vsel %vm340, %v878, -inf
    %887 = vmax.xlane.f32.xlu0 %v886
    %v888 = vpop.xlane.xlu0 %887
    %v889 = vsel %vm340, %v879, -inf
    %890 = vmax.xlane.f32.xlu0 %v889
    %v891 = vpop.xlane.xlu0 %890
    %v892 = vsub.f32 %v876, %v882
    %v893 = vsub.f32 %v877, %v885
    %v894 = vsub.f32 %v878, %v888
    %v895 = vsub.f32 %v879, %v891
    %v896 = vmul.f32 %v892, 1.442695
    %v897 = vpow.pop %v896
    %v898 = vmul.f32 %v893, 1.442695
    %v899 = vpow.pop %v898
    %v900 = vmul.f32 %v894, 1.442695
    %v901 = vpow.pop %v900
    %v902 = vmul.f32 %v895, 1.442695
    %v903 = vpow.pop %v902
    %v904 = vsel %vm340, %v897, 0.0
    %905 = vadd.xlane.f32.xlu0 %v904
    %v906 = vpop.xlane.xlu0 %905
    %v907 = vsel %vm340, %v899, 0.0
    %908 = vadd.xlane.f32.xlu0 %v907
    %v909 = vpop.xlane.xlu0 %908
    %v910 = vsel %vm340, %v901, 0.0
    %911 = vadd.xlane.f32.xlu0 %v910
    %v912 = vpop.xlane.xlu0 %911
    %v913 = vsel %vm340, %v903, 0.0
    %914 = vadd.xlane.f32.xlu0 %v913
    %v915 = vpop.xlane.xlu0 %914
    %v916 = vrcp.pop %v906
    %v917 = vrcp.pop %v909
    %v918 = vrcp.pop %v912
    %v919 = vrcp.pop %v915
    %v920 = vmul.f32 %v897, %v916
    %v921 = vmul.f32 %v899, %v917
    %v922 = vmul.f32 %v901, %v918
    %v923 = vmul.f32 %v903, %v919
    %924 = vrot.lane.b32.xlu0 %v758, 64
    %v925 = vpop.permute.xlu0 %924
    %v928 = vsel %vm340, %v920, 0
    %930 = vmatpush.msra.mxu0 0.0
    %931 = vmatpush.msra.mxu0 0.0
    %932 = vmatpush.msra.mxu0 0.0
    %933 = vmatpush.msra.mxu0 0.0
    %934 = vmatpush.msra.mxu0 0.0
    %935 = vmatpush.msra.mxu0 0.0
    %936 = vmatpush.msra.mxu0 0.0
    %937 = vmatpush.msra.mxu0 0.0
    %938 = vmatpush.msra.mxu0 0.0
    %939 = vmatpush.msra.mxu0 0.0
    %940 = vmatpush.msra.mxu0 0.0
    %941 = vmatpush.msra.mxu0 0.0
    %942 = vmatpush.msra.mxu0 0.0
    %943 = vmatpush.msra.mxu0 0.0
    %944 = vmatpush.msra.mxu0 0.0
    %945 = vmatpush.msra.mxu0 %v925
    %946 = vmatmul.f32.gmra.mxu0 %v928
    %v947 = vpop.f32.mrf.mxu0
    %v948 = vadd.f32 0.0, %v947
    %949 = vdwg.mxu0
    %950 = vrot.lane.b32.xlu0 %v760, 64
    %v951 = vpop.permute.xlu0 %950
    %v954 = vsel %vm340, %v921, 0
    %956 = vmatpush.msra.mxu0 0.0
    %957 = vmatpush.msra.mxu0 0.0
    %958 = vmatpush.msra.mxu0 0.0
    %959 = vmatpush.msra.mxu0 0.0
    %960 = vmatpush.msra.mxu0 0.0
    %961 = vmatpush.msra.mxu0 0.0
    %962 = vmatpush.msra.mxu0 0.0
    %963 = vmatpush.msra.mxu0 0.0
    %964 = vmatpush.msra.mxu0 0.0
    %965 = vmatpush.msra.mxu0 0.0
    %966 = vmatpush.msra.mxu0 0.0
    %967 = vmatpush.msra.mxu0 0.0
    %968 = vmatpush.msra.mxu0 0.0
    %969 = vmatpush.msra.mxu0 0.0
    %970 = vmatpush.msra.mxu0 0.0
    %971 = vmatpush.msra.mxu0 %v951
    %972 = vmatmul.f32.gmra.mxu0 %v954
    %v973 = vpop.f32.mrf.mxu0
    %v974 = vadd.f32 0.0, %v973
    %975 = vdwg.mxu0
    %976 = vrot.lane.b32.xlu0 %v765, 64
    %v977 = vpop.permute.xlu0 %976
    %v980 = vsel %vm340, %v922, 0
    %982 = vmatpush.msra.mxu0 0.0
    %983 = vmatpush.msra.mxu0 0.0
    %984 = vmatpush.msra.mxu0 0.0
    %985 = vmatpush.msra.mxu0 0.0
    %986 = vmatpush.msra.mxu0 0.0
    %987 = vmatpush.msra.mxu0 0.0
    %988 = vmatpush.msra.mxu0 0.0
    %989 = vmatpush.msra.mxu0 0.0
    %990 = vmatpush.msra.mxu0 0.0
    %991 = vmatpush.msra.mxu0 0.0
    %992 = vmatpush.msra.mxu0 0.0
    %993 = vmatpush.msra.mxu0 0.0
    %994 = vmatpush.msra.mxu0 0.0
    %995 = vmatpush.msra.mxu0 0.0
    %996 = vmatpush.msra.mxu0 0.0
    %997 = vmatpush.msra.mxu0 %v977
    %998 = vmatmul.f32.gmra.mxu0 %v980
    %v999 = vpop.f32.mrf.mxu0
    %v1000 = vadd.f32 0.0, %v999
    %1001 = vdwg.mxu0
    %1002 = vrot.lane.b32.xlu0 %v767, 64
    %v1003 = vpop.permute.xlu0 %1002
    %v1006 = vsel %vm340, %v923, 0
    %1008 = vmatpush.msra.mxu0 0.0
    %1009 = vmatpush.msra.mxu0 0.0
    %1010 = vmatpush.msra.mxu0 0.0
    %1011 = vmatpush.msra.mxu0 0.0
    %1012 = vmatpush.msra.mxu0 0.0
    %1013 = vmatpush.msra.mxu0 0.0
    %1014 = vmatpush.msra.mxu0 0.0
    %1015 = vmatpush.msra.mxu0 0.0
    %1016 = vmatpush.msra.mxu0 0.0
    %1017 = vmatpush.msra.mxu0 0.0
    %1018 = vmatpush.msra.mxu0 0.0
    %1019 = vmatpush.msra.mxu0 0.0
    %1020 = vmatpush.msra.mxu0 0.0
    %1021 = vmatpush.msra.mxu0 0.0
    %1022 = vmatpush.msra.mxu0 0.0
    %1023 = vmatpush.msra.mxu0 %v1003
    %1024 = vmatmul.f32.gmra.mxu0 %v1006
    %v1025 = vpop.f32.mrf.mxu0
    %v1026 = vadd.f32 0.0, %v1025
    %1027 = vdwg.mxu0
    %1030 = vrot.lane.b32.xlu0 %v1000, 16
    %v1031 = vpop.permute.xlu0 %1030
    %1032 = vrot.lane.b32.xlu0 %v1026, 16
    %v1033 = vpop.permute.xlu0 %1032
    %v1036 = vsel %vm221, %v948, %v1031
    %v1037 = vsel %vm221, %v974, %v1033
    %v1038 = vpack.c.bf16 %v1037, %v1036
    %v1039 = vperm.slane %v103, 3
    %1040 = vrot.lane.b32.xlu0 %v741, 32
    %v1041 = vpop.permute.xlu0 %1040
    %1042 = vrot.lane.b32.xlu0 %v742, 32
    %v1043 = vpop.permute.xlu0 %1042
    %v1047 = vsel %vm107, %v1038, 0
    %1049 = vmatpush.bf16.msra.mxu0 0
    %1050 = vmatpush.bf16.msra.mxu0 0
    %1051 = vmatpush.bf16.msra.mxu0 0
    %1052 = vmatpush.bf16.msra.mxu0 0
    %1053 = vmatpush.bf16.msra.mxu0 0
    %1054 = vmatpush.bf16.msra.mxu0 0
    %1055 = vmatpush.bf16.msra.mxu0 %v1043
    %1056 = vmatpush.bf16.msra.mxu0 %v1041
    %1057 = vmatmul.bf16.gmra.mxu0 %v1047
    %v1058 = vpop.f32.mrf.mxu0
    %v1059 = vadd.f32 %v1039, %v1058
    %v1060 = vpop.f32.mrf.mxu0
    %v1061 = vadd.f32 %v1039, %v1060
    %1062 = vdwg.mxu0
    %v1063 = vadd.f32 %v715, %v1059
    %v1064 = vadd.f32 %v716, %v1061
    %v1065 = vsel %vm107, %v1063, 0.0
    %1066 = vadd.xlane.f32.xlu0 %v1065
    %v1067 = vpop.xlane.xlu0 %1066
    %v1068 = vsel %vm107, %v1064, 0.0
    %1069 = vadd.xlane.f32.xlu0 %v1068
    %v1070 = vpop.xlane.xlu0 %1069
    %v1071 = vmul.f32 %v1067, %v120
    %v1072 = vmul.f32 %v1070, %v120
    %v1073 = vsub.f32 %v1063, %v1071
    %v1074 = vsub.f32 %v1064, %v1072
    %v1075 = vmul.f32 %v1073, %v1073
    %v1076 = vmul.f32 %v1074, %v1074
    %v1077 = vsel %vm107, %v1075, 0.0
    %1078 = vadd.xlane.f32.xlu0 %v1077
    %v1079 = vpop.xlane.xlu0 %1078
    %v1080 = vsel %vm107, %v1076, 0.0
    %1081 = vadd.xlane.f32.xlu0 %v1080
    %v1082 = vpop.xlane.xlu0 %1081
    %v1083 = vmul.f32 %v1079, %v120
    %v1084 = vmul.f32 %v1082, %v120
    %v1085 = vadd.f32 %v1083, 1e-12
    %v1086 = vadd.f32 %v1084, 1e-12
    %v1087 = vrsqrt.pop %v1085
    %v1088 = vmul.f32 %v1087, %v1085
    %v1089 = vmul.f32 %v1088, %v1087
    %v1090 = vmul.f32 0.5, %v1089
    %v1091 = vsub.f32 1.5, %v1090
    %v1092 = vmul.f32 %v1087, %v1091
    %vm1093 = vweird.f32 %v1085
    %vm1094 = vweird.f32 %v1087
    %vm1095 = vmor %vm1093, %vm1094
    %v1096 = vsel %vm1095, %v1087, %v1092
    %v1097 = vrsqrt.pop %v1086
    %v1098 = vmul.f32 %v1097, %v1086
    %v1099 = vmul.f32 %v1098, %v1097
    %v1100 = vmul.f32 0.5, %v1099
    %v1101 = vsub.f32 1.5, %v1100
    %v1102 = vmul.f32 %v1097, %v1101
    %vm1103 = vweird.f32 %v1086
    %vm1104 = vweird.f32 %v1097
    %vm1105 = vmor %vm1103, %vm1104
    %v1106 = vsel %vm1105, %v1097, %v1102
    %v1107 = vmul.f32 %v1073, %v1096
    %v1108 = vmul.f32 %v1074, %v1106
    %v1109 = vperm.slane %v103, 6
    %v1110 = vmul.f32 %v1107, %v1109
    %v1111 = vmul.f32 %v1108, %v1109
    %v1112 = vperm.slane %v103, 7
    %v1113 = vadd.f32 %v1110, %v1112
    %v1114 = vadd.f32 %v1111, %v1112
    %v1115 = vpack.c.bf16 %v1114, %v1113
    %v1116 = vperm.slane %v103, 4
    %v1117 = vunpack.c.h.b16 %v718
    %v1118 = vunpack.c.h.b16 %v719
    %v1119 = vunpack.c.h.b16 %v720
    %v1120 = vunpack.c.h.b16 %v721
    %v1121 = vpack.c.b16 %v1118, %v1117
    %v1122 = vpack.c.b16 %v1120, %v1119
    %v1126 = vsel %vm107, %v1115, 0
    %1128 = vmatpush.bf16.msra.mxu0 0
    %1129 = vmatpush.bf16.msra.mxu0 0
    %1130 = vmatpush.bf16.msra.mxu0 0
    %1131 = vmatpush.bf16.msra.mxu0 0
    %1132 = vmatpush.bf16.msra.mxu0 0
    %1133 = vmatpush.bf16.msra.mxu0 0
    %1134 = vmatpush.bf16.msra.mxu0 %v1122
    %1135 = vmatpush.bf16.msra.mxu0 %v1121
    %1136 = vmatmul.bf16.gmra.mxu0 %v1126
    %v1137 = vpop.f32.mrf.mxu0
    %v1138 = vadd.f32 %v1116, %v1137
    %v1139 = vpop.f32.mrf.mxu0
    %v1140 = vadd.f32 %v1116, %v1139
    %1141 = vdwg.mxu0
    %v1142 = vmul.f32 %v1138, 0.5
    %v1143 = vmul.f32 %v1140, 0.5
    %v1144 = vmul.f32 %v1138, 0.044715
    %v1145 = vmul.f32 %v1140, 0.044715
    %v1146 = vmul.f32 %v1144, %v1138
    %v1147 = vmul.f32 %v1145, %v1140
    %v1148 = vmul.f32 %v1146, %v1138
    %v1149 = vmul.f32 %v1147, %v1140
    %v1150 = vadd.f32 %v1138, %v1148
    %v1151 = vadd.f32 %v1140, %v1149
    %v1152 = vmul.f32 %v1150, 0.7978846
    %v1153 = vmul.f32 %v1151, 0.7978846
    %v1154 = vtanh.pop %v1152
    %v1155 = vtanh.pop %v1153
    %v1156 = vadd.f32 %v1154, 1.0
    %v1157 = vadd.f32 %v1155, 1.0
    %v1158 = vmul.f32 %v1142, %v1156
    %v1159 = vmul.f32 %v1143, %v1157
    %v1160 = vpack.c.bf16 %v1159, %v1158
    %v1161 = vperm.slane %v103, 5
    %v1170 = vunpack.c.l.b16 %v723
    %v1171 = vunpack.c.l.b16 %v724
    %v1172 = vunpack.c.l.b16 %v725
    %v1173 = vunpack.c.l.b16 %v726
    %v1174 = vunpack.c.l.b16 %v727
    %v1175 = vunpack.c.l.b16 %v728
    %v1176 = vunpack.c.l.b16 %v729
    %v1177 = vunpack.c.l.b16 %v730
    %v1178 = vpack.c.b16 %v1171, %v1170
    %v1179 = vpack.c.b16 %v1173, %v1172
    %v1180 = vpack.c.b16 %v1175, %v1174
    %v1181 = vpack.c.b16 %v1177, %v1176
    %v1187 = vsel %vm647, %v1160, 0
    %1189 = vmatpush.bf16.msra.mxu0 0
    %1190 = vmatpush.bf16.msra.mxu0 0
    %1191 = vmatpush.bf16.msra.mxu0 0
    %1192 = vmatpush.bf16.msra.mxu0 0
    %1193 = vmatpush.bf16.msra.mxu0 %v1181
    %1194 = vmatpush.bf16.msra.mxu0 %v1180
    %1195 = vmatpush.bf16.msra.mxu0 %v1179
    %1196 = vmatpush.bf16.msra.mxu0 %v1178
    %1197 = vmatmul.bf16.gmra.mxu0 %v1187
    %v1198 = vpop.f32.mrf.mxu0
    %v1199 = vadd.f32 %v1161, %v1198
    %v1200 = vpop.f32.mrf.mxu0
    %v1201 = vadd.f32 %v1161, %v1200
    %1202 = vdwg.mxu0
    %v1203 = vadd.f32 %v1113, %v1199
    %v1204 = vadd.f32 %v1114, %v1201
    %v1205 = vsel %vm107, %v1203, 0.0
    %1206 = vadd.xlane.f32.xlu0 %v1205
    %v1207 = vpop.xlane.xlu0 %1206
    %v1208 = vsel %vm107, %v1204, 0.0
    %1209 = vadd.xlane.f32.xlu0 %v1208
    %v1210 = vpop.xlane.xlu0 %1209
    %v1211 = vmul.f32 %v1207, %v120
    %v1212 = vmul.f32 %v1210, %v120
    %v1213 = vsub.f32 %v1203, %v1211
    %v1214 = vsub.f32 %v1204, %v1212
    %v1215 = vmul.f32 %v1213, %v1213
    %v1216 = vmul.f32 %v1214, %v1214
    %v1217 = vsel %vm107, %v1215, 0.0
    %1218 = vadd.xlane.f32.xlu0 %v1217
    %v1219 = vpop.xlane.xlu0 %1218
    %v1220 = vsel %vm107, %v1216, 0.0
    %1221 = vadd.xlane.f32.xlu0 %v1220
    %v1222 = vpop.xlane.xlu0 %1221
    %v1223 = vmul.f32 %v1219, %v120
    %v1224 = vmul.f32 %v1222, %v120
    %v1225 = vadd.f32 %v1223, 1e-12
    %v1226 = vadd.f32 %v1224, 1e-12
    %v1227 = vrsqrt.pop %v1225
    %v1228 = vmul.f32 %v1227, %v1225
    %v1229 = vmul.f32 %v1228, %v1227
    %v1230 = vmul.f32 0.5, %v1229
    %v1231 = vsub.f32 1.5, %v1230
    %v1232 = vmul.f32 %v1227, %v1231
    %vm1233 = vweird.f32 %v1225
    %vm1234 = vweird.f32 %v1227
    %vm1235 = vmor %vm1233, %vm1234
    %v1236 = vsel %vm1235, %v1227, %v1232
    %v1237 = vrsqrt.pop %v1226
    %v1238 = vmul.f32 %v1237, %v1226
    %v1239 = vmul.f32 %v1238, %v1237
    %v1240 = vmul.f32 0.5, %v1239
    %v1241 = vsub.f32 1.5, %v1240
    %v1242 = vmul.f32 %v1237, %v1241
    %vm1243 = vweird.f32 %v1226
    %vm1244 = vweird.f32 %v1237
    %vm1245 = vmor %vm1243, %vm1244
    %v1246 = vsel %vm1245, %v1237, %v1242
    %v1247 = vmul.f32 %v1213, %v1236
    %v1248 = vmul.f32 %v1214, %v1246
    %v1249 = vperm.slane %v104, 0
    %v1250 = vmul.f32 %v1247, %v1249
    %v1251 = vmul.f32 %v1248, %v1249
    %v1252 = vperm.slane %v104, 1
    %v1253 = vadd.f32 %v1250, %v1252
    %v1254 = vadd.f32 %v1251, %v1252
    %v1255 = vpack.c.bf16 %v1254, %v1253
    %v1256 = vld [vmem:[#allocation8] sm:$0xff]
    %v1257 = vld [vmem:[#allocation8 + $0x8] sm:$0xff]
    %v1258 = vld [vmem:[#allocation8 + $0x10] sm:$0xff]
    %v1259 = vld [vmem:[#allocation8 + $0x18] sm:$0xff]
    %v1260 = vld [vmem:[#allocation8 + $0x20] sm:$0xff]
    %v1261 = vld [vmem:[#allocation8 + $0x28] sm:$0xff]
    %v1262 = vld [vmem:[#allocation8 + $0x30] sm:$0xff]
    %v1263 = vld [vmem:[#allocation8 + $0x38] sm:$0xff]
    %v1264 = vld [vmem:[#allocation8 + $0x40] sm:$0xff]
    %v1265 = vld [vmem:[#allocation8 + $0x48] sm:$0xff]
    %v1266 = vld [vmem:[#allocation8 + $0x50] sm:$0xff]
    %v1267 = vld [vmem:[#allocation8 + $0x58] sm:$0xff]
    %v1268 = vld [vmem:[#allocation8 + $0x60] sm:$0xff]
    %v1269 = vld [vmem:[#allocation8 + $0x68] sm:$0xff]
    %v1270 = vld [vmem:[#allocation8 + $0x70] sm:$0xff]
    %v1271 = vld [vmem:[#allocation8 + $0x78] sm:$0xff]
    %v1272 = vld [vmem:[#allocation9] ss:$4 sm:$0xff]
    %v1274 = vperm.slane %v1272, 0
    %v1275 = vperm.slane %v1272, 1
    %v1276 = vperm.slane %v1272, 2
    %v1277 = vperm.slane %v1272, 3
    %v1278 = vperm.slane %v1272, 4
    %v1279 = vperm.slane %v1272, 5
    %v1280 = vperm.slane %v1272, 6
    %v1281 = vperm.slane %v1272, 7
    %v1306 = vunpack.c.l.b16 %v1256
    %v1307 = vunpack.c.h.b16 %v1256
    %v1308 = vunpack.c.l.b16 %v1257
    %v1309 = vunpack.c.h.b16 %v1257
    %v1310 = vunpack.c.l.b16 %v1258
    %v1311 = vunpack.c.h.b16 %v1258
    %v1312 = vunpack.c.l.b16 %v1259
    %v1313 = vunpack.c.h.b16 %v1259
    %v1314 = vunpack.c.l.b16 %v1260
    %v1315 = vunpack.c.h.b16 %v1260
    %v1316 = vunpack.c.l.b16 %v1261
    %v1317 = vunpack.c.h.b16 %v1261
    %v1318 = vunpack.c.l.b16 %v1262
    %v1319 = vunpack.c.h.b16 %v1262
    %v1320 = vunpack.c.l.b16 %v1263
    %v1321 = vunpack.c.h.b16 %v1263
    %v1322 = vunpack.c.l.b16 %v1264
    %v1323 = vunpack.c.h.b16 %v1264
    %v1324 = vunpack.c.l.b16 %v1265
    %v1325 = vunpack.c.h.b16 %v1265
    %v1326 = vunpack.c.l.b16 %v1266
    %v1327 = vunpack.c.h.b16 %v1266
    %v1328 = vunpack.c.l.b16 %v1267
    %v1329 = vunpack.c.h.b16 %v1267
    %v1330 = vunpack.c.l.b16 %v1268
    %v1331 = vunpack.c.h.b16 %v1268
    %v1332 = vunpack.c.l.b16 %v1269
    %v1333 = vunpack.c.h.b16 %v1269
    %v1334 = vunpack.c.l.b16 %v1270
    %v1335 = vunpack.c.h.b16 %v1270
    %v1336 = vunpack.c.l.b16 %v1271
    %v1337 = vunpack.c.h.b16 %v1271
    %v1338 = vpack.c.b16 %v1314, %v1306
    %v1339 = vpack.c.b16 %v1315, %v1307
    %v1340 = vpack.c.b16 %v1316, %v1308
    %v1341 = vpack.c.b16 %v1317, %v1309
    %v1342 = vpack.c.b16 %v1318, %v1310
    %v1343 = vpack.c.b16 %v1319, %v1311
    %v1344 = vpack.c.b16 %v1320, %v1312
    %v1345 = vpack.c.b16 %v1321, %v1313
    %v1346 = vpack.c.b16 %v1330, %v1322
    %v1347 = vpack.c.b16 %v1331, %v1323
    %v1348 = vpack.c.b16 %v1332, %v1324
    %v1349 = vpack.c.b16 %v1333, %v1325
    %v1350 = vpack.c.b16 %v1334, %v1326
    %v1351 = vpack.c.b16 %v1335, %v1327
    %v1352 = vpack.c.b16 %v1336, %v1328
    %v1353 = vpack.c.b16 %v1337, %v1329
    %v1371 = vsel %vm107, %v1255, 0
    %1373 = vmatpush.bf16.msra.mxu0 0
    %1374 = vmatpush.bf16.msra.mxu0 0
    %1375 = vmatpush.bf16.msra.mxu0 0
    %1376 = vmatpush.bf16.msra.mxu0 0
    %1377 = vmatpush.bf16.msra.mxu0 0
    %1378 = vmatpush.bf16.msra.mxu0 0
    %1379 = vmatpush.bf16.msra.mxu0 %v1346
    %1380 = vmatpush.bf16.msra.mxu0 %v1338
    %1381 = vmatmul.bf16.gmra.mxu0 %v1371
    %v1382 = vpop.f32.mrf.mxu0
    %v1383 = vadd.f32 %v1274, %v1382
    %v1384 = vpop.f32.mrf.mxu0
    %v1385 = vadd.f32 %v1274, %v1384
    %1386 = vdwg.mxu0
    %1387 = vmatpush.bf16.msra.mxu0 0
    %1388 = vmatpush.bf16.msra.mxu0 0
    %1389 = vmatpush.bf16.msra.mxu0 0
    %1390 = vmatpush.bf16.msra.mxu0 0
    %1391 = vmatpush.bf16.msra.mxu0 0
    %1392 = vmatpush.bf16.msra.mxu0 0
    %1393 = vmatpush.bf16.msra.mxu0 %v1347
    %1394 = vmatpush.bf16.msra.mxu0 %v1339
    %1395 = vmatmul.bf16.gmra.mxu0 %v1371
    %v1396 = vpop.f32.mrf.mxu0
    %v1397 = vadd.f32 %v1275, %v1396
    %v1398 = vpop.f32.mrf.mxu0
    %v1399 = vadd.f32 %v1275, %v1398
    %1400 = vdwg.mxu0
    %1401 = vmatpush.bf16.msra.mxu0 0
    %1402 = vmatpush.bf16.msra.mxu0 0
    %1403 = vmatpush.bf16.msra.mxu0 0
    %1404 = vmatpush.bf16.msra.mxu0 0
    %1405 = vmatpush.bf16.msra.mxu0 0
    %1406 = vmatpush.bf16.msra.mxu0 0
    %1407 = vmatpush.bf16.msra.mxu0 %v1348
    %1408 = vmatpush.bf16.msra.mxu0 %v1340
    %1409 = vmatmul.bf16.gmra.mxu0 %v1371
    %v1410 = vpop.f32.mrf.mxu0
    %v1411 = vadd.f32 %v1276, %v1410
    %v1412 = vpop.f32.mrf.mxu0
    %v1413 = vadd.f32 %v1276, %v1412
    %1414 = vdwg.mxu0
    %1415 = vmatpush.bf16.msra.mxu0 0
    %1416 = vmatpush.bf16.msra.mxu0 0
    %1417 = vmatpush.bf16.msra.mxu0 0
    %1418 = vmatpush.bf16.msra.mxu0 0
    %1419 = vmatpush.bf16.msra.mxu0 0
    %1420 = vmatpush.bf16.msra.mxu0 0
    %1421 = vmatpush.bf16.msra.mxu0 %v1349
    %1422 = vmatpush.bf16.msra.mxu0 %v1341
    %1423 = vmatmul.bf16.gmra.mxu0 %v1371
    %v1424 = vpop.f32.mrf.mxu0
    %v1425 = vadd.f32 %v1277, %v1424
    %v1426 = vpop.f32.mrf.mxu0
    %v1427 = vadd.f32 %v1277, %v1426
    %1428 = vdwg.mxu0
    %1429 = vmatpush.bf16.msra.mxu0 0
    %1430 = vmatpush.bf16.msra.mxu0 0
    %1431 = vmatpush.bf16.msra.mxu0 0
    %1432 = vmatpush.bf16.msra.mxu0 0
    %1433 = vmatpush.bf16.msra.mxu0 0
    %1434 = vmatpush.bf16.msra.mxu0 0
    %1435 = vmatpush.bf16.msra.mxu0 %v1350
    %1436 = vmatpush.bf16.msra.mxu0 %v1342
    %1437 = vmatmul.bf16.gmra.mxu0 %v1371
    %v1438 = vpop.f32.mrf.mxu0
    %v1439 = vadd.f32 %v1278, %v1438
    %v1440 = vpop.f32.mrf.mxu0
    %v1441 = vadd.f32 %v1278, %v1440
    %1442 = vdwg.mxu0
    %1443 = vmatpush.bf16.msra.mxu0 0
    %1444 = vmatpush.bf16.msra.mxu0 0
    %1445 = vmatpush.bf16.msra.mxu0 0
    %1446 = vmatpush.bf16.msra.mxu0 0
    %1447 = vmatpush.bf16.msra.mxu0 0
    %1448 = vmatpush.bf16.msra.mxu0 0
    %1449 = vmatpush.bf16.msra.mxu0 %v1351
    %1450 = vmatpush.bf16.msra.mxu0 %v1343
    %1451 = vmatmul.bf16.gmra.mxu0 %v1371
    %v1452 = vpop.f32.mrf.mxu0
    %v1453 = vadd.f32 %v1279, %v1452
    %v1454 = vpop.f32.mrf.mxu0
    %v1455 = vadd.f32 %v1279, %v1454
    %1456 = vdwg.mxu0
    %1457 = vmatpush.bf16.msra.mxu0 0
    %1458 = vmatpush.bf16.msra.mxu0 0
    %1459 = vmatpush.bf16.msra.mxu0 0
    %1460 = vmatpush.bf16.msra.mxu0 0
    %1461 = vmatpush.bf16.msra.mxu0 0
    %1462 = vmatpush.bf16.msra.mxu0 0
    %1463 = vmatpush.bf16.msra.mxu0 %v1352
    %1464 = vmatpush.bf16.msra.mxu0 %v1344
    %1465 = vmatmul.bf16.gmra.mxu0 %v1371
    %v1466 = vpop.f32.mrf.mxu0
    %v1467 = vadd.f32 %v1280, %v1466
    %v1468 = vpop.f32.mrf.mxu0
    %v1469 = vadd.f32 %v1280, %v1468
    %1470 = vdwg.mxu0
    %1471 = vmatpush.bf16.msra.mxu0 0
    %1472 = vmatpush.bf16.msra.mxu0 0
    %1473 = vmatpush.bf16.msra.mxu0 0
    %1474 = vmatpush.bf16.msra.mxu0 0
    %1475 = vmatpush.bf16.msra.mxu0 0
    %1476 = vmatpush.bf16.msra.mxu0 0
    %1477 = vmatpush.bf16.msra.mxu0 %v1353
    %1478 = vmatpush.bf16.msra.mxu0 %v1345
    %1479 = vmatmul.bf16.gmra.mxu0 %v1371
    %v1480 = vpop.f32.mrf.mxu0
    %v1481 = vadd.f32 %v1281, %v1480
    %v1482 = vpop.f32.mrf.mxu0
    %v1483 = vadd.f32 %v1281, %v1482
    %1484 = vdwg.mxu0
    %v1485 = vtanh.pop %v1383
    %v1486 = vtanh.pop %v1397
    %v1487 = vtanh.pop %v1411
    %v1488 = vtanh.pop %v1425
    %v1489 = vtanh.pop %v1439
    %v1490 = vtanh.pop %v1453
    %v1491 = vtanh.pop %v1467
    %v1492 = vtanh.pop %v1481
    %v1493 = vtanh.pop %v1385
    %v1494 = vtanh.pop %v1399
    %v1495 = vtanh.pop %v1413
    %v1496 = vtanh.pop %v1427
    %v1497 = vtanh.pop %v1441
    %v1498 = vtanh.pop %v1455
    %v1499 = vtanh.pop %v1469
    %v1500 = vtanh.pop %v1483
    %s1501 = smul.u32 4, 128
    %s1502 = smul.u32 %s1501, 9
    %s1503 = sshll.u32 %s1502, 4
    %1504 = dma.done [#allocation3], %s1503
    %v1505 = vpack.c.bf16 %v1493, %v1485
    %v1506 = vpack.c.bf16 %v1494, %v1486
    %v1507 = vpack.c.bf16 %v1495, %v1487
    %v1508 = vpack.c.bf16 %v1496, %v1488
    %v1509 = vpack.c.bf16 %v1497, %v1489
    %v1510 = vpack.c.bf16 %v1498, %v1490
    %v1511 = vpack.c.bf16 %v1499, %v1491
    %v1512 = vpack.c.bf16 %v1500, %v1492
    %v1513 = vld [vmem:[#allocation2] sm:$0xff]
    %v1514 = vld [vmem:[#allocation2 + $0x8] sm:$0xff]
    %v1515 = vld [vmem:[#allocation2 + $0x10] sm:$0xff]
    %v1516 = vld [vmem:[#allocation2 + $0x18] sm:$0xff]
    %v1517 = vld [vmem:[#allocation2 + $0x24] sm:$0xff]
    %v1518 = vld [vmem:[#allocation2 + $0x2c] sm:$0xff]
    %v1519 = vld [vmem:[#allocation2 + $0x34] sm:$0xff]
    %v1520 = vld [vmem:[#allocation2 + $0x3c] sm:$0xff]
    %v1521 = vld [vmem:[#allocation2 + $0x48] sm:$0xff]
    %v1522 = vld [vmem:[#allocation2 + $0x50] sm:$0xff]
    %v1523 = vld [vmem:[#allocation2 + $0x58] sm:$0xff]
    %v1524 = vld [vmem:[#allocation2 + $0x60] sm:$0xff]
    %v1525 = vld [vmem:[#allocation2 + $0x6c] sm:$0xff]
    %v1526 = vld [vmem:[#allocation2 + $0x74] sm:$0xff]
    %v1527 = vld [vmem:[#allocation2 + $0x7c] sm:$0xff]
    %v1528 = vld [vmem:[#allocation2 + $0x84] sm:$0xff]
    %v1529 = vld [vmem:[#allocation2 + $0x90] sm:$0xff]
    %v1530 = vld [vmem:[#allocation2 + $0x98] sm:$0xff]
    %v1531 = vld [vmem:[#allocation2 + $0xa0] sm:$0xff]
    %v1532 = vld [vmem:[#allocation2 + $0xa8] sm:$0xff]
    %v1533 = vld [vmem:[#allocation2 + $0xb4] sm:$0xff]
    %v1534 = vld [vmem:[#allocation2 + $0xbc] sm:$0xff]
    %v1535 = vld [vmem:[#allocation2 + $0xc4] sm:$0xff]
    %v1536 = vld [vmem:[#allocation2 + $0xcc] sm:$0xff]
    %v1537 = vld [vmem:[#allocation2 + $0xd8] sm:$0xff]
    %v1538 = vld [vmem:[#allocation2 + $0xe0] sm:$0xff]
    %v1539 = vld [vmem:[#allocation2 + $0xe8] sm:$0xff]
    %v1540 = vld [vmem:[#allocation2 + $0xf0] sm:$0xff]
    %v1541 = vld [vmem:[#allocation2 + $0xfc] sm:$0xff]
    %v1542 = vld [vmem:[#allocation2 + $0x104] sm:$0xff]
    %v1543 = vld [vmem:[#allocation2 + $0x10c] sm:$0xff]
    %v1544 = vld [vmem:[#allocation2 + $0x114] sm:$0xff]
    %v1545 = vld [vmem:[#allocation2 + $0x120] sm:$0xff]
    %v1546 = vld [vmem:[#allocation2 + $0x128] sm:$0xff]
    %v1547 = vld [vmem:[#allocation2 + $0x130] sm:$0xff]
    %v1548 = vld [vmem:[#allocation2 + $0x138] sm:$0xff]
    %v1549 = vld [vmem:[#allocation2 + $0x144] sm:$0xff]
    %v1550 = vld [vmem:[#allocation2 + $0x14c] sm:$0xff]
    %v1551 = vld [vmem:[#allocation2 + $0x154] sm:$0xff]
    %v1552 = vld [vmem:[#allocation2 + $0x15c] sm:$0xff]
    %v1553 = vld [vmem:[#allocation2 + $0x168] sm:$0xff]
    %v1554 = vld [vmem:[#allocation2 + $0x170] sm:$0xff]
    %v1555 = vld [vmem:[#allocation2 + $0x178] sm:$0xff]
    %v1556 = vld [vmem:[#allocation2 + $0x180] sm:$0xff]
    %v1557 = vld [vmem:[#allocation2 + $0x18c] sm:$0xff]
    %v1558 = vld [vmem:[#allocation2 + $0x194] sm:$0xff]
    %v1559 = vld [vmem:[#allocation2 + $0x19c] sm:$0xff]
    %v1560 = vld [vmem:[#allocation2 + $0x1a4] sm:$0xff]
    %v1561 = vld [vmem:[#allocation2 + $0x1b0] sm:$0xff]
    %v1562 = vld [vmem:[#allocation2 + $0x1b8] sm:$0xff]
    %v1563 = vld [vmem:[#allocation2 + $0x1c0] sm:$0xff]
    %v1564 = vld [vmem:[#allocation2 + $0x1c8] sm:$0xff]
    %v1565 = vld [vmem:[#allocation2 + $0x1d4] sm:$0xff]
    %v1566 = vld [vmem:[#allocation2 + $0x1dc] sm:$0xff]
    %v1567 = vld [vmem:[#allocation2 + $0x1e4] sm:$0xff]
    %v1568 = vld [vmem:[#allocation2 + $0x1ec] sm:$0xff]
    %v1569 = vld [vmem:[#allocation2 + $0x1f8] sm:$0xff]
    %v1570 = vld [vmem:[#allocation2 + $0x200] sm:$0xff]
    %v1571 = vld [vmem:[#allocation2 + $0x208] sm:$0xff]
    %v1572 = vld [vmem:[#allocation2 + $0x210] sm:$0xff]
    %v1573 = vld [vmem:[#allocation2 + $0x21c] sm:$0xff]
    %v1574 = vld [vmem:[#allocation2 + $0x224] sm:$0xff]
    %v1575 = vld [vmem:[#allocation2 + $0x22c] sm:$0xff]
    %v1576 = vld [vmem:[#allocation2 + $0x234] sm:$0xff]
    %v1577 = vld [vmem:[#allocation2 + $0x240] sm:$0xff]
    %v1578 = vld [vmem:[#allocation2 + $0x248] sm:$0xff]
    %v1579 = vld [vmem:[#allocation2 + $0x250] sm:$0xff]
    %v1580 = vld [vmem:[#allocation2 + $0x258] sm:$0xff]
    %v1581 = vld [vmem:[#allocation2 + $0x264] sm:$0xff]
    %v1582 = vld [vmem:[#allocation2 + $0x26c] sm:$0xff]
    %v1583 = vld [vmem:[#allocation2 + $0x274] sm:$0xff]
    %v1584 = vld [vmem:[#allocation2 + $0x27c] sm:$0xff]
    %v1585 = vld [vmem:[#allocation2 + $0x288] sm:$0xff]
    %v1586 = vld [vmem:[#allocation2 + $0x290] sm:$0xff]
    %v1587 = vld [vmem:[#allocation2 + $0x298] sm:$0xff]
    %v1588 = vld [vmem:[#allocation2 + $0x2a0] sm:$0xff]
    %v1589 = vld [vmem:[#allocation2 + $0x2ac] sm:$0xff]
    %v1590 = vld [vmem:[#allocation2 + $0x2b4] sm:$0xff]
    %v1591 = vld [vmem:[#allocation2 + $0x2bc] sm:$0xff]
    %v1592 = vld [vmem:[#allocation2 + $0x2c4] sm:$0xff]
    %v1593 = vld [vmem:[#allocation2 + $0x2d0] sm:$0xff]
    %v1594 = vld [vmem:[#allocation2 + $0x2d8] sm:$0xff]
    %v1595 = vld [vmem:[#allocation2 + $0x2e0] sm:$0xff]
    %v1596 = vld [vmem:[#allocation2 + $0x2e8] sm:$0xff]
    %v1597 = vld [vmem:[#allocation2 + $0x2f4] sm:$0xff]
    %v1598 = vld [vmem:[#allocation2 + $0x2fc] sm:$0xff]
    %v1599 = vld [vmem:[#allocation2 + $0x304] sm:$0xff]
    %v1600 = vld [vmem:[#allocation2 + $0x30c] sm:$0xff]
    %v1601 = vld [vmem:[#allocation2 + $0x318] sm:$0xff]
    %v1602 = vld [vmem:[#allocation2 + $0x320] sm:$0xff]
    %v1603 = vld [vmem:[#allocation2 + $0x328] sm:$0xff]
    %v1604 = vld [vmem:[#allocation2 + $0x330] sm:$0xff]
    %v1605 = vld [vmem:[#allocation2 + $0x33c] sm:$0xff]
    %v1606 = vld [vmem:[#allocation2 + $0x344] sm:$0xff]
    %v1607 = vld [vmem:[#allocation2 + $0x34c] sm:$0xff]
    %v1608 = vld [vmem:[#allocation2 + $0x354] sm:$0xff]
    %v1609 = vld [vmem:[#allocation2 + $0x360] sm:$0xff]
    %v1610 = vld [vmem:[#allocation2 + $0x368] sm:$0xff]
    %v1611 = vld [vmem:[#allocation2 + $0x370] sm:$0xff]
    %v1612 = vld [vmem:[#allocation2 + $0x378] sm:$0xff]
    %v1613 = vld [vmem:[#allocation2 + $0x384] sm:$0xff]
    %v1614 = vld [vmem:[#allocation2 + $0x38c] sm:$0xff]
    %v1615 = vld [vmem:[#allocation2 + $0x394] sm:$0xff]
    %v1616 = vld [vmem:[#allocation2 + $0x39c] sm:$0xff]
    %v1617 = vld [vmem:[#allocation2 + $0x3a8] sm:$0xff]
    %v1618 = vld [vmem:[#allocation2 + $0x3b0] sm:$0xff]
    %v1619 = vld [vmem:[#allocation2 + $0x3b8] sm:$0xff]
    %v1620 = vld [vmem:[#allocation2 + $0x3c0] sm:$0xff]
    %v1621 = vld [vmem:[#allocation2 + $0x3cc] sm:$0xff]
    %v1622 = vld [vmem:[#allocation2 + $0x3d4] sm:$0xff]
    %v1623 = vld [vmem:[#allocation2 + $0x3dc] sm:$0xff]
    %v1624 = vld [vmem:[#allocation2 + $0x3e4] sm:$0xff]
    %v1625 = vld [vmem:[#allocation2 + $0x3f0] sm:$0xff]
    %v1626 = vld [vmem:[#allocation2 + $0x3f8] sm:$0xff]
    %v1627 = vld [vmem:[#allocation2 + $0x400] sm:$0xff]
    %v1628 = vld [vmem:[#allocation2 + $0x408] sm:$0xff]
    %v1629 = vld [vmem:[#allocation2 + $0x414] sm:$0xff]
    %v1630 = vld [vmem:[#allocation2 + $0x41c] sm:$0xff]
    %v1631 = vld [vmem:[#allocation2 + $0x424] sm:$0xff]
    %v1632 = vld [vmem:[#allocation2 + $0x42c] sm:$0xff]
    %v1633 = vld [vmem:[#allocation2 + $0x438] sm:$0xff]
    %v1634 = vld [vmem:[#allocation2 + $0x440] sm:$0xff]
    %v1635 = vld [vmem:[#allocation2 + $0x448] sm:$0xff]
    %v1636 = vld [vmem:[#allocation2 + $0x450] sm:$0xff]
    %v1637 = vld [vmem:[#allocation2 + $0x45c] sm:$0xff]
    %v1638 = vld [vmem:[#allocation2 + $0x464] sm:$0xff]
    %v1639 = vld [vmem:[#allocation2 + $0x46c] sm:$0xff]
    %v1640 = vld [vmem:[#allocation2 + $0x474] sm:$0xff]
    %v1641 = vld [vmem:[#allocation2 + $0x480] sm:$0xff]
    %v1642 = vld [vmem:[#allocation2 + $0x488] sm:$0xff]
    %v1643 = vld [vmem:[#allocation2 + $0x490] sm:$0xff]
    %v1644 = vld [vmem:[#allocation2 + $0x498] sm:$0xff]
    %v1645 = vld [vmem:[#allocation2 + $0x4a4] sm:$0xff]
    %v1646 = vld [vmem:[#allocation2 + $0x4ac] sm:$0xff]
    %v1647 = vld [vmem:[#allocation2 + $0x4b4] sm:$0xff]
    %v1648 = vld [vmem:[#allocation2 + $0x4bc] sm:$0xff]
    %v1649 = vld [vmem:[#allocation2 + $0x4c8] sm:$0xff]
    %v1650 = vld [vmem:[#allocation2 + $0x4d0] sm:$0xff]
    %v1651 = vld [vmem:[#allocation2 + $0x4d8] sm:$0xff]
    %v1652 = vld [vmem:[#allocation2 + $0x4e0] sm:$0xff]
    %v1653 = vld [vmem:[#allocation2 + $0x4ec] sm:$0xff]
    %v1654 = vld [vmem:[#allocation2 + $0x4f4] sm:$0xff]
    %v1655 = vld [vmem:[#allocation2 + $0x4fc] sm:$0xff]
    %v1656 = vld [vmem:[#allocation2 + $0x504] sm:$0xff]
    %v1657 = vld [vmem:[#allocation2 + $0x510] sm:$0xff]
    %v1658 = vld [vmem:[#allocation2 + $0x518] sm:$0xff]
    %v1659 = vld [vmem:[#allocation2 + $0x520] sm:$0xff]
    %v1660 = vld [vmem:[#allocation2 + $0x528] sm:$0xff]
    %v1661 = vld [vmem:[#allocation2 + $0x534] sm:$0xff]
    %v1662 = vld [vmem:[#allocation2 + $0x53c] sm:$0xff]
    %v1663 = vld [vmem:[#allocation2 + $0x544] sm:$0xff]
    %v1664 = vld [vmem:[#allocation2 + $0x54c] sm:$0xff]
    %v1665 = vld [vmem:[#allocation2 + $0x558] sm:$0xff]
    %v1666 = vld [vmem:[#allocation2 + $0x560] sm:$0xff]
    %v1667 = vld [vmem:[#allocation2 + $0x568] sm:$0xff]
    %v1668 = vld [vmem:[#allocation2 + $0x570] sm:$0xff]
    %v1669 = vld [vmem:[#allocation2 + $0x57c] sm:$0xff]
    %v1670 = vld [vmem:[#allocation2 + $0x584] sm:$0xff]
    %v1671 = vld [vmem:[#allocation2 + $0x58c] sm:$0xff]
    %v1672 = vld [vmem:[#allocation2 + $0x594] sm:$0xff]
    %v1673 = vld [vmem:[#allocation2 + $0x5a0] sm:$0xff]
    %v1674 = vld [vmem:[#allocation2 + $0x5a8] sm:$0xff]
    %v1675 = vld [vmem:[#allocation2 + $0x5b0] sm:$0xff]
    %v1676 = vld [vmem:[#allocation2 + $0x5b8] sm:$0xff]
    %v1677 = vld [vmem:[#allocation2 + $0x5c4] sm:$0xff]
    %v1678 = vld [vmem:[#allocation2 + $0x5cc] sm:$0xff]
    %v1679 = vld [vmem:[#allocation2 + $0x5d4] sm:$0xff]
    %v1680 = vld [vmem:[#allocation2 + $0x5dc] sm:$0xff]
    %v1681 = vld [vmem:[#allocation2 + $0x5e8] sm:$0xff]
    %v1682 = vld [vmem:[#allocation2 + $0x5f0] sm:$0xff]
    %v1683 = vld [vmem:[#allocation2 + $0x5f8] sm:$0xff]
    %v1684 = vld [vmem:[#allocation2 + $0x600] sm:$0xff]
    %v1685 = vld [vmem:[#allocation2 + $0x60c] sm:$0xff]
    %v1686 = vld [vmem:[#allocation2 + $0x614] sm:$0xff]
    %v1687 = vld [vmem:[#allocation2 + $0x61c] sm:$0xff]
    %v1688 = vld [vmem:[#allocation2 + $0x624] sm:$0xff]
    %v1689 = vld [vmem:[#allocation2 + $0x630] sm:$0xff]
    %v1690 = vld [vmem:[#allocation2 + $0x638] sm:$0xff]
    %v1691 = vld [vmem:[#allocation2 + $0x640] sm:$0xff]
    %v1692 = vld [vmem:[#allocation2 + $0x648] sm:$0xff]
    %v1693 = vld [vmem:[#allocation2 + $0x654] sm:$0xff]
    %v1694 = vld [vmem:[#allocation2 + $0x65c] sm:$0xff]
    %v1695 = vld [vmem:[#allocation2 + $0x664] sm:$0xff]
    %v1696 = vld [vmem:[#allocation2 + $0x66c] sm:$0xff]
    %v1697 = vld [vmem:[#allocation2 + $0x678] sm:$0xff]
    %v1698 = vld [vmem:[#allocation2 + $0x680] sm:$0xff]
    %v1699 = vld [vmem:[#allocation2 + $0x688] sm:$0xff]
    %v1700 = vld [vmem:[#allocation2 + $0x690] sm:$0xff]
    %v1701 = vld [vmem:[#allocation2 + $0x69c] sm:$0xff]
    %v1702 = vld [vmem:[#allocation2 + $0x6a4] sm:$0xff]
    %v1703 = vld [vmem:[#allocation2 + $0x6ac] sm:$0xff]
    %v1704 = vld [vmem:[#allocation2 + $0x6b4] sm:$0xff]
    %v1705 = vld [vmem:[#allocation2 + $0x6c0] sm:$0xff]
    %v1706 = vld [vmem:[#allocation2 + $0x6c8] sm:$0xff]
    %v1707 = vld [vmem:[#allocation2 + $0x6d0] sm:$0xff]
    %v1708 = vld [vmem:[#allocation2 + $0x6d8] sm:$0xff]
    %v1709 = vld [vmem:[#allocation2 + $0x6e4] sm:$0xff]
    %v1710 = vld [vmem:[#allocation2 + $0x6ec] sm:$0xff]
    %v1711 = vld [vmem:[#allocation2 + $0x6f4] sm:$0xff]
    %v1712 = vld [vmem:[#allocation2 + $0x6fc] sm:$0xff]
    %v1713 = vld [vmem:[#allocation2 + $0x708] sm:$0xff]
    %v1714 = vld [vmem:[#allocation2 + $0x710] sm:$0xff]
    %v1715 = vld [vmem:[#allocation2 + $0x718] sm:$0xff]
    %v1716 = vld [vmem:[#allocation2 + $0x720] sm:$0xff]
    %v1717 = vld [vmem:[#allocation2 + $0x72c] sm:$0xff]
    %v1718 = vld [vmem:[#allocation2 + $0x734] sm:$0xff]
    %v1719 = vld [vmem:[#allocation2 + $0x73c] sm:$0xff]
    %v1720 = vld [vmem:[#allocation2 + $0x744] sm:$0xff]
    %v1721 = vld [vmem:[#allocation2 + $0x750] sm:$0xff]
    %v1722 = vld [vmem:[#allocation2 + $0x758] sm:$0xff]
    %v1723 = vld [vmem:[#allocation2 + $0x760] sm:$0xff]
    %v1724 = vld [vmem:[#allocation2 + $0x768] sm:$0xff]
    %v1725 = vld [vmem:[#allocation2 + $0x774] sm:$0xff]
    %v1726 = vld [vmem:[#allocation2 + $0x77c] sm:$0xff]
    %v1727 = vld [vmem:[#allocation2 + $0x784] sm:$0xff]
    %v1728 = vld [vmem:[#allocation2 + $0x78c] sm:$0xff]
    %v1729 = vld [vmem:[#allocation2 + $0x798] sm:$0xff]
    %v1730 = vld [vmem:[#allocation2 + $0x7a0] sm:$0xff]
    %v1731 = vld [vmem:[#allocation2 + $0x7a8] sm:$0xff]
    %v1732 = vld [vmem:[#allocation2 + $0x7b0] sm:$0xff]
    %v1733 = vld [vmem:[#allocation2 + $0x7bc] sm:$0xff]
    %v1734 = vld [vmem:[#allocation2 + $0x7c4] sm:$0xff]
    %v1735 = vld [vmem:[#allocation2 + $0x7cc] sm:$0xff]
    %v1736 = vld [vmem:[#allocation2 + $0x7d4] sm:$0xff]
    %v1737 = vld [vmem:[#allocation2 + $0x7e0] sm:$0xff]
    %v1738 = vld [vmem:[#allocation2 + $0x7e8] sm:$0xff]
    %v1739 = vld [vmem:[#allocation2 + $0x7f0] sm:$0xff]
    %v1740 = vld [vmem:[#allocation2 + $0x7f8] sm:$0xff]
    %v1741 = vld [vmem:[#allocation2 + $0x804] sm:$0xff]
    %v1742 = vld [vmem:[#allocation2 + $0x80c] sm:$0xff]
    %v1743 = vld [vmem:[#allocation2 + $0x814] sm:$0xff]
    %v1744 = vld [vmem:[#allocation2 + $0x81c] sm:$0xff]
    %v1745 = vld [vmem:[#allocation2 + $0x828] sm:$0xff]
    %v1746 = vld [vmem:[#allocation2 + $0x830] sm:$0xff]
    %v1747 = vld [vmem:[#allocation2 + $0x838] sm:$0xff]
    %v1748 = vld [vmem:[#allocation2 + $0x840] sm:$0xff]
    %v1749 = vld [vmem:[#allocation2 + $0x84c] sm:$0xff]
    %v1750 = vld [vmem:[#allocation2 + $0x854] sm:$0xff]
    %v1751 = vld [vmem:[#allocation2 + $0x85c] sm:$0xff]
    %v1752 = vld [vmem:[#allocation2 + $0x864] sm:$0xff]
    %v1753 = vld [vmem:[#allocation2 + $0x870] sm:$0xff]
    %v1754 = vld [vmem:[#allocation2 + $0x878] sm:$0xff]
    %v1755 = vld [vmem:[#allocation2 + $0x880] sm:$0xff]
    %v1756 = vld [vmem:[#allocation2 + $0x888] sm:$0xff]
    %v1757 = vld [vmem:[#allocation2 + $0x894] sm:$0xff]
    %v1758 = vld [vmem:[#allocation2 + $0x89c] sm:$0xff]
    %v1759 = vld [vmem:[#allocation2 + $0x8a4] sm:$0xff]
    %v1760 = vld [vmem:[#allocation2 + $0x8ac] sm:$0xff]
    %v1761 = vld [vmem:[#allocation2 + $0x8b8] sm:$0xff]
    %v1762 = vld [vmem:[#allocation2 + $0x8c0] sm:$0xff]
    %v1763 = vld [vmem:[#allocation2 + $0x8c8] sm:$0xff]
    %v1764 = vld [vmem:[#allocation2 + $0x8d0] sm:$0xff]
    %v1765 = vld [vmem:[#allocation2 + $0x8dc] sm:$0xff]
    %v1766 = vld [vmem:[#allocation2 + $0x8e4] sm:$0xff]
    %v1767 = vld [vmem:[#allocation2 + $0x8ec] sm:$0xff]
    %v1768 = vld [vmem:[#allocation2 + $0x8f4] sm:$0xff]
    %v1769 = vld [vmem:[#allocation2 + $0x900] sm:$0xff]
    %v1770 = vld [vmem:[#allocation2 + $0x908] sm:$0xff]
    %v1771 = vld [vmem:[#allocation2 + $0x910] sm:$0xff]
    %v1772 = vld [vmem:[#allocation2 + $0x918] sm:$0xff]
    %v1773 = vld [vmem:[#allocation2 + $0x924] sm:$0xff]
    %v1774 = vld [vmem:[#allocation2 + $0x92c] sm:$0xff]
    %v1775 = vld [vmem:[#allocation2 + $0x934] sm:$0xff]
    %v1776 = vld [vmem:[#allocation2 + $0x93c] sm:$0xff]
    %v1777 = vld [vmem:[#allocation2 + $0x948] sm:$0xff]
    %v1778 = vld [vmem:[#allocation2 + $0x950] sm:$0xff]
    %v1779 = vld [vmem:[#allocation2 + $0x958] sm:$0xff]
    %v1780 = vld [vmem:[#allocation2 + $0x960] sm:$0xff]
    %v1781 = vld [vmem:[#allocation2 + $0x96c] sm:$0xff]
    %v1782 = vld [vmem:[#allocation2 + $0x974] sm:$0xff]
    %v1783 = vld [vmem:[#allocation2 + $0x97c] sm:$0xff]
    %v1784 = vld [vmem:[#allocation2 + $0x984] sm:$0xff]
    %v1785 = vld [vmem:[#allocation2 + $0x990] sm:$0xff]
    %v1786 = vld [vmem:[#allocation2 + $0x998] sm:$0xff]
    %v1787 = vld [vmem:[#allocation2 + $0x9a0] sm:$0xff]
    %v1788 = vld [vmem:[#allocation2 + $0x9a8] sm:$0xff]
    %v1789 = vld [vmem:[#allocation2 + $0x9b4] sm:$0xff]
    %v1790 = vld [vmem:[#allocation2 + $0x9bc] sm:$0xff]
    %v1791 = vld [vmem:[#allocation2 + $0x9c4] sm:$0xff]
    %v1792 = vld [vmem:[#allocation2 + $0x9cc] sm:$0xff]
    %v1793 = vld [vmem:[#allocation2 + $0x9d8] sm:$0xff]
    %v1794 = vld [vmem:[#allocation2 + $0x9e0] sm:$0xff]
    %v1795 = vld [vmem:[#allocation2 + $0x9e8] sm:$0xff]
    %v1796 = vld [vmem:[#allocation2 + $0x9f0] sm:$0xff]
    %v1797 = vld [vmem:[#allocation2 + $0x9fc] sm:$0xff]
    %v1798 = vld [vmem:[#allocation2 + $0xa04] sm:$0xff]
    %v1799 = vld [vmem:[#allocation2 + $0xa0c] sm:$0xff]
    %v1800 = vld [vmem:[#allocation2 + $0xa14] sm:$0xff]
    %v1801 = vld [vmem:[#allocation2 + $0xa20] sm:$0xff]
    %v1802 = vld [vmem:[#allocation2 + $0xa28] sm:$0xff]
    %v1803 = vld [vmem:[#allocation2 + $0xa30] sm:$0xff]
    %v1804 = vld [vmem:[#allocation2 + $0xa38] sm:$0xff]
    %v1805 = vld [vmem:[#allocation2 + $0xa44] sm:$0xff]
    %v1806 = vld [vmem:[#allocation2 + $0xa4c] sm:$0xff]
    %v1807 = vld [vmem:[#allocation2 + $0xa54] sm:$0xff]
    %v1808 = vld [vmem:[#allocation2 + $0xa5c] sm:$0xff]
    %v1809 = vld [vmem:[#allocation2 + $0xa68] sm:$0xff]
    %v1810 = vld [vmem:[#allocation2 + $0xa70] sm:$0xff]
    %v1811 = vld [vmem:[#allocation2 + $0xa78] sm:$0xff]
    %v1812 = vld [vmem:[#allocation2 + $0xa80] sm:$0xff]
    %v1813 = vld [vmem:[#allocation2 + $0xa8c] sm:$0xff]
    %v1814 = vld [vmem:[#allocation2 + $0xa94] sm:$0xff]
    %v1815 = vld [vmem:[#allocation2 + $0xa9c] sm:$0xff]
    %v1816 = vld [vmem:[#allocation2 + $0xaa4] sm:$0xff]
    %v1817 = vld [vmem:[#allocation2 + $0xab0] sm:$0xff]
    %v1818 = vld [vmem:[#allocation2 + $0xab8] sm:$0xff]
    %v1819 = vld [vmem:[#allocation2 + $0xac0] sm:$0xff]
    %v1820 = vld [vmem:[#allocation2 + $0xac8] sm:$0xff]
    %v1821 = vld [vmem:[#allocation2 + $0xad4] sm:$0xff]
    %v1822 = vld [vmem:[#allocation2 + $0xadc] sm:$0xff]
    %v1823 = vld [vmem:[#allocation2 + $0xae4] sm:$0xff]
    %v1824 = vld [vmem:[#allocation2 + $0xaec] sm:$0xff]
    %v1825 = vld [vmem:[#allocation2 + $0xaf8] sm:$0xff]
    %v1826 = vld [vmem:[#allocation2 + $0xb00] sm:$0xff]
    %v1827 = vld [vmem:[#allocation2 + $0xb08] sm:$0xff]
    %v1828 = vld [vmem:[#allocation2 + $0xb10] sm:$0xff]
    %v1829 = vld [vmem:[#allocation2 + $0xb1c] sm:$0xff]
    %v1830 = vld [vmem:[#allocation2 + $0xb24] sm:$0xff]
    %v1831 = vld [vmem:[#allocation2 + $0xb2c] sm:$0xff]
    %v1832 = vld [vmem:[#allocation2 + $0xb34] sm:$0xff]
    %v1833 = vld [vmem:[#allocation2 + $0xb40] sm:$0xff]
    %v1834 = vld [vmem:[#allocation2 + $0xb48] sm:$0xff]
    %v1835 = vld [vmem:[#allocation2 + $0xb50] sm:$0xff]
    %v1836 = vld [vmem:[#allocation2 + $0xb58] sm:$0xff]
    %v1837 = vld [vmem:[#allocation2 + $0xb64] sm:$0xff]
    %v1838 = vld [vmem:[#allocation2 + $0xb6c] sm:$0xff]
    %v1839 = vld [vmem:[#allocation2 + $0xb74] sm:$0xff]
    %v1840 = vld [vmem:[#allocation2 + $0xb7c] sm:$0xff]
    %v1841 = vld [vmem:[#allocation2 + $0xb88] sm:$0xff]
    %v1842 = vld [vmem:[#allocation2 + $0xb90] sm:$0xff]
    %v1843 = vld [vmem:[#allocation2 + $0xb98] sm:$0xff]
    %v1844 = vld [vmem:[#allocation2 + $0xba0] sm:$0xff]
    %v1845 = vld [vmem:[#allocation2 + $0xbac] sm:$0xff]
    %v1846 = vld [vmem:[#allocation2 + $0xbb4] sm:$0xff]
    %v1847 = vld [vmem:[#allocation2 + $0xbbc] sm:$0xff]
    %v1848 = vld [vmem:[#allocation2 + $0xbc4] sm:$0xff]
    %v1849 = vld [vmem:[#allocation2 + $0xbd0] sm:$0xff]
    %v1850 = vld [vmem:[#allocation2 + $0xbd8] sm:$0xff]
    %v1851 = vld [vmem:[#allocation2 + $0xbe0] sm:$0xff]
    %v1852 = vld [vmem:[#allocation2 + $0xbe8] sm:$0xff]
    %v1853 = vld [vmem:[#allocation2 + $0xbf4] sm:$0xff]
    %v1854 = vld [vmem:[#allocation2 + $0xbfc] sm:$0xff]
    %v1855 = vld [vmem:[#allocation2 + $0xc04] sm:$0xff]
    %v1856 = vld [vmem:[#allocation2 + $0xc0c] sm:$0xff]
    %v1857 = vld [vmem:[#allocation2 + $0xc18] sm:$0xff]
    %v1858 = vld [vmem:[#allocation2 + $0xc20] sm:$0xff]
    %v1859 = vld [vmem:[#allocation2 + $0xc28] sm:$0xff]
    %v1860 = vld [vmem:[#allocation2 + $0xc30] sm:$0xff]
    %v1861 = vld [vmem:[#allocation2 + $0xc3c] sm:$0xff]
    %v1862 = vld [vmem:[#allocation2 + $0xc44] sm:$0xff]
    %v1863 = vld [vmem:[#allocation2 + $0xc4c] sm:$0xff]
    %v1864 = vld [vmem:[#allocation2 + $0xc54] sm:$0xff]
    %v1865 = vld [vmem:[#allocation2 + $0xc60] sm:$0xff]
    %v1866 = vld [vmem:[#allocation2 + $0xc68] sm:$0xff]
    %v1867 = vld [vmem:[#allocation2 + $0xc70] sm:$0xff]
    %v1868 = vld [vmem:[#allocation2 + $0xc78] sm:$0xff]
    %v1869 = vld [vmem:[#allocation2 + $0xc84] sm:$0xff]
    %v1870 = vld [vmem:[#allocation2 + $0xc8c] sm:$0xff]
    %v1871 = vld [vmem:[#allocation2 + $0xc94] sm:$0xff]
    %v1872 = vld [vmem:[#allocation2 + $0xc9c] sm:$0xff]
    %v1873 = vld [vmem:[#allocation2 + $0xca8] sm:$0xff]
    %v1874 = vld [vmem:[#allocation2 + $0xcb0] sm:$0xff]
    %v1875 = vld [vmem:[#allocation2 + $0xcb8] sm:$0xff]
    %v1876 = vld [vmem:[#allocation2 + $0xcc0] sm:$0xff]
    %v1877 = vld [vmem:[#allocation2 + $0xccc] sm:$0xff]
    %v1878 = vld [vmem:[#allocation2 + $0xcd4] sm:$0xff]
    %v1879 = vld [vmem:[#allocation2 + $0xcdc] sm:$0xff]
    %v1880 = vld [vmem:[#allocation2 + $0xce4] sm:$0xff]
    %v1881 = vld [vmem:[#allocation2 + $0xcf0] sm:$0xff]
    %v1882 = vld [vmem:[#allocation2 + $0xcf8] sm:$0xff]
    %v1883 = vld [vmem:[#allocation2 + $0xd00] sm:$0xff]
    %v1884 = vld [vmem:[#allocation2 + $0xd08] sm:$0xff]
    %v1885 = vld [vmem:[#allocation2 + $0xd14] sm:$0xff]
    %v1886 = vld [vmem:[#allocation2 + $0xd1c] sm:$0xff]
    %v1887 = vld [vmem:[#allocation2 + $0xd24] sm:$0xff]
    %v1888 = vld [vmem:[#allocation2 + $0xd2c] sm:$0xff]
    %v1889 = vld [vmem:[#allocation2 + $0xd38] sm:$0xff]
    %v1890 = vld [vmem:[#allocation2 + $0xd40] sm:$0xff]
    %v1891 = vld [vmem:[#allocation2 + $0xd48] sm:$0xff]
    %v1892 = vld [vmem:[#allocation2 + $0xd50] sm:$0xff]
    %v1893 = vld [vmem:[#allocation2 + $0xd5c] sm:$0xff]
    %v1894 = vld [vmem:[#allocation2 + $0xd64] sm:$0xff]
    %v1895 = vld [vmem:[#allocation2 + $0xd6c] sm:$0xff]
    %v1896 = vld [vmem:[#allocation2 + $0xd74] sm:$0xff]
    %v1897 = vld [vmem:[#allocation2 + $0xd80] sm:$0xff]
    %v1898 = vld [vmem:[#allocation2 + $0xd88] sm:$0xff]
    %v1899 = vld [vmem:[#allocation2 + $0xd90] sm:$0xff]
    %v1900 = vld [vmem:[#allocation2 + $0xd98] sm:$0xff]
    %v1901 = vld [vmem:[#allocation2 + $0xda4] sm:$0xff]
    %v1902 = vld [vmem:[#allocation2 + $0xdac] sm:$0xff]
    %v1903 = vld [vmem:[#allocation2 + $0xdb4] sm:$0xff]
    %v1904 = vld [vmem:[#allocation2 + $0xdbc] sm:$0xff]
    %v1905 = vld [vmem:[#allocation2 + $0xdc8] sm:$0xff]
    %v1906 = vld [vmem:[#allocation2 + $0xdd0] sm:$0xff]
    %v1907 = vld [vmem:[#allocation2 + $0xdd8] sm:$0xff]
    %v1908 = vld [vmem:[#allocation2 + $0xde0] sm:$0xff]
    %v1909 = vld [vmem:[#allocation2 + $0xdec] sm:$0xff]
    %v1910 = vld [vmem:[#allocation2 + $0xdf4] sm:$0xff]
    %v1911 = vld [vmem:[#allocation2 + $0xdfc] sm:$0xff]
    %v1912 = vld [vmem:[#allocation2 + $0xe04] sm:$0xff]
    %v1913 = vld [vmem:[#allocation2 + $0xe10] sm:$0xff]
    %v1914 = vld [vmem:[#allocation2 + $0xe18] sm:$0xff]
    %v1915 = vld [vmem:[#allocation2 + $0xe20] sm:$0xff]
    %v1916 = vld [vmem:[#allocation2 + $0xe28] sm:$0xff]
    %v1917 = vld [vmem:[#allocation2 + $0xe34] sm:$0xff]
    %v1918 = vld [vmem:[#allocation2 + $0xe3c] sm:$0xff]
    %v1919 = vld [vmem:[#allocation2 + $0xe44] sm:$0xff]
    %v1920 = vld [vmem:[#allocation2 + $0xe4c] sm:$0xff]
    %v1921 = vld [vmem:[#allocation2 + $0xe58] sm:$0xff]
    %v1922 = vld [vmem:[#allocation2 + $0xe60] sm:$0xff]
    %v1923 = vld [vmem:[#allocation2 + $0xe68] sm:$0xff]
    %v1924 = vld [vmem:[#allocation2 + $0xe70] sm:$0xff]
    %v1925 = vld [vmem:[#allocation2 + $0xe7c] sm:$0xff]
    %v1926 = vld [vmem:[#allocation2 + $0xe84] sm:$0xff]
    %v1927 = vld [vmem:[#allocation2 + $0xe8c] sm:$0xff]
    %v1928 = vld [vmem:[#allocation2 + $0xe94] sm:$0xff]
    %v1929 = vld [vmem:[#allocation2 + $0xea0] sm:$0xff]
    %v1930 = vld [vmem:[#allocation2 + $0xea8] sm:$0xff]
    %v1931 = vld [vmem:[#allocation2 + $0xeb0] sm:$0xff]
    %v1932 = vld [vmem:[#allocation2 + $0xeb8] sm:$0xff]
    %v1933 = vld [vmem:[#allocation2 + $0xec4] sm:$0xff]
    %v1934 = vld [vmem:[#allocation2 + $0xecc] sm:$0xff]
    %v1935 = vld [vmem:[#allocation2 + $0xed4] sm:$0xff]
    %v1936 = vld [vmem:[#allocation2 + $0xedc] sm:$0xff]
    %v1937 = vld [vmem:[#allocation2 + $0xee8] sm:$0xff]
    %v1938 = vld [vmem:[#allocation2 + $0xef0] sm:$0xff]
    %v1939 = vld [vmem:[#allocation2 + $0xef8] sm:$0xff]
    %v1940 = vld [vmem:[#allocation2 + $0xf00] sm:$0xff]
    %v1941 = vld [vmem:[#allocation2 + $0xf0c] sm:$0xff]
    %v1942 = vld [vmem:[#allocation2 + $0xf14] sm:$0xff]
    %v1943 = vld [vmem:[#allocation2 + $0xf1c] sm:$0xff]
    %v1944 = vld [vmem:[#allocation2 + $0xf24] sm:$0xff]
    %v1945 = vld [vmem:[#allocation2 + $0xf30] sm:$0xff]
    %v1946 = vld [vmem:[#allocation2 + $0xf38] sm:$0xff]
    %v1947 = vld [vmem:[#allocation2 + $0xf40] sm:$0xff]
    %v1948 = vld [vmem:[#allocation2 + $0xf48] sm:$0xff]
    %v1949 = vld [vmem:[#allocation2 + $0xf54] sm:$0xff]
    %v1950 = vld [vmem:[#allocation2 + $0xf5c] sm:$0xff]
    %v1951 = vld [vmem:[#allocation2 + $0xf64] sm:$0xff]
    %v1952 = vld [vmem:[#allocation2 + $0xf6c] sm:$0xff]
    %v1953 = vld [vmem:[#allocation2 + $0xf78] sm:$0xff]
    %v1954 = vld [vmem:[#allocation2 + $0xf80] sm:$0xff]
    %v1955 = vld [vmem:[#allocation2 + $0xf88] sm:$0xff]
    %v1956 = vld [vmem:[#allocation2 + $0xf90] sm:$0xff]
    %v1957 = vld [vmem:[#allocation2 + $0xf9c] sm:$0xff]
    %v1958 = vld [vmem:[#allocation2 + $0xfa4] sm:$0xff]
    %v1959 = vld [vmem:[#allocation2 + $0xfac] sm:$0xff]
    %v1960 = vld [vmem:[#allocation2 + $0xfb4] sm:$0xff]
    %v1961 = vld [vmem:[#allocation2 + $0xfc0] sm:$0xff]
    %v1962 = vld [vmem:[#allocation2 + $0xfc8] sm:$0xff]
    %v1963 = vld [vmem:[#allocation2 + $0xfd0] sm:$0xff]
    %v1964 = vld [vmem:[#allocation2 + $0xfd8] sm:$0xff]
    %v1965 = vld [vmem:[#allocation2 + $0xfe4] sm:$0xff]
    %v1966 = vld [vmem:[#allocation2 + $0xfec] sm:$0xff]
    %v1967 = vld [vmem:[#allocation2 + $0xff4] sm:$0xff]
    %v1968 = vld [vmem:[#allocation2 + $0xffc] sm:$0xff]
    %v1969 = vld [vmem:[#allocation2 + $0x1008] sm:$0xff]
    %v1970 = vld [vmem:[#allocation2 + $0x1010] sm:$0xff]
    %v1971 = vld [vmem:[#allocation2 + $0x1018] sm:$0xff]
    %v1972 = vld [vmem:[#allocation2 + $0x1020] sm:$0xff]
    %v1973 = vld [vmem:[#allocation2 + $0x102c] sm:$0xff]
    %v1974 = vld [vmem:[#allocation2 + $0x1034] sm:$0xff]
    %v1975 = vld [vmem:[#allocation2 + $0x103c] sm:$0xff]
    %v1976 = vld [vmem:[#allocation2 + $0x1044] sm:$0xff]
    %v1977 = vld [vmem:[#allocation2 + $0x1050] sm:$0xff]
    %v1978 = vld [vmem:[#allocation2 + $0x1058] sm:$0xff]
    %v1979 = vld [vmem:[#allocation2 + $0x1060] sm:$0xff]
    %v1980 = vld [vmem:[#allocation2 + $0x1068] sm:$0xff]
    %v1981 = vld [vmem:[#allocation2 + $0x1074] sm:$0xff]
    %v1982 = vld [vmem:[#allocation2 + $0x107c] sm:$0xff]
    %v1983 = vld [vmem:[#allocation2 + $0x1084] sm:$0xff]
    %v1984 = vld [vmem:[#allocation2 + $0x108c] sm:$0xff]
    %v1985 = vld [vmem:[#allocation2 + $0x1098] sm:$0xff]
    %v1986 = vld [vmem:[#allocation2 + $0x10a0] sm:$0xff]
    %v1987 = vld [vmem:[#allocation2 + $0x10a8] sm:$0xff]
    %v1988 = vld [vmem:[#allocation2 + $0x10b0] sm:$0xff]
    %v1989 = vld [vmem:[#allocation2 + $0x10bc] sm:$0xff]
    %v1990 = vld [vmem:[#allocation2 + $0x10c4] sm:$0xff]
    %v1991 = vld [vmem:[#allocation2 + $0x10cc] sm:$0xff]
    %v1992 = vld [vmem:[#allocation2 + $0x10d4] sm:$0xff]
    %v1993 = vld [vmem:[#allocation2 + $0x10e0] sm:$0xff]
    %v1994 = vld [vmem:[#allocation2 + $0x10e8] sm:$0xff]
    %v1995 = vld [vmem:[#allocation2 + $0x10f0] sm:$0xff]
    %v1996 = vld [vmem:[#allocation2 + $0x10f8] sm:$0xff]
    %v1997 = vld [vmem:[#allocation2 + $0x1104] sm:$0xff]
    %v1998 = vld [vmem:[#allocation2 + $0x110c] sm:$0xff]
    %v1999 = vld [vmem:[#allocation2 + $0x1114] sm:$0xff]
    %v2000 = vld [vmem:[#allocation2 + $0x111c] sm:$0xff]
    %v2001 = vld [vmem:[#allocation2 + $0x1128] sm:$0xff]
    %v2002 = vld [vmem:[#allocation2 + $0x1130] sm:$0xff]
    %v2003 = vld [vmem:[#allocation2 + $0x1138] sm:$0xff]
    %v2004 = vld [vmem:[#allocation2 + $0x1140] sm:$0xff]
    %v2005 = vld [vmem:[#allocation2 + $0x114c] sm:$0xff]
    %v2006 = vld [vmem:[#allocation2 + $0x1154] sm:$0xff]
    %v2007 = vld [vmem:[#allocation2 + $0x115c] sm:$0xff]
    %v2008 = vld [vmem:[#allocation2 + $0x1164] sm:$0xff]
    %v2009 = vld [vmem:[#allocation2 + $0x1170] sm:$0xff]
    %v2010 = vld [vmem:[#allocation2 + $0x1178] sm:$0xff]
    %v2011 = vld [vmem:[#allocation2 + $0x1180] sm:$0xff]
    %v2012 = vld [vmem:[#allocation2 + $0x1188] sm:$0xff]
    %v2013 = vld [vmem:[#allocation2 + $0x1194] sm:$0xff]
    %v2014 = vld [vmem:[#allocation2 + $0x119c] sm:$0xff]
    %v2015 = vld [vmem:[#allocation2 + $0x11a4] sm:$0xff]
    %v2016 = vld [vmem:[#allocation2 + $0x11ac] sm:$0xff]
    %v2017 = vld [vmem:[#allocation2 + $0x11b8] sm:$0xff]
    %v2018 = vld [vmem:[#allocation2 + $0x11c0] sm:$0xff]
    %v2019 = vld [vmem:[#allocation2 + $0x11c8] sm:$0xff]
    %v2020 = vld [vmem:[#allocation2 + $0x11d0] sm:$0xff]
    %v2021 = vld [vmem:[#allocation2 + $0x11dc] sm:$0xff]
    %v2022 = vld [vmem:[#allocation2 + $0x11e4] sm:$0xff]
    %v2023 = vld [vmem:[#allocation2 + $0x11ec] sm:$0xff]
    %v2024 = vld [vmem:[#allocation2 + $0x11f4] sm:$0xff]
    %s2025 = scalar_lea.vmem [#allocation9], 1
    %v2026 = vld [vmem:[%s2025] ss:$4 sm:$0xff]
    %v2028 = vperm.slane %v2026, 0
    %v2029 = vperm.slane %v2026, 1
    %v2030 = vperm.slane %v2026, 2
    %v2031 = vperm.slane %v2026, 3
    %v2032 = vperm.slane %v2026, 4
    %v2033 = vperm.slane %v2026, 5
    %v2034 = vperm.slane %v2026, 6
    %v2035 = vperm.slane %v2026, 7
    %v2556 = vunpack.c.l.b16 %v1513
    %v2557 = vunpack.c.h.b16 %v1513
    %v2558 = vunpack.c.l.b16 %v1514
    %v2559 = vunpack.c.h.b16 %v1514
    %v2560 = vunpack.c.l.b16 %v1515
    %v2561 = vunpack.c.h.b16 %v1515
    %v2562 = vunpack.c.l.b16 %v1516
    %v2563 = vunpack.c.h.b16 %v1516
    %v2564 = vunpack.c.l.b16 %v1517
    %v2565 = vunpack.c.h.b16 %v1517
    %v2566 = vunpack.c.l.b16 %v1518
    %v2567 = vunpack.c.h.b16 %v1518
    %v2568 = vunpack.c.l.b16 %v1519
    %v2569 = vunpack.c.h.b16 %v1519
    %v2570 = vunpack.c.l.b16 %v1520
    %v2571 = vunpack.c.h.b16 %v1520
    %v2572 = vunpack.c.l.b16 %v1521
    %v2573 = vunpack.c.h.b16 %v1521
    %v2574 = vunpack.c.l.b16 %v1522
    %v2575 = vunpack.c.h.b16 %v1522
    %v2576 = vunpack.c.l.b16 %v1523
    %v2577 = vunpack.c.h.b16 %v1523
    %v2578 = vunpack.c.l.b16 %v1524
    %v2579 = vunpack.c.h.b16 %v1524
    %v2580 = vunpack.c.l.b16 %v1525
    %v2581 = vunpack.c.h.b16 %v1525
    %v2582 = vunpack.c.l.b16 %v1526
    %v2583 = vunpack.c.h.b16 %v1526
    %v2584 = vunpack.c.l.b16 %v1527
    %v2585 = vunpack.c.h.b16 %v1527
    %v2586 = vunpack.c.l.b16 %v1528
    %v2587 = vunpack.c.h.b16 %v1528
    %v2588 = vunpack.c.l.b16 %v1529
    %v2589 = vunpack.c.h.b16 %v1529
    %v2590 = vunpack.c.l.b16 %v1530
    %v2591 = vunpack.c.h.b16 %v1530
    %v2592 = vunpack.c.l.b16 %v1531
    %v2593 = vunpack.c.h.b16 %v1531
    %v2594 = vunpack.c.l.b16 %v1532
    %v2595 = vunpack.c.h.b16 %v1532
    %v2596 = vunpack.c.l.b16 %v1533
    %v2597 = vunpack.c.h.b16 %v1533
    %v2598 = vunpack.c.l.b16 %v1534
    %v2599 = vunpack.c.h.b16 %v1534
    %v2600 = vunpack.c.l.b16 %v1535
    %v2601 = vunpack.c.h.b16 %v1535
    %v2602 = vunpack.c.l.b16 %v1536
    %v2603 = vunpack.c.h.b16 %v1536
    %v2604 = vunpack.c.l.b16 %v1537
    %v2605 = vunpack.c.h.b16 %v1537
    %v2606 = vunpack.c.l.b16 %v1538
    %v2607 = vunpack.c.h.b16 %v1538
    %v2608 = vunpack.c.l.b16 %v1539
    %v2609 = vunpack.c.h.b16 %v1539
    %v2610 = vunpack.c.l.b16 %v1540
    %v2611 = vunpack.c.h.b16 %v1540
    %v2612 = vunpack.c.l.b16 %v1541
    %v2613 = vunpack.c.h.b16 %v1541
    %v2614 = vunpack.c.l.b16 %v1542
    %v2615 = vunpack.c.h.b16 %v1542
    %v2616 = vunpack.c.l.b16 %v1543
    %v2617 = vunpack.c.h.b16 %v1543
    %v2618 = vunpack.c.l.b16 %v1544
    %v2619 = vunpack.c.h.b16 %v1544
    %v2620 = vunpack.c.l.b16 %v1545
    %v2621 = vunpack.c.h.b16 %v1545
    %v2622 = vunpack.c.l.b16 %v1546
    %v2623 = vunpack.c.h.b16 %v1546
    %v2624 = vunpack.c.l.b16 %v1547
    %v2625 = vunpack.c.h.b16 %v1547
    %v2626 = vunpack.c.l.b16 %v1548
    %v2627 = vunpack.c.h.b16 %v1548
    %v2628 = vunpack.c.l.b16 %v1549
    %v2629 = vunpack.c.h.b16 %v1549
    %v2630 = vunpack.c.l.b16 %v1550
    %v2631 = vunpack.c.h.b16 %v1550
    %v2632 = vunpack.c.l.b16 %v1551
    %v2633 = vunpack.c.h.b16 %v1551
    %v2634 = vunpack.c.l.b16 %v1552
    %v2635 = vunpack.c.h.b16 %v1552
    %v2636 = vunpack.c.l.b16 %v1553
    %v2637 = vunpack.c.h.b16 %v1553
    %v2638 = vunpack.c.l.b16 %v1554
    %v2639 = vunpack.c.h.b16 %v1554
    %v2640 = vunpack.c.l.b16 %v1555
    %v2641 = vunpack.c.h.b16 %v1555
    %v2642 = vunpack.c.l.b16 %v1556
    %v2643 = vunpack.c.h.b16 %v1556
    %v2644 = vunpack.c.l.b16 %v1557
    %v2645 = vunpack.c.h.b16 %v1557
    %v2646 = vunpack.c.l.b16 %v1558
    %v2647 = vunpack.c.h.b16 %v1558
    %v2648 = vunpack.c.l.b16 %v1559
    %v2649 = vunpack.c.h.b16 %v1559
    %v2650 = vunpack.c.l.b16 %v1560
    %v2651 = vunpack.c.h.b16 %v1560
    %v2652 = vunpack.c.l.b16 %v1561
    %v2653 = vunpack.c.h.b16 %v1561
    %v2654 = vunpack.c.l.b16 %v1562
    %v2655 = vunpack.c.h.b16 %v1562
    %v2656 = vunpack.c.l.b16 %v1563
    %v2657 = vunpack.c.h.b16 %v1563
    %v2658 = vunpack.c.l.b16 %v1564
    %v2659 = vunpack.c.h.b16 %v1564
    %v2660 = vunpack.c.l.b16 %v1565
    %v2661 = vunpack.c.h.b16 %v1565
    %v2662 = vunpack.c.l.b16 %v1566
    %v2663 = vunpack.c.h.b16 %v1566
    %v2664 = vunpack.c.l.b16 %v1567
    %v2665 = vunpack.c.h.b16 %v1567
    %v2666 = vunpack.c.l.b16 %v1568
    %v2667 = vunpack.c.h.b16 %v1568
    %v2668 = vunpack.c.l.b16 %v1569
    %v2669 = vunpack.c.h.b16 %v1569
    %v2670 = vunpack.c.l.b16 %v1570
    %v2671 = vunpack.c.h.b16 %v1570
    %v2672 = vunpack.c.l.b16 %v1571
    %v2673 = vunpack.c.h.b16 %v1571
    %v2674 = vunpack.c.l.b16 %v1572
    %v2675 = vunpack.c.h.b16 %v1572
    %v2676 = vunpack.c.l.b16 %v1573
    %v2677 = vunpack.c.h.b16 %v1573
    %v2678 = vunpack.c.l.b16 %v1574
    %v2679 = vunpack.c.h.b16 %v1574
    %v2680 = vunpack.c.l.b16 %v1575
    %v2681 = vunpack.c.h.b16 %v1575
    %v2682 = vunpack.c.l.b16 %v1576
    %v2683 = vunpack.c.h.b16 %v1576
    %v2684 = vunpack.c.l.b16 %v1577
    %v2685 = vunpack.c.h.b16 %v1577
    %v2686 = vunpack.c.l.b16 %v1578
    %v2687 = vunpack.c.h.b16 %v1578
    %v2688 = vunpack.c.l.b16 %v1579
    %v2689 = vunpack.c.h.b16 %v1579
    %v2690 = vunpack.c.l.b16 %v1580
    %v2691 = vunpack.c.h.b16 %v1580
    %v2692 = vunpack.c.l.b16 %v1581
    %v2693 = vunpack.c.h.b16 %v1581
    %v2694 = vunpack.c.l.b16 %v1582
    %v2695 = vunpack.c.h.b16 %v1582
    %v2696 = vunpack.c.l.b16 %v1583
    %v2697 = vunpack.c.h.b16 %v1583
    %v2698 = vunpack.c.l.b16 %v1584
    %v2699 = vunpack.c.h.b16 %v1584
    %v2700 = vunpack.c.l.b16 %v1585
    %v2701 = vunpack.c.h.b16 %v1585
    %v2702 = vunpack.c.l.b16 %v1586
    %v2703 = vunpack.c.h.b16 %v1586
    %v2704 = vunpack.c.l.b16 %v1587
    %v2705 = vunpack.c.h.b16 %v1587
    %v2706 = vunpack.c.l.b16 %v1588
    %v2707 = vunpack.c.h.b16 %v1588
    %v2708 = vunpack.c.l.b16 %v1589
    %v2709 = vunpack.c.h.b16 %v1589
    %v2710 = vunpack.c.l.b16 %v1590
    %v2711 = vunpack.c.h.b16 %v1590
    %v2712 = vunpack.c.l.b16 %v1591
    %v2713 = vunpack.c.h.b16 %v1591
    %v2714 = vunpack.c.l.b16 %v1592
    %v2715 = vunpack.c.h.b16 %v1592
    %v2716 = vunpack.c.l.b16 %v1593
    %v2717 = vunpack.c.h.b16 %v1593
    %v2718 = vunpack.c.l.b16 %v1594
    %v2719 = vunpack.c.h.b16 %v1594
    %v2720 = vunpack.c.l.b16 %v1595
    %v2721 = vunpack.c.h.b16 %v1595
    %v2722 = vunpack.c.l.b16 %v1596
    %v2723 = vunpack.c.h.b16 %v1596
    %v2724 = vunpack.c.l.b16 %v1597
    %v2725 = vunpack.c.h.b16 %v1597
    %v2726 = vunpack.c.l.b16 %v1598
    %v2727 = vunpack.c.h.b16 %v1598
    %v2728 = vunpack.c.l.b16 %v1599
    %v2729 = vunpack.c.h.b16 %v1599
    %v2730 = vunpack.c.l.b16 %v1600
    %v2731 = vunpack.c.h.b16 %v1600
    %v2732 = vunpack.c.l.b16 %v1601
    %v2733 = vunpack.c.h.b16 %v1601
    %v2734 = vunpack.c.l.b16 %v1602
    %v2735 = vunpack.c.h.b16 %v1602
    %v2736 = vunpack.c.l.b16 %v1603
    %v2737 = vunpack.c.h.b16 %v1603
    %v2738 = vunpack.c.l.b16 %v1604
    %v2739 = vunpack.c.h.b16 %v1604
    %v2740 = vunpack.c.l.b16 %v1605
    %v2741 = vunpack.c.h.b16 %v1605
    %v2742 = vunpack.c.l.b16 %v1606
    %v2743 = vunpack.c.h.b16 %v1606
    %v2744 = vunpack.c.l.b16 %v1607
    %v2745 = vunpack.c.h.b16 %v1607
    %v2746 = vunpack.c.l.b16 %v1608
    %v2747 = vunpack.c.h.b16 %v1608
    %v2748 = vunpack.c.l.b16 %v1609
    %v2749 = vunpack.c.h.b16 %v1609
    %v2750 = vunpack.c.l.b16 %v1610
    %v2751 = vunpack.c.h.b16 %v1610
    %v2752 = vunpack.c.l.b16 %v1611
    %v2753 = vunpack.c.h.b16 %v1611
    %v2754 = vunpack.c.l.b16 %v1612
    %v2755 = vunpack.c.h.b16 %v1612
    %v2756 = vunpack.c.l.b16 %v1613
    %v2757 = vunpack.c.h.b16 %v1613
    %v2758 = vunpack.c.l.b16 %v1614
    %v2759 = vunpack.c.h.b16 %v1614
    %v2760 = vunpack.c.l.b16 %v1615
    %v2761 = vunpack.c.h.b16 %v1615
    %v2762 = vunpack.c.l.b16 %v1616
    %v2763 = vunpack.c.h.b16 %v1616
    %v2764 = vunpack.c.l.b16 %v1617
    %v2765 = vunpack.c.h.b16 %v1617
    %v2766 = vunpack.c.l.b16 %v1618
    %v2767 = vunpack.c.h.b16 %v1618
    %v2768 = vunpack.c.l.b16 %v1619
    %v2769 = vunpack.c.h.b16 %v1619
    %v2770 = vunpack.c.l.b16 %v1620
    %v2771 = vunpack.c.h.b16 %v1620
    %v2772 = vunpack.c.l.b16 %v1621
    %v2773 = vunpack.c.h.b16 %v1621
    %v2774 = vunpack.c.l.b16 %v1622
    %v2775 = vunpack.c.h.b16 %v1622
    %v2776 = vunpack.c.l.b16 %v1623
    %v2777 = vunpack.c.h.b16 %v1623
    %v2778 = vunpack.c.l.b16 %v1624
    %v2779 = vunpack.c.h.b16 %v1624
    %v2780 = vunpack.c.l.b16 %v1625
    %v2781 = vunpack.c.h.b16 %v1625
    %v2782 = vunpack.c.l.b16 %v1626
    %v2783 = vunpack.c.h.b16 %v1626
    %v2784 = vunpack.c.l.b16 %v1627
    %v2785 = vunpack.c.h.b16 %v1627
    %v2786 = vunpack.c.l.b16 %v1628
    %v2787 = vunpack.c.h.b16 %v1628
    %v2788 = vunpack.c.l.b16 %v1629
    %v2789 = vunpack.c.h.b16 %v1629
    %v2790 = vunpack.c.l.b16 %v1630
    %v2791 = vunpack.c.h.b16 %v1630
    %v2792 = vunpack.c.l.b16 %v1631
    %v2793 = vunpack.c.h.b16 %v1631
    %v2794 = vunpack.c.l.b16 %v1632
    %v2795 = vunpack.c.h.b16 %v1632
    %v2796 = vunpack.c.l.b16 %v1633
    %v2797 = vunpack.c.h.b16 %v1633
    %v2798 = vunpack.c.l.b16 %v1634
    %v2799 = vunpack.c.h.b16 %v1634
    %v2800 = vunpack.c.l.b16 %v1635
    %v2801 = vunpack.c.h.b16 %v1635
    %v2802 = vunpack.c.l.b16 %v1636
    %v2803 = vunpack.c.h.b16 %v1636
    %v2804 = vunpack.c.l.b16 %v1637
    %v2805 = vunpack.c.h.b16 %v1637
    %v2806 = vunpack.c.l.b16 %v1638
    %v2807 = vunpack.c.h.b16 %v1638
    %v2808 = vunpack.c.l.b16 %v1639
    %v2809 = vunpack.c.h.b16 %v1639
    %v2810 = vunpack.c.l.b16 %v1640
    %v2811 = vunpack.c.h.b16 %v1640
    %v2812 = vunpack.c.l.b16 %v1641
    %v2813 = vunpack.c.h.b16 %v1641
    %v2814 = vunpack.c.l.b16 %v1642
    %v2815 = vunpack.c.h.b16 %v1642
    %v2816 = vunpack.c.l.b16 %v1643
    %v2817 = vunpack.c.h.b16 %v1643
    %v2818 = vunpack.c.l.b16 %v1644
    %v2819 = vunpack.c.h.b16 %v1644
    %v2820 = vunpack.c.l.b16 %v1645
    %v2821 = vunpack.c.h.b16 %v1645
    %v2822 = vunpack.c.l.b16 %v1646
    %v2823 = vunpack.c.h.b16 %v1646
    %v2824 = vunpack.c.l.b16 %v1647
    %v2825 = vunpack.c.h.b16 %v1647
    %v2826 = vunpack.c.l.b16 %v1648
    %v2827 = vunpack.c.h.b16 %v1648
    %v2828 = vunpack.c.l.b16 %v1649
    %v2829 = vunpack.c.h.b16 %v1649
    %v2830 = vunpack.c.l.b16 %v1650
    %v2831 = vunpack.c.h.b16 %v1650
    %v2832 = vunpack.c.l.b16 %v1651
    %v2833 = vunpack.c.h.b16 %v1651
    %v2834 = vunpack.c.l.b16 %v1652
    %v2835 = vunpack.c.h.b16 %v1652
    %v2836 = vunpack.c.l.b16 %v1653
    %v2837 = vunpack.c.h.b16 %v1653
    %v2838 = vunpack.c.l.b16 %v1654
    %v2839 = vunpack.c.h.b16 %v1654
    %v2840 = vunpack.c.l.b16 %v1655
    %v2841 = vunpack.c.h.b16 %v1655
    %v2842 = vunpack.c.l.b16 %v1656
    %v2843 = vunpack.c.h.b16 %v1656
    %v2844 = vunpack.c.l.b16 %v1657
    %v2845 = vunpack.c.h.b16 %v1657
    %v2846 = vunpack.c.l.b16 %v1658
    %v2847 = vunpack.c.h.b16 %v1658
    %v2848 = vunpack.c.l.b16 %v1659
    %v2849 = vunpack.c.h.b16 %v1659
    %v2850 = vunpack.c.l.b16 %v1660
    %v2851 = vunpack.c.h.b16 %v1660
    %v2852 = vunpack.c.l.b16 %v1661
    %v2853 = vunpack.c.h.b16 %v1661
    %v2854 = vunpack.c.l.b16 %v1662
    %v2855 = vunpack.c.h.b16 %v1662
    %v2856 = vunpack.c.l.b16 %v1663
    %v2857 = vunpack.c.h.b16 %v1663
    %v2858 = vunpack.c.l.b16 %v1664
    %v2859 = vunpack.c.h.b16 %v1664
    %v2860 = vunpack.c.l.b16 %v1665
    %v2861 = vunpack.c.h.b16 %v1665
    %v2862 = vunpack.c.l.b16 %v1666
    %v2863 = vunpack.c.h.b16 %v1666
    %v2864 = vunpack.c.l.b16 %v1667
    %v2865 = vunpack.c.h.b16 %v1667
    %v2866 = vunpack.c.l.b16 %v1668
    %v2867 = vunpack.c.h.b16 %v1668
    %v2868 = vunpack.c.l.b16 %v1669
    %v2869 = vunpack.c.h.b16 %v1669
    %v2870 = vunpack.c.l.b16 %v1670
    %v2871 = vunpack.c.h.b16 %v1670
    %v2872 = vunpack.c.l.b16 %v1671
    %v2873 = vunpack.c.h.b16 %v1671
    %v2874 = vunpack.c.l.b16 %v1672
    %v2875 = vunpack.c.h.b16 %v1672
    %v2876 = vunpack.c.l.b16 %v1673
    %v2877 = vunpack.c.h.b16 %v1673
    %v2878 = vunpack.c.l.b16 %v1674
    %v2879 = vunpack.c.h.b16 %v1674
    %v2880 = vunpack.c.l.b16 %v1675
    %v2881 = vunpack.c.h.b16 %v1675
    %v2882 = vunpack.c.l.b16 %v1676
    %v2883 = vunpack.c.h.b16 %v1676
    %v2884 = vunpack.c.l.b16 %v1677
    %v2885 = vunpack.c.h.b16 %v1677
    %v2886 = vunpack.c.l.b16 %v1678
    %v2887 = vunpack.c.h.b16 %v1678
    %v2888 = vunpack.c.l.b16 %v1679
    %v2889 = vunpack.c.h.b16 %v1679
    %v2890 = vunpack.c.l.b16 %v1680
    %v2891 = vunpack.c.h.b16 %v1680
    %v2892 = vunpack.c.l.b16 %v1681
    %v2893 = vunpack.c.h.b16 %v1681
    %v2894 = vunpack.c.l.b16 %v1682
    %v2895 = vunpack.c.h.b16 %v1682
    %v2896 = vunpack.c.l.b16 %v1683
    %v2897 = vunpack.c.h.b16 %v1683
    %v2898 = vunpack.c.l.b16 %v1684
    %v2899 = vunpack.c.h.b16 %v1684
    %v2900 = vunpack.c.l.b16 %v1685
    %v2901 = vunpack.c.h.b16 %v1685
    %v2902 = vunpack.c.l.b16 %v1686
    %v2903 = vunpack.c.h.b16 %v1686
    %v2904 = vunpack.c.l.b16 %v1687
    %v2905 = vunpack.c.h.b16 %v1687
    %v2906 = vunpack.c.l.b16 %v1688
    %v2907 = vunpack.c.h.b16 %v1688
    %v2908 = vunpack.c.l.b16 %v1689
    %v2909 = vunpack.c.h.b16 %v1689
    %v2910 = vunpack.c.l.b16 %v1690
    %v2911 = vunpack.c.h.b16 %v1690
    %v2912 = vunpack.c.l.b16 %v1691
    %v2913 = vunpack.c.h.b16 %v1691
    %v2914 = vunpack.c.l.b16 %v1692
    %v2915 = vunpack.c.h.b16 %v1692
    %v2916 = vunpack.c.l.b16 %v1693
    %v2917 = vunpack.c.h.b16 %v1693
    %v2918 = vunpack.c.l.b16 %v1694
    %v2919 = vunpack.c.h.b16 %v1694
    %v2920 = vunpack.c.l.b16 %v1695
    %v2921 = vunpack.c.h.b16 %v1695
    %v2922 = vunpack.c.l.b16 %v1696
    %v2923 = vunpack.c.h.b16 %v1696
    %v2924 = vunpack.c.l.b16 %v1697
    %v2925 = vunpack.c.h.b16 %v1697
    %v2926 = vunpack.c.l.b16 %v1698
    %v2927 = vunpack.c.h.b16 %v1698
    %v2928 = vunpack.c.l.b16 %v1699
    %v2929 = vunpack.c.h.b16 %v1699
    %v2930 = vunpack.c.l.b16 %v1700
    %v2931 = vunpack.c.h.b16 %v1700
    %v2932 = vunpack.c.l.b16 %v1701
    %v2933 = vunpack.c.h.b16 %v1701
    %v2934 = vunpack.c.l.b16 %v1702
    %v2935 = vunpack.c.h.b16 %v1702
    %v2936 = vunpack.c.l.b16 %v1703
    %v2937 = vunpack.c.h.b16 %v1703
    %v2938 = vunpack.c.l.b16 %v1704
    %v2939 = vunpack.c.h.b16 %v1704
    %v2940 = vunpack.c.l.b16 %v1705
    %v2941 = vunpack.c.h.b16 %v1705
    %v2942 = vunpack.c.l.b16 %v1706
    %v2943 = vunpack.c.h.b16 %v1706
    %v2944 = vunpack.c.l.b16 %v1707
    %v2945 = vunpack.c.h.b16 %v1707
    %v2946 = vunpack.c.l.b16 %v1708
    %v2947 = vunpack.c.h.b16 %v1708
    %v2948 = vunpack.c.l.b16 %v1709
    %v2949 = vunpack.c.h.b16 %v1709
    %v2950 = vunpack.c.l.b16 %v1710
    %v2951 = vunpack.c.h.b16 %v1710
    %v2952 = vunpack.c.l.b16 %v1711
    %v2953 = vunpack.c.h.b16 %v1711
    %v2954 = vunpack.c.l.b16 %v1712
    %v2955 = vunpack.c.h.b16 %v1712
    %v2956 = vunpack.c.l.b16 %v1713
    %v2957 = vunpack.c.h.b16 %v1713
    %v2958 = vunpack.c.l.b16 %v1714
    %v2959 = vunpack.c.h.b16 %v1714
    %v2960 = vunpack.c.l.b16 %v1715
    %v2961 = vunpack.c.h.b16 %v1715
    %v2962 = vunpack.c.l.b16 %v1716
    %v2963 = vunpack.c.h.b16 %v1716
    %v2964 = vunpack.c.l.b16 %v1717
    %v2965 = vunpack.c.h.b16 %v1717
    %v2966 = vunpack.c.l.b16 %v1718
    %v2967 = vunpack.c.h.b16 %v1718
    %v2968 = vunpack.c.l.b16 %v1719
    %v2969 = vunpack.c.h.b16 %v1719
    %v2970 = vunpack.c.l.b16 %v1720
    %v2971 = vunpack.c.h.b16 %v1720
    %v2972 = vunpack.c.l.b16 %v1721
    %v2973 = vunpack.c.h.b16 %v1721
    %v2974 = vunpack.c.l.b16 %v1722
    %v2975 = vunpack.c.h.b16 %v1722
    %v2976 = vunpack.c.l.b16 %v1723
    %v2977 = vunpack.c.h.b16 %v1723
    %v2978 = vunpack.c.l.b16 %v1724
    %v2979 = vunpack.c.h.b16 %v1724
    %v2980 = vunpack.c.l.b16 %v1725
    %v2981 = vunpack.c.h.b16 %v1725
    %v2982 = vunpack.c.l.b16 %v1726
    %v2983 = vunpack.c.h.b16 %v1726
    %v2984 = vunpack.c.l.b16 %v1727
    %v2985 = vunpack.c.h.b16 %v1727
    %v2986 = vunpack.c.l.b16 %v1728
    %v2987 = vunpack.c.h.b16 %v1728
    %v2988 = vunpack.c.l.b16 %v1729
    %v2989 = vunpack.c.h.b16 %v1729
    %v2990 = vunpack.c.l.b16 %v1730
    %v2991 = vunpack.c.h.b16 %v1730
    %v2992 = vunpack.c.l.b16 %v1731
    %v2993 = vunpack.c.h.b16 %v1731
    %v2994 = vunpack.c.l.b16 %v1732
    %v2995 = vunpack.c.h.b16 %v1732
    %v2996 = vunpack.c.l.b16 %v1733
    %v2997 = vunpack.c.h.b16 %v1733
    %v2998 = vunpack.c.l.b16 %v1734
    %v2999 = vunpack.c.h.b16 %v1734
    %v3000 = vunpack.c.l.b16 %v1735
    %v3001 = vunpack.c.h.b16 %v1735
    %v3002 = vunpack.c.l.b16 %v1736
    %v3003 = vunpack.c.h.b16 %v1736
    %v3004 = vunpack.c.l.b16 %v1737
    %v3005 = vunpack.c.h.b16 %v1737
    %v3006 = vunpack.c.l.b16 %v1738
    %v3007 = vunpack.c.h.b16 %v1738
    %v3008 = vunpack.c.l.b16 %v1739
    %v3009 = vunpack.c.h.b16 %v1739
    %v3010 = vunpack.c.l.b16 %v1740
    %v3011 = vunpack.c.h.b16 %v1740
    %v3012 = vunpack.c.l.b16 %v1741
    %v3013 = vunpack.c.h.b16 %v1741
    %v3014 = vunpack.c.l.b16 %v1742
    %v3015 = vunpack.c.h.b16 %v1742
    %v3016 = vunpack.c.l.b16 %v1743
    %v3017 = vunpack.c.h.b16 %v1743
    %v3018 = vunpack.c.l.b16 %v1744
    %v3019 = vunpack.c.h.b16 %v1744
    %v3020 = vunpack.c.l.b16 %v1745
    %v3021 = vunpack.c.h.b16 %v1745
    %v3022 = vunpack.c.l.b16 %v1746
    %v3023 = vunpack.c.h.b16 %v1746
    %v3024 = vunpack.c.l.b16 %v1747
    %v3025 = vunpack.c.h.b16 %v1747
    %v3026 = vunpack.c.l.b16 %v1748
    %v3027 = vunpack.c.h.b16 %v1748
    %v3028 = vunpack.c.l.b16 %v1749
    %v3029 = vunpack.c.h.b16 %v1749
    %v3030 = vunpack.c.l.b16 %v1750
    %v3031 = vunpack.c.h.b16 %v1750
    %v3032 = vunpack.c.l.b16 %v1751
    %v3033 = vunpack.c.h.b16 %v1751
    %v3034 = vunpack.c.l.b16 %v1752
    %v3035 = vunpack.c.h.b16 %v1752
    %v3036 = vunpack.c.l.b16 %v1753
    %v3037 = vunpack.c.h.b16 %v1753
    %v3038 = vunpack.c.l.b16 %v1754
    %v3039 = vunpack.c.h.b16 %v1754
    %v3040 = vunpack.c.l.b16 %v1755
    %v3041 = vunpack.c.h.b16 %v1755
    %v3042 = vunpack.c.l.b16 %v1756
    %v3043 = vunpack.c.h.b16 %v1756
    %v3044 = vunpack.c.l.b16 %v1757
    %v3045 = vunpack.c.h.b16 %v1757
    %v3046 = vunpack.c.l.b16 %v1758
    %v3047 = vunpack.c.h.b16 %v1758
    %v3048 = vunpack.c.l.b16 %v1759
    %v3049 = vunpack.c.h.b16 %v1759
    %v3050 = vunpack.c.l.b16 %v1760
    %v3051 = vunpack.c.h.b16 %v1760
    %v3052 = vunpack.c.l.b16 %v1761
    %v3053 = vunpack.c.h.b16 %v1761
    %v3054 = vunpack.c.l.b16 %v1762
    %v3055 = vunpack.c.h.b16 %v1762
    %v3056 = vunpack.c.l.b16 %v1763
    %v3057 = vunpack.c.h.b16 %v1763
    %v3058 = vunpack.c.l.b16 %v1764
    %v3059 = vunpack.c.h.b16 %v1764
    %v3060 = vunpack.c.l.b16 %v1765
    %v3061 = vunpack.c.h.b16 %v1765
    %v3062 = vunpack.c.l.b16 %v1766
    %v3063 = vunpack.c.h.b16 %v1766
    %v3064 = vunpack.c.l.b16 %v1767
    %v3065 = vunpack.c.h.b16 %v1767
    %v3066 = vunpack.c.l.b16 %v1768
    %v3067 = vunpack.c.h.b16 %v1768
    %v3068 = vunpack.c.l.b16 %v1769
    %v3069 = vunpack.c.h.b16 %v1769
    %v3070 = vunpack.c.l.b16 %v1770
    %v3071 = vunpack.c.h.b16 %v1770
    %v3072 = vunpack.c.l.b16 %v1771
    %v3073 = vunpack.c.h.b16 %v1771
    %v3074 = vunpack.c.l.b16 %v1772
    %v3075 = vunpack.c.h.b16 %v1772
    %v3076 = vunpack.c.l.b16 %v1773
    %v3077 = vunpack.c.h.b16 %v1773
    %v3078 = vunpack.c.l.b16 %v1774
    %v3079 = vunpack.c.h.b16 %v1774
    %v3080 = vunpack.c.l.b16 %v1775
    %v3081 = vunpack.c.h.b16 %v1775
    %v3082 = vunpack.c.l.b16 %v1776
    %v3083 = vunpack.c.h.b16 %v1776
    %v3084 = vunpack.c.l.b16 %v1777
    %v3085 = vunpack.c.h.b16 %v1777
    %v3086 = vunpack.c.l.b16 %v1778
    %v3087 = vunpack.c.h.b16 %v1778
    %v3088 = vunpack.c.l.b16 %v1779
    %v3089 = vunpack.c.h.b16 %v1779
    %v3090 = vunpack.c.l.b16 %v1780
    %v3091 = vunpack.c.h.b16 %v1780
    %v3092 = vunpack.c.l.b16 %v1781
    %v3093 = vunpack.c.h.b16 %v1781
    %v3094 = vunpack.c.l.b16 %v1782
    %v3095 = vunpack.c.h.b16 %v1782
    %v3096 = vunpack.c.l.b16 %v1783
    %v3097 = vunpack.c.h.b16 %v1783
    %v3098 = vunpack.c.l.b16 %v1784
    %v3099 = vunpack.c.h.b16 %v1784
    %v3100 = vunpack.c.l.b16 %v1785
    %v3101 = vunpack.c.h.b16 %v1785
    %v3102 = vunpack.c.l.b16 %v1786
    %v3103 = vunpack.c.h.b16 %v1786
    %v3104 = vunpack.c.l.b16 %v1787
    %v3105 = vunpack.c.h.b16 %v1787
    %v3106 = vunpack.c.l.b16 %v1788
    %v3107 = vunpack.c.h.b16 %v1788
    %v3108 = vunpack.c.l.b16 %v1789
    %v3109 = vunpack.c.h.b16 %v1789
    %v3110 = vunpack.c.l.b16 %v1790
    %v3111 = vunpack.c.h.b16 %v1790
    %v3112 = vunpack.c.l.b16 %v1791
    %v3113 = vunpack.c.h.b16 %v1791
    %v3114 = vunpack.c.l.b16 %v1792
    %v3115 = vunpack.c.h.b16 %v1792
    %v3116 = vunpack.c.l.b16 %v1793
    %v3117 = vunpack.c.h.b16 %v1793
    %v3118 = vunpack.c.l.b16 %v1794
    %v3119 = vunpack.c.h.b16 %v1794
    %v3120 = vunpack.c.l.b16 %v1795
    %v3121 = vunpack.c.h.b16 %v1795
    %v3122 = vunpack.c.l.b16 %v1796
    %v3123 = vunpack.c.h.b16 %v1796
    %v3124 = vunpack.c.l.b16 %v1797
    %v3125 = vunpack.c.h.b16 %v1797
    %v3126 = vunpack.c.l.b16 %v1798
    %v3127 = vunpack.c.h.b16 %v1798
    %v3128 = vunpack.c.l.b16 %v1799
    %v3129 = vunpack.c.h.b16 %v1799
    %v3130 = vunpack.c.l.b16 %v1800
    %v3131 = vunpack.c.h.b16 %v1800
    %v3132 = vunpack.c.l.b16 %v1801
    %v3133 = vunpack.c.h.b16 %v1801
    %v3134 = vunpack.c.l.b16 %v1802
    %v3135 = vunpack.c.h.b16 %v1802
    %v3136 = vunpack.c.l.b16 %v1803
    %v3137 = vunpack.c.h.b16 %v1803
    %v3138 = vunpack.c.l.b16 %v1804
    %v3139 = vunpack.c.h.b16 %v1804
    %v3140 = vunpack.c.l.b16 %v1805
    %v3141 = vunpack.c.h.b16 %v1805
    %v3142 = vunpack.c.l.b16 %v1806
    %v3143 = vunpack.c.h.b16 %v1806
    %v3144 = vunpack.c.l.b16 %v1807
    %v3145 = vunpack.c.h.b16 %v1807
    %v3146 = vunpack.c.l.b16 %v1808
    %v3147 = vunpack.c.h.b16 %v1808
    %v3148 = vunpack.c.l.b16 %v1809
    %v3149 = vunpack.c.h.b16 %v1809
    %v3150 = vunpack.c.l.b16 %v1810
    %v3151 = vunpack.c.h.b16 %v1810
    %v3152 = vunpack.c.l.b16 %v1811
    %v3153 = vunpack.c.h.b16 %v1811
    %v3154 = vunpack.c.l.b16 %v1812
    %v3155 = vunpack.c.h.b16 %v1812
    %v3156 = vunpack.c.l.b16 %v1813
    %v3157 = vunpack.c.h.b16 %v1813
    %v3158 = vunpack.c.l.b16 %v1814
    %v3159 = vunpack.c.h.b16 %v1814
    %v3160 = vunpack.c.l.b16 %v1815
    %v3161 = vunpack.c.h.b16 %v1815
    %v3162 = vunpack.c.l.b16 %v1816
    %v3163 = vunpack.c.h.b16 %v1816
    %v3164 = vunpack.c.l.b16 %v1817
    %v3165 = vunpack.c.h.b16 %v1817
    %v3166 = vunpack.c.l.b16 %v1818
    %v3167 = vunpack.c.h.b16 %v1818
    %v3168 = vunpack.c.l.b16 %v1819
    %v3169 = vunpack.c.h.b16 %v1819
    %v3170 = vunpack.c.l.b16 %v1820
    %v3171 = vunpack.c.h.b16 %v1820
    %v3172 = vunpack.c.l.b16 %v1821
    %v3173 = vunpack.c.h.b16 %v1821
    %v3174 = vunpack.c.l.b16 %v1822
    %v3175 = vunpack.c.h.b16 %v1822
    %v3176 = vunpack.c.l.b16 %v1823
    %v3177 = vunpack.c.h.b16 %v1823
    %v3178 = vunpack.c.l.b16 %v1824
    %v3179 = vunpack.c.h.b16 %v1824
    %v3180 = vunpack.c.l.b16 %v1825
    %v3181 = vunpack.c.h.b16 %v1825
    %v3182 = vunpack.c.l.b16 %v1826
    %v3183 = vunpack.c.h.b16 %v1826
    %v3184 = vunpack.c.l.b16 %v1827
    %v3185 = vunpack.c.h.b16 %v1827
    %v3186 = vunpack.c.l.b16 %v1828
    %v3187 = vunpack.c.h.b16 %v1828
    %v3188 = vunpack.c.l.b16 %v1829
    %v3189 = vunpack.c.h.b16 %v1829
    %v3190 = vunpack.c.l.b16 %v1830
    %v3191 = vunpack.c.h.b16 %v1830
    %v3192 = vunpack.c.l.b16 %v1831
    %v3193 = vunpack.c.h.b16 %v1831
    %v3194 = vunpack.c.l.b16 %v1832
    %v3195 = vunpack.c.h.b16 %v1832
    %v3196 = vunpack.c.l.b16 %v1833
    %v3197 = vunpack.c.h.b16 %v1833
    %v3198 = vunpack.c.l.b16 %v1834
    %v3199 = vunpack.c.h.b16 %v1834
    %v3200 = vunpack.c.l.b16 %v1835
    %v3201 = vunpack.c.h.b16 %v1835
    %v3202 = vunpack.c.l.b16 %v1836
    %v3203 = vunpack.c.h.b16 %v1836
    %v3204 = vunpack.c.l.b16 %v1837
    %v3205 = vunpack.c.h.b16 %v1837
    %v3206 = vunpack.c.l.b16 %v1838
    %v3207 = vunpack.c.h.b16 %v1838
    %v3208 = vunpack.c.l.b16 %v1839
    %v3209 = vunpack.c.h.b16 %v1839
    %v3210 = vunpack.c.l.b16 %v1840
    %v3211 = vunpack.c.h.b16 %v1840
    %v3212 = vunpack.c.l.b16 %v1841
    %v3213 = vunpack.c.h.b16 %v1841
    %v3214 = vunpack.c.l.b16 %v1842
    %v3215 = vunpack.c.h.b16 %v1842
    %v3216 = vunpack.c.l.b16 %v1843
    %v3217 = vunpack.c.h.b16 %v1843
    %v3218 = vunpack.c.l.b16 %v1844
    %v3219 = vunpack.c.h.b16 %v1844
    %v3220 = vunpack.c.l.b16 %v1845
    %v3221 = vunpack.c.h.b16 %v1845
    %v3222 = vunpack.c.l.b16 %v1846
    %v3223 = vunpack.c.h.b16 %v1846
    %v3224 = vunpack.c.l.b16 %v1847
    %v3225 = vunpack.c.h.b16 %v1847
    %v3226 = vunpack.c.l.b16 %v1848
    %v3227 = vunpack.c.h.b16 %v1848
    %v3228 = vunpack.c.l.b16 %v1849
    %v3229 = vunpack.c.h.b16 %v1849
    %v3230 = vunpack.c.l.b16 %v1850
    %v3231 = vunpack.c.h.b16 %v1850
    %v3232 = vunpack.c.l.b16 %v1851
    %v3233 = vunpack.c.h.b16 %v1851
    %v3234 = vunpack.c.l.b16 %v1852
    %v3235 = vunpack.c.h.b16 %v1852
    %v3236 = vunpack.c.l.b16 %v1853
    %v3237 = vunpack.c.h.b16 %v1853
    %v3238 = vunpack.c.l.b16 %v1854
    %v3239 = vunpack.c.h.b16 %v1854
    %v3240 = vunpack.c.l.b16 %v1855
    %v3241 = vunpack.c.h.b16 %v1855
    %v3242 = vunpack.c.l.b16 %v1856
    %v3243 = vunpack.c.h.b16 %v1856
    %v3244 = vunpack.c.l.b16 %v1857
    %v3245 = vunpack.c.h.b16 %v1857
    %v3246 = vunpack.c.l.b16 %v1858
    %v3247 = vunpack.c.h.b16 %v1858
    %v3248 = vunpack.c.l.b16 %v1859
    %v3249 = vunpack.c.h.b16 %v1859
    %v3250 = vunpack.c.l.b16 %v1860
    %v3251 = vunpack.c.h.b16 %v1860
    %v3252 = vunpack.c.l.b16 %v1861
    %v3253 = vunpack.c.h.b16 %v1861
    %v3254 = vunpack.c.l.b16 %v1862
    %v3255 = vunpack.c.h.b16 %v1862
    %v3256 = vunpack.c.l.b16 %v1863
    %v3257 = vunpack.c.h.b16 %v1863
    %v3258 = vunpack.c.l.b16 %v1864
    %v3259 = vunpack.c.h.b16 %v1864
    %v3260 = vunpack.c.l.b16 %v1865
    %v3261 = vunpack.c.h.b16 %v1865
    %v3262 = vunpack.c.l.b16 %v1866
    %v3263 = vunpack.c.h.b16 %v1866
    %v3264 = vunpack.c.l.b16 %v1867
    %v3265 = vunpack.c.h.b16 %v1867
    %v3266 = vunpack.c.l.b16 %v1868
    %v3267 = vunpack.c.h.b16 %v1868
    %v3268 = vunpack.c.l.b16 %v1869
    %v3269 = vunpack.c.h.b16 %v1869
    %v3270 = vunpack.c.l.b16 %v1870
    %v3271 = vunpack.c.h.b16 %v1870
    %v3272 = vunpack.c.l.b16 %v1871
    %v3273 = vunpack.c.h.b16 %v1871
    %v3274 = vunpack.c.l.b16 %v1872
    %v3275 = vunpack.c.h.b16 %v1872
    %v3276 = vunpack.c.l.b16 %v1873
    %v3277 = vunpack.c.h.b16 %v1873
    %v3278 = vunpack.c.l.b16 %v1874
    %v3279 = vunpack.c.h.b16 %v1874
    %v3280 = vunpack.c.l.b16 %v1875
    %v3281 = vunpack.c.h.b16 %v1875
    %v3282 = vunpack.c.l.b16 %v1876
    %v3283 = vunpack.c.h.b16 %v1876
    %v3284 = vunpack.c.l.b16 %v1877
    %v3285 = vunpack.c.h.b16 %v1877
    %v3286 = vunpack.c.l.b16 %v1878
    %v3287 = vunpack.c.h.b16 %v1878
    %v3288 = vunpack.c.l.b16 %v1879
    %v3289 = vunpack.c.h.b16 %v1879
    %v3290 = vunpack.c.l.b16 %v1880
    %v3291 = vunpack.c.h.b16 %v1880
    %v3292 = vunpack.c.l.b16 %v1881
    %v3293 = vunpack.c.h.b16 %v1881
    %v3294 = vunpack.c.l.b16 %v1882
    %v3295 = vunpack.c.h.b16 %v1882
    %v3296 = vunpack.c.l.b16 %v1883
    %v3297 = vunpack.c.h.b16 %v1883
    %v3298 = vunpack.c.l.b16 %v1884
    %v3299 = vunpack.c.h.b16 %v1884
    %v3300 = vunpack.c.l.b16 %v1885
    %v3301 = vunpack.c.h.b16 %v1885
    %v3302 = vunpack.c.l.b16 %v1886
    %v3303 = vunpack.c.h.b16 %v1886
    %v3304 = vunpack.c.l.b16 %v1887
    %v3305 = vunpack.c.h.b16 %v1887
    %v3306 = vunpack.c.l.b16 %v1888
    %v3307 = vunpack.c.h.b16 %v1888
    %v3308 = vunpack.c.l.b16 %v1889
    %v3309 = vunpack.c.h.b16 %v1889
    %v3310 = vunpack.c.l.b16 %v1890
    %v3311 = vunpack.c.h.b16 %v1890
    %v3312 = vunpack.c.l.b16 %v1891
    %v3313 = vunpack.c.h.b16 %v1891
    %v3314 = vunpack.c.l.b16 %v1892
    %v3315 = vunpack.c.h.b16 %v1892
    %v3316 = vunpack.c.l.b16 %v1893
    %v3317 = vunpack.c.h.b16 %v1893
    %v3318 = vunpack.c.l.b16 %v1894
    %v3319 = vunpack.c.h.b16 %v1894
    %v3320 = vunpack.c.l.b16 %v1895
    %v3321 = vunpack.c.h.b16 %v1895
    %v3322 = vunpack.c.l.b16 %v1896
    %v3323 = vunpack.c.h.b16 %v1896
    %v3324 = vunpack.c.l.b16 %v1897
    %v3325 = vunpack.c.h.b16 %v1897
    %v3326 = vunpack.c.l.b16 %v1898
    %v3327 = vunpack.c.h.b16 %v1898
    %v3328 = vunpack.c.l.b16 %v1899
    %v3329 = vunpack.c.h.b16 %v1899
    %v3330 = vunpack.c.l.b16 %v1900
    %v3331 = vunpack.c.h.b16 %v1900
    %v3332 = vunpack.c.l.b16 %v1901
    %v3333 = vunpack.c.h.b16 %v1901
    %v3334 = vunpack.c.l.b16 %v1902
    %v3335 = vunpack.c.h.b16 %v1902
    %v3336 = vunpack.c.l.b16 %v1903
    %v3337 = vunpack.c.h.b16 %v1903
    %v3338 = vunpack.c.l.b16 %v1904
    %v3339 = vunpack.c.h.b16 %v1904
    %v3340 = vunpack.c.l.b16 %v1905
    %v3341 = vunpack.c.h.b16 %v1905
    %v3342 = vunpack.c.l.b16 %v1906
    %v3343 = vunpack.c.h.b16 %v1906
    %v3344 = vunpack.c.l.b16 %v1907
    %v3345 = vunpack.c.h.b16 %v1907
    %v3346 = vunpack.c.l.b16 %v1908
    %v3347 = vunpack.c.h.b16 %v1908
    %v3348 = vunpack.c.l.b16 %v1909
    %v3349 = vunpack.c.h.b16 %v1909
    %v3350 = vunpack.c.l.b16 %v1910
    %v3351 = vunpack.c.h.b16 %v1910
    %v3352 = vunpack.c.l.b16 %v1911
    %v3353 = vunpack.c.h.b16 %v1911
    %v3354 = vunpack.c.l.b16 %v1912
    %v3355 = vunpack.c.h.b16 %v1912
    %v3356 = vunpack.c.l.b16 %v1913
    %v3357 = vunpack.c.h.b16 %v1913
    %v3358 = vunpack.c.l.b16 %v1914
    %v3359 = vunpack.c.h.b16 %v1914
    %v3360 = vunpack.c.l.b16 %v1915
    %v3361 = vunpack.c.h.b16 %v1915
    %v3362 = vunpack.c.l.b16 %v1916
    %v3363 = vunpack.c.h.b16 %v1916
    %v3364 = vunpack.c.l.b16 %v1917
    %v3365 = vunpack.c.h.b16 %v1917
    %v3366 = vunpack.c.l.b16 %v1918
    %v3367 = vunpack.c.h.b16 %v1918
    %v3368 = vunpack.c.l.b16 %v1919
    %v3369 = vunpack.c.h.b16 %v1919
    %v3370 = vunpack.c.l.b16 %v1920
    %v3371 = vunpack.c.h.b16 %v1920
    %v3372 = vunpack.c.l.b16 %v1921
    %v3373 = vunpack.c.h.b16 %v1921
    %v3374 = vunpack.c.l.b16 %v1922
    %v3375 = vunpack.c.h.b16 %v1922
    %v3376 = vunpack.c.l.b16 %v1923
    %v3377 = vunpack.c.h.b16 %v1923
    %v3378 = vunpack.c.l.b16 %v1924
    %v3379 = vunpack.c.h.b16 %v1924
    %v3380 = vunpack.c.l.b16 %v1925
    %v3381 = vunpack.c.h.b16 %v1925
    %v3382 = vunpack.c.l.b16 %v1926
    %v3383 = vunpack.c.h.b16 %v1926
    %v3384 = vunpack.c.l.b16 %v1927
    %v3385 = vunpack.c.h.b16 %v1927
    %v3386 = vunpack.c.l.b16 %v1928
    %v3387 = vunpack.c.h.b16 %v1928
    %v3388 = vunpack.c.l.b16 %v1929
    %v3389 = vunpack.c.h.b16 %v1929
    %v3390 = vunpack.c.l.b16 %v1930
    %v3391 = vunpack.c.h.b16 %v1930
    %v3392 = vunpack.c.l.b16 %v1931
    %v3393 = vunpack.c.h.b16 %v1931
    %v3394 = vunpack.c.l.b16 %v1932
    %v3395 = vunpack.c.h.b16 %v1932
    %v3396 = vunpack.c.l.b16 %v1933
    %v3397 = vunpack.c.h.b16 %v1933
    %v3398 = vunpack.c.l.b16 %v1934
    %v3399 = vunpack.c.h.b16 %v1934
    %v3400 = vunpack.c.l.b16 %v1935
    %v3401 = vunpack.c.h.b16 %v1935
    %v3402 = vunpack.c.l.b16 %v1936
    %v3403 = vunpack.c.h.b16 %v1936
    %v3404 = vunpack.c.l.b16 %v1937
    %v3405 = vunpack.c.h.b16 %v1937
    %v3406 = vunpack.c.l.b16 %v1938
    %v3407 = vunpack.c.h.b16 %v1938
    %v3408 = vunpack.c.l.b16 %v1939
    %v3409 = vunpack.c.h.b16 %v1939
    %v3410 = vunpack.c.l.b16 %v1940
    %v3411 = vunpack.c.h.b16 %v1940
    %v3412 = vunpack.c.l.b16 %v1941
    %v3413 = vunpack.c.h.b16 %v1941
    %v3414 = vunpack.c.l.b16 %v1942
    %v3415 = vunpack.c.h.b16 %v1942
    %v3416 = vunpack.c.l.b16 %v1943
    %v3417 = vunpack.c.h.b16 %v1943
    %v3418 = vunpack.c.l.b16 %v1944
    %v3419 = vunpack.c.h.b16 %v1944
    %v3420 = vunpack.c.l.b16 %v1945
    %v3421 = vunpack.c.h.b16 %v1945
    %v3422 = vunpack.c.l.b16 %v1946
    %v3423 = vunpack.c.h.b16 %v1946
    %v3424 = vunpack.c.l.b16 %v1947
    %v3425 = vunpack.c.h.b16 %v1947
    %v3426 = vunpack.c.l.b16 %v1948
    %v3427 = vunpack.c.h.b16 %v1948
    %v3428 = vunpack.c.l.b16 %v1949
    %v3429 = vunpack.c.h.b16 %v1949
    %v3430 = vunpack.c.l.b16 %v1950
    %v3431 = vunpack.c.h.b16 %v1950
    %v3432 = vunpack.c.l.b16 %v1951
    %v3433 = vunpack.c.h.b16 %v1951
    %v3434 = vunpack.c.l.b16 %v1952
    %v3435 = vunpack.c.h.b16 %v1952
    %v3436 = vunpack.c.l.b16 %v1953
    %v3437 = vunpack.c.h.b16 %v1953
    %v3438 = vunpack.c.l.b16 %v1954
    %v3439 = vunpack.c.h.b16 %v1954
    %v3440 = vunpack.c.l.b16 %v1955
    %v3441 = vunpack.c.h.b16 %v1955
    %v3442 = vunpack.c.l.b16 %v1956
    %v3443 = vunpack.c.h.b16 %v1956
    %v3444 = vunpack.c.l.b16 %v1957
    %v3445 = vunpack.c.h.b16 %v1957
    %v3446 = vunpack.c.l.b16 %v1958
    %v3447 = vunpack.c.h.b16 %v1958
    %v3448 = vunpack.c.l.b16 %v1959
    %v3449 = vunpack.c.h.b16 %v1959
    %v3450 = vunpack.c.l.b16 %v1960
    %v3451 = vunpack.c.h.b16 %v1960
    %v3452 = vunpack.c.l.b16 %v1961
    %v3453 = vunpack.c.h.b16 %v1961
    %v3454 = vunpack.c.l.b16 %v1962
    %v3455 = vunpack.c.h.b16 %v1962
    %v3456 = vunpack.c.l.b16 %v1963
    %v3457 = vunpack.c.h.b16 %v1963
    %v3458 = vunpack.c.l.b16 %v1964
    %v3459 = vunpack.c.h.b16 %v1964
    %v3460 = vunpack.c.l.b16 %v1965
    %v3461 = vunpack.c.h.b16 %v1965
    %v3462 = vunpack.c.l.b16 %v1966
    %v3463 = vunpack.c.h.b16 %v1966
    %v3464 = vunpack.c.l.b16 %v1967
    %v3465 = vunpack.c.h.b16 %v1967
    %v3466 = vunpack.c.l.b16 %v1968
    %v3467 = vunpack.c.h.b16 %v1968
    %v3468 = vunpack.c.l.b16 %v1969
    %v3469 = vunpack.c.h.b16 %v1969
    %v3470 = vunpack.c.l.b16 %v1970
    %v3471 = vunpack.c.h.b16 %v1970
    %v3472 = vunpack.c.l.b16 %v1971
    %v3473 = vunpack.c.h.b16 %v1971
    %v3474 = vunpack.c.l.b16 %v1972
    %v3475 = vunpack.c.h.b16 %v1972
    %v3476 = vunpack.c.l.b16 %v1973
    %v3477 = vunpack.c.h.b16 %v1973
    %v3478 = vunpack.c.l.b16 %v1974
    %v3479 = vunpack.c.h.b16 %v1974
    %v3480 = vunpack.c.l.b16 %v1975
    %v3481 = vunpack.c.h.b16 %v1975
    %v3482 = vunpack.c.l.b16 %v1976
    %v3483 = vunpack.c.h.b16 %v1976
    %v3484 = vunpack.c.l.b16 %v1977
    %v3485 = vunpack.c.h.b16 %v1977
    %v3486 = vunpack.c.l.b16 %v1978
    %v3487 = vunpack.c.h.b16 %v1978
    %v3488 = vunpack.c.l.b16 %v1979
    %v3489 = vunpack.c.h.b16 %v1979
    %v3490 = vunpack.c.l.b16 %v1980
    %v3491 = vunpack.c.h.b16 %v1980
    %v3492 = vunpack.c.l.b16 %v1981
    %v3493 = vunpack.c.h.b16 %v1981
    %v3494 = vunpack.c.l.b16 %v1982
    %v3495 = vunpack.c.h.b16 %v1982
    %v3496 = vunpack.c.l.b16 %v1983
    %v3497 = vunpack.c.h.b16 %v1983
    %v3498 = vunpack.c.l.b16 %v1984
    %v3499 = vunpack.c.h.b16 %v1984
    %v3500 = vunpack.c.l.b16 %v1985
    %v3501 = vunpack.c.h.b16 %v1985
    %v3502 = vunpack.c.l.b16 %v1986
    %v3503 = vunpack.c.h.b16 %v1986
    %v3504 = vunpack.c.l.b16 %v1987
    %v3505 = vunpack.c.h.b16 %v1987
    %v3506 = vunpack.c.l.b16 %v1988
    %v3507 = vunpack.c.h.b16 %v1988
    %v3508 = vunpack.c.l.b16 %v1989
    %v3509 = vunpack.c.h.b16 %v1989
    %v3510 = vunpack.c.l.b16 %v1990
    %v3511 = vunpack.c.h.b16 %v1990
    %v3512 = vunpack.c.l.b16 %v1991
    %v3513 = vunpack.c.h.b16 %v1991
    %v3514 = vunpack.c.l.b16 %v1992
    %v3515 = vunpack.c.h.b16 %v1992
    %v3516 = vunpack.c.l.b16 %v1993
    %v3517 = vunpack.c.h.b16 %v1993
    %v3518 = vunpack.c.l.b16 %v1994
    %v3519 = vunpack.c.h.b16 %v1994
    %v3520 = vunpack.c.l.b16 %v1995
    %v3521 = vunpack.c.h.b16 %v1995
    %v3522 = vunpack.c.l.b16 %v1996
    %v3523 = vunpack.c.h.b16 %v1996
    %v3524 = vunpack.c.l.b16 %v1997
    %v3525 = vunpack.c.h.b16 %v1997
    %v3526 = vunpack.c.l.b16 %v1998
    %v3527 = vunpack.c.h.b16 %v1998
    %v3528 = vunpack.c.l.b16 %v1999
    %v3529 = vunpack.c.h.b16 %v1999
    %v3530 = vunpack.c.l.b16 %v2000
    %v3531 = vunpack.c.h.b16 %v2000
    %v3532 = vunpack.c.l.b16 %v2001
    %v3533 = vunpack.c.h.b16 %v2001
    %v3534 = vunpack.c.l.b16 %v2002
    %v3535 = vunpack.c.h.b16 %v2002
    %v3536 = vunpack.c.l.b16 %v2003
    %v3537 = vunpack.c.h.b16 %v2003
    %v3538 = vunpack.c.l.b16 %v2004
    %v3539 = vunpack.c.h.b16 %v2004
    %v3540 = vunpack.c.l.b16 %v2005
    %v3541 = vunpack.c.h.b16 %v2005
    %v3542 = vunpack.c.l.b16 %v2006
    %v3543 = vunpack.c.h.b16 %v2006
    %v3544 = vunpack.c.l.b16 %v2007
    %v3545 = vunpack.c.h.b16 %v2007
    %v3546 = vunpack.c.l.b16 %v2008
    %v3547 = vunpack.c.h.b16 %v2008
    %v3548 = vunpack.c.l.b16 %v2009
    %v3549 = vunpack.c.h.b16 %v2009
    %v3550 = vunpack.c.l.b16 %v2010
    %v3551 = vunpack.c.h.b16 %v2010
    %v3552 = vunpack.c.l.b16 %v2011
    %v3553 = vunpack.c.h.b16 %v2011
    %v3554 = vunpack.c.l.b16 %v2012
    %v3555 = vunpack.c.h.b16 %v2012
    %v3556 = vunpack.c.l.b16 %v2013
    %v3557 = vunpack.c.h.b16 %v2013
    %v3558 = vunpack.c.l.b16 %v2014
    %v3559 = vunpack.c.h.b16 %v2014
    %v3560 = vunpack.c.l.b16 %v2015
    %v3561 = vunpack.c.h.b16 %v2015
    %v3562 = vunpack.c.l.b16 %v2016
    %v3563 = vunpack.c.h.b16 %v2016
    %v3564 = vunpack.c.l.b16 %v2017
    %v3565 = vunpack.c.h.b16 %v2017
    %v3566 = vunpack.c.l.b16 %v2018
    %v3567 = vunpack.c.h.b16 %v2018
    %v3568 = vunpack.c.l.b16 %v2019
    %v3569 = vunpack.c.h.b16 %v2019
    %v3570 = vunpack.c.l.b16 %v2020
    %v3571 = vunpack.c.h.b16 %v2020
    %v3572 = vunpack.c.l.b16 %v2021
    %v3573 = vunpack.c.h.b16 %v2021
    %v3574 = vunpack.c.l.b16 %v2022
    %v3575 = vunpack.c.h.b16 %v2022
    %v3576 = vunpack.c.l.b16 %v2023
    %v3577 = vunpack.c.h.b16 %v2023
    %v3578 = vunpack.c.l.b16 %v2024
    %v3579 = vunpack.c.h.b16 %v2024
    %v3580 = vpack.c.b16 %v2564, %v2556
    %v3581 = vpack.c.b16 %v2565, %v2557
    %v3582 = vpack.c.b16 %v2566, %v2558
    %v3583 = vpack.c.b16 %v2567, %v2559
    %v3584 = vpack.c.b16 %v2568, %v2560
    %v3585 = vpack.c.b16 %v2569, %v2561
    %v3586 = vpack.c.b16 %v2570, %v2562
    %v3587 = vpack.c.b16 %v2571, %v2563
    %v3588 = vpack.c.b16 %v2580, %v2572
    %v3589 = vpack.c.b16 %v2581, %v2573
    %v3590 = vpack.c.b16 %v2582, %v2574
    %v3591 = vpack.c.b16 %v2583, %v2575
    %v3592 = vpack.c.b16 %v2584, %v2576
    %v3593 = vpack.c.b16 %v2585, %v2577
    %v3594 = vpack.c.b16 %v2586, %v2578
    %v3595 = vpack.c.b16 %v2587, %v2579
    %v3596 = vpack.c.b16 %v2596, %v2588
    %v3597 = vpack.c.b16 %v2597, %v2589
    %v3598 = vpack.c.b16 %v2598, %v2590
    %v3599 = vpack.c.b16 %v2599, %v2591
    %v3600 = vpack.c.b16 %v2600, %v2592
    %v3601 = vpack.c.b16 %v2601, %v2593
    %v3602 = vpack.c.b16 %v2602, %v2594
    %v3603 = vpack.c.b16 %v2603, %v2595
    %v3604 = vpack.c.b16 %v2612, %v2604
    %v3605 = vpack.c.b16 %v2613, %v2605
    %v3606 = vpack.c.b16 %v2614, %v2606
    %v3607 = vpack.c.b16 %v2615, %v2607
    %v3608 = vpack.c.b16 %v2616, %v2608
    %v3609 = vpack.c.b16 %v2617, %v2609
    %v3610 = vpack.c.b16 %v2618, %v2610
    %v3611 = vpack.c.b16 %v2619, %v2611
    %v3612 = vpack.c.b16 %v2628, %v2620
    %v3613 = vpack.c.b16 %v2629, %v2621
    %v3614 = vpack.c.b16 %v2630, %v2622
    %v3615 = vpack.c.b16 %v2631, %v2623
    %v3616 = vpack.c.b16 %v2632, %v2624
    %v3617 = vpack.c.b16 %v2633, %v2625
    %v3618 = vpack.c.b16 %v2634, %v2626
    %v3619 = vpack.c.b16 %v2635, %v2627
    %v3620 = vpack.c.b16 %v2644, %v2636
    %v3621 = vpack.c.b16 %v2645, %v2637
    %v3622 = vpack.c.b16 %v2646, %v2638
    %v3623 = vpack.c.b16 %v2647, %v2639
    %v3624 = vpack.c.b16 %v2648, %v2640
    %v3625 = vpack.c.b16 %v2649, %v2641
    %v3626 = vpack.c.b16 %v2650, %v2642
    %v3627 = vpack.c.b16 %v2651, %v2643
    %v3628 = vpack.c.b16 %v2660, %v2652
    %v3629 = vpack.c.b16 %v2661, %v2653
    %v3630 = vpack.c.b16 %v2662, %v2654
    %v3631 = vpack.c.b16 %v2663, %v2655
    %v3632 = vpack.c.b16 %v2664, %v2656
    %v3633 = vpack.c.b16 %v2665, %v2657
    %v3634 = vpack.c.b16 %v2666, %v2658
    %v3635 = vpack.c.b16 %v2667, %v2659
    %v3636 = vpack.c.b16 %v2676, %v2668
    %v3637 = vpack.c.b16 %v2677, %v2669
    %v3638 = vpack.c.b16 %v2678, %v2670
    %v3639 = vpack.c.b16 %v2679, %v2671
    %v3640 = vpack.c.b16 %v2680, %v2672
    %v3641 = vpack.c.b16 %v2681, %v2673
    %v3642 = vpack.c.b16 %v2682, %v2674
    %v3643 = vpack.c.b16 %v2683, %v2675
    %v3644 = vpack.c.b16 %v2692, %v2684
    %v3645 = vpack.c.b16 %v2693, %v2685
    %v3646 = vpack.c.b16 %v2694, %v2686
    %v3647 = vpack.c.b16 %v2695, %v2687
    %v3648 = vpack.c.b16 %v2696, %v2688
    %v3649 = vpack.c.b16 %v2697, %v2689
    %v3650 = vpack.c.b16 %v2698, %v2690
    %v3651 = vpack.c.b16 %v2699, %v2691
    %v3652 = vpack.c.b16 %v2708, %v2700
    %v3653 = vpack.c.b16 %v2709, %v2701
    %v3654 = vpack.c.b16 %v2710, %v2702
    %v3655 = vpack.c.b16 %v2711, %v2703
    %v3656 = vpack.c.b16 %v2712, %v2704
    %v3657 = vpack.c.b16 %v2713, %v2705
    %v3658 = vpack.c.b16 %v2714, %v2706
    %v3659 = vpack.c.b16 %v2715, %v2707
    %v3660 = vpack.c.b16 %v2724, %v2716
    %v3661 = vpack.c.b16 %v2725, %v2717
    %v3662 = vpack.c.b16 %v2726, %v2718
    %v3663 = vpack.c.b16 %v2727, %v2719
    %v3664 = vpack.c.b16 %v2728, %v2720
    %v3665 = vpack.c.b16 %v2729, %v2721
    %v3666 = vpack.c.b16 %v2730, %v2722
    %v3667 = vpack.c.b16 %v2731, %v2723
    %v3668 = vpack.c.b16 %v2740, %v2732
    %v3669 = vpack.c.b16 %v2741, %v2733
    %v3670 = vpack.c.b16 %v2742, %v2734
    %v3671 = vpack.c.b16 %v2743, %v2735
    %v3672 = vpack.c.b16 %v2744, %v2736
    %v3673 = vpack.c.b16 %v2745, %v2737
    %v3674 = vpack.c.b16 %v2746, %v2738
    %v3675 = vpack.c.b16 %v2747, %v2739
    %v3676 = vpack.c.b16 %v2756, %v2748
    %v3677 = vpack.c.b16 %v2757, %v2749
    %v3678 = vpack.c.b16 %v2758, %v2750
    %v3679 = vpack.c.b16 %v2759, %v2751
    %v3680 = vpack.c.b16 %v2760, %v2752
    %v3681 = vpack.c.b16 %v2761, %v2753
    %v3682 = vpack.c.b16 %v2762, %v2754
    %v3683 = vpack.c.b16 %v2763, %v2755
    %v3684 = vpack.c.b16 %v2772, %v2764
    %v3685 = vpack.c.b16 %v2773, %v2765
    %v3686 = vpack.c.b16 %v2774, %v2766
    %v3687 = vpack.c.b16 %v2775, %v2767
    %v3688 = vpack.c.b16 %v2776, %v2768
    %v3689 = vpack.c.b16 %v2777, %v2769
    %v3690 = vpack.c.b16 %v2778, %v2770
    %v3691 = vpack.c.b16 %v2779, %v2771
    %v3692 = vpack.c.b16 %v2788, %v2780
    %v3693 = vpack.c.b16 %v2789, %v2781
    %v3694 = vpack.c.b16 %v2790, %v2782
    %v3695 = vpack.c.b16 %v2791, %v2783
    %v3696 = vpack.c.b16 %v2792, %v2784
    %v3697 = vpack.c.b16 %v2793, %v2785
    %v3698 = vpack.c.b16 %v2794, %v2786
    %v3699 = vpack.c.b16 %v2795, %v2787
    %v3700 = vpack.c.b16 %v2804, %v2796
    %v3701 = vpack.c.b16 %v2805, %v2797
    %v3702 = vpack.c.b16 %v2806, %v2798
    %v3703 = vpack.c.b16 %v2807, %v2799
    %v3704 = vpack.c.b16 %v2808, %v2800
    %v3705 = vpack.c.b16 %v2809, %v2801
    %v3706 = vpack.c.b16 %v2810, %v2802
    %v3707 = vpack.c.b16 %v2811, %v2803
    %v3708 = vpack.c.b16 %v2820, %v2812
    %v3709 = vpack.c.b16 %v2821, %v2813
    %v3710 = vpack.c.b16 %v2822, %v2814
    %v3711 = vpack.c.b16 %v2823, %v2815
    %v3712 = vpack.c.b16 %v2824, %v2816
    %v3713 = vpack.c.b16 %v2825, %v2817
    %v3714 = vpack.c.b16 %v2826, %v2818
    %v3715 = vpack.c.b16 %v2827, %v2819
    %v3716 = vpack.c.b16 %v2836, %v2828
    %v3717 = vpack.c.b16 %v2837, %v2829
    %v3718 = vpack.c.b16 %v2838, %v2830
    %v3719 = vpack.c.b16 %v2839, %v2831
    %v3720 = vpack.c.b16 %v2840, %v2832
    %v3721 = vpack.c.b16 %v2841, %v2833
    %v3722 = vpack.c.b16 %v2842, %v2834
    %v3723 = vpack.c.b16 %v2843, %v2835
    %v3724 = vpack.c.b16 %v2852, %v2844
    %v3725 = vpack.c.b16 %v2853, %v2845
    %v3726 = vpack.c.b16 %v2854, %v2846
    %v3727 = vpack.c.b16 %v2855, %v2847
    %v3728 = vpack.c.b16 %v2856, %v2848
    %v3729 = vpack.c.b16 %v2857, %v2849
    %v3730 = vpack.c.b16 %v2858, %v2850
    %v3731 = vpack.c.b16 %v2859, %v2851
    %v3732 = vpack.c.b16 %v2868, %v2860
    %v3733 = vpack.c.b16 %v2869, %v2861
    %v3734 = vpack.c.b16 %v2870, %v2862
    %v3735 = vpack.c.b16 %v2871, %v2863
    %v3736 = vpack.c.b16 %v2872, %v2864
    %v3737 = vpack.c.b16 %v2873, %v2865
    %v3738 = vpack.c.b16 %v2874, %v2866
    %v3739 = vpack.c.b16 %v2875, %v2867
    %v3740 = vpack.c.b16 %v2884, %v2876
    %v3741 = vpack.c.b16 %v2885, %v2877
    %v3742 = vpack.c.b16 %v2886, %v2878
    %v3743 = vpack.c.b16 %v2887, %v2879
    %v3744 = vpack.c.b16 %v2888, %v2880
    %v3745 = vpack.c.b16 %v2889, %v2881
    %v3746 = vpack.c.b16 %v2890, %v2882
    %v3747 = vpack.c.b16 %v2891, %v2883
    %v3748 = vpack.c.b16 %v2900, %v2892
    %v3749 = vpack.c.b16 %v2901, %v2893
    %v3750 = vpack.c.b16 %v2902, %v2894
    %v3751 = vpack.c.b16 %v2903, %v2895
    %v3752 = vpack.c.b16 %v2904, %v2896
    %v3753 = vpack.c.b16 %v2905, %v2897
    %v3754 = vpack.c.b16 %v2906, %v2898
    %v3755 = vpack.c.b16 %v2907, %v2899
    %v3756 = vpack.c.b16 %v2916, %v2908
    %v3757 = vpack.c.b16 %v2917, %v2909
    %v3758 = vpack.c.b16 %v2918, %v2910
    %v3759 = vpack.c.b16 %v2919, %v2911
    %v3760 = vpack.c.b16 %v2920, %v2912
    %v3761 = vpack.c.b16 %v2921, %v2913
    %v3762 = vpack.c.b16 %v2922, %v2914
    %v3763 = vpack.c.b16 %v2923, %v2915
    %v3764 = vpack.c.b16 %v2932, %v2924
    %v3765 = vpack.c.b16 %v2933, %v2925
    %v3766 = vpack.c.b16 %v2934, %v2926
    %v3767 = vpack.c.b16 %v2935, %v2927
    %v3768 = vpack.c.b16 %v2936, %v2928
    %v3769 = vpack.c.b16 %v2937, %v2929
    %v3770 = vpack.c.b16 %v2938, %v2930
    %v3771 = vpack.c.b16 %v2939, %v2931
    %v3772 = vpack.c.b16 %v2948, %v2940
    %v3773 = vpack.c.b16 %v2949, %v2941
    %v3774 = vpack.c.b16 %v2950, %v2942
    %v3775 = vpack.c.b16 %v2951, %v2943
    %v3776 = vpack.c.b16 %v2952, %v2944
    %v3777 = vpack.c.b16 %v2953, %v2945
    %v3778 = vpack.c.b16 %v2954, %v2946
    %v3779 = vpack.c.b16 %v2955, %v2947
    %v3780 = vpack.c.b16 %v2964, %v2956
    %v3781 = vpack.c.b16 %v2965, %v2957
    %v3782 = vpack.c.b16 %v2966, %v2958
    %v3783 = vpack.c.b16 %v2967, %v2959
    %v3784 = vpack.c.b16 %v2968, %v2960
    %v3785 = vpack.c.b16 %v2969, %v2961
    %v3786 = vpack.c.b16 %v2970, %v2962
    %v3787 = vpack.c.b16 %v2971, %v2963
    %v3788 = vpack.c.b16 %v2980, %v2972
    %v3789 = vpack.c.b16 %v2981, %v2973
    %v3790 = vpack.c.b16 %v2982, %v2974
    %v3791 = vpack.c.b16 %v2983, %v2975
    %v3792 = vpack.c.b16 %v2984, %v2976
    %v3793 = vpack.c.b16 %v2985, %v2977
    %v3794 = vpack.c.b16 %v2986, %v2978
    %v3795 = vpack.c.b16 %v2987, %v2979
    %v3796 = vpack.c.b16 %v2996, %v2988
    %v3797 = vpack.c.b16 %v2997, %v2989
    %v3798 = vpack.c.b16 %v2998, %v2990
    %v3799 = vpack.c.b16 %v2999, %v2991
    %v3800 = vpack.c.b16 %v3000, %v2992
    %v3801 = vpack.c.b16 %v3001, %v2993
    %v3802 = vpack.c.b16 %v3002, %v2994
    %v3803 = vpack.c.b16 %v3003, %v2995
    %v3804 = vpack.c.b16 %v3012, %v3004
    %v3805 = vpack.c.b16 %v3013, %v3005
    %v3806 = vpack.c.b16 %v3014, %v3006
    %v3807 = vpack.c.b16 %v3015, %v3007
    %v3808 = vpack.c.b16 %v3016, %v3008
    %v3809 = vpack.c.b16 %v3017, %v3009
    %v3810 = vpack.c.b16 %v3018, %v3010
    %v3811 = vpack.c.b16 %v3019, %v3011
    %v3812 = vpack.c.b16 %v3028, %v3020
    %v3813 = vpack.c.b16 %v3029, %v3021
    %v3814 = vpack.c.b16 %v3030, %v3022
    %v3815 = vpack.c.b16 %v3031, %v3023
    %v3816 = vpack.c.b16 %v3032, %v3024
    %v3817 = vpack.c.b16 %v3033, %v3025
    %v3818 = vpack.c.b16 %v3034, %v3026
    %v3819 = vpack.c.b16 %v3035, %v3027
    %v3820 = vpack.c.b16 %v3044, %v3036
    %v3821 = vpack.c.b16 %v3045, %v3037
    %v3822 = vpack.c.b16 %v3046, %v3038
    %v3823 = vpack.c.b16 %v3047, %v3039
    %v3824 = vpack.c.b16 %v3048, %v3040
    %v3825 = vpack.c.b16 %v3049, %v3041
    %v3826 = vpack.c.b16 %v3050, %v3042
    %v3827 = vpack.c.b16 %v3051, %v3043
    %v3828 = vpack.c.b16 %v3060, %v3052
    %v3829 = vpack.c.b16 %v3061, %v3053
    %v3830 = vpack.c.b16 %v3062, %v3054
    %v3831 = vpack.c.b16 %v3063, %v3055
    %v3832 = vpack.c.b16 %v3064, %v3056
    %v3833 = vpack.c.b16 %v3065, %v3057
    %v3834 = vpack.c.b16 %v3066, %v3058
    %v3835 = vpack.c.b16 %v3067, %v3059
    %v3836 = vpack.c.b16 %v3076, %v3068
    %v3837 = vpack.c.b16 %v3077, %v3069
    %v3838 = vpack.c.b16 %v3078, %v3070
    %v3839 = vpack.c.b16 %v3079, %v3071
    %v3840 = vpack.c.b16 %v3080, %v3072
    %v3841 = vpack.c.b16 %v3081, %v3073
    %v3842 = vpack.c.b16 %v3082, %v3074
    %v3843 = vpack.c.b16 %v3083, %v3075
    %v3844 = vpack.c.b16 %v3092, %v3084
    %v3845 = vpack.c.b16 %v3093, %v3085
    %v3846 = vpack.c.b16 %v3094, %v3086
    %v3847 = vpack.c.b16 %v3095, %v3087
    %v3848 = vpack.c.b16 %v3096, %v3088
    %v3849 = vpack.c.b16 %v3097, %v3089
    %v3850 = vpack.c.b16 %v3098, %v3090
    %v3851 = vpack.c.b16 %v3099, %v3091
    %v3852 = vpack.c.b16 %v3108, %v3100
    %v3853 = vpack.c.b16 %v3109, %v3101
    %v3854 = vpack.c.b16 %v3110, %v3102
    %v3855 = vpack.c.b16 %v3111, %v3103
    %v3856 = vpack.c.b16 %v3112, %v3104
    %v3857 = vpack.c.b16 %v3113, %v3105
    %v3858 = vpack.c.b16 %v3114, %v3106
    %v3859 = vpack.c.b16 %v3115, %v3107
    %v3860 = vpack.c.b16 %v3124, %v3116
    %v3861 = vpack.c.b16 %v3125, %v3117
    %v3862 = vpack.c.b16 %v3126, %v3118
    %v3863 = vpack.c.b16 %v3127, %v3119
    %v3864 = vpack.c.b16 %v3128, %v3120
    %v3865 = vpack.c.b16 %v3129, %v3121
    %v3866 = vpack.c.b16 %v3130, %v3122
    %v3867 = vpack.c.b16 %v3131, %v3123
    %v3868 = vpack.c.b16 %v3140, %v3132
    %v3869 = vpack.c.b16 %v3141, %v3133
    %v3870 = vpack.c.b16 %v3142, %v3134
    %v3871 = vpack.c.b16 %v3143, %v3135
    %v3872 = vpack.c.b16 %v3144, %v3136
    %v3873 = vpack.c.b16 %v3145, %v3137
    %v3874 = vpack.c.b16 %v3146, %v3138
    %v3875 = vpack.c.b16 %v3147, %v3139
    %v3876 = vpack.c.b16 %v3156, %v3148
    %v3877 = vpack.c.b16 %v3157, %v3149
    %v3878 = vpack.c.b16 %v3158, %v3150
    %v3879 = vpack.c.b16 %v3159, %v3151
    %v3880 = vpack.c.b16 %v3160, %v3152
    %v3881 = vpack.c.b16 %v3161, %v3153
    %v3882 = vpack.c.b16 %v3162, %v3154
    %v3883 = vpack.c.b16 %v3163, %v3155
    %v3884 = vpack.c.b16 %v3172, %v3164
    %v3885 = vpack.c.b16 %v3173, %v3165
    %v3886 = vpack.c.b16 %v3174, %v3166
    %v3887 = vpack.c.b16 %v3175, %v3167
    %v3888 = vpack.c.b16 %v3176, %v3168
    %v3889 = vpack.c.b16 %v3177, %v3169
    %v3890 = vpack.c.b16 %v3178, %v3170
    %v3891 = vpack.c.b16 %v3179, %v3171
    %v3892 = vpack.c.b16 %v3188, %v3180
    %v3893 = vpack.c.b16 %v3189, %v3181
    %v3894 = vpack.c.b16 %v3190, %v3182
    %v3895 = vpack.c.b16 %v3191, %v3183
    %v3896 = vpack.c.b16 %v3192, %v3184
    %v3897 = vpack.c.b16 %v3193, %v3185
    %v3898 = vpack.c.b16 %v3194, %v3186
    %v3899 = vpack.c.b16 %v3195, %v3187
    %v3900 = vpack.c.b16 %v3204, %v3196
    %v3901 = vpack.c.b16 %v3205, %v3197
    %v3902 = vpack.c.b16 %v3206, %v3198
    %v3903 = vpack.c.b16 %v3207, %v3199
    %v3904 = vpack.c.b16 %v3208, %v3200
    %v3905 = vpack.c.b16 %v3209, %v3201
    %v3906 = vpack.c.b16 %v3210, %v3202
    %v3907 = vpack.c.b16 %v3211, %v3203
    %v3908 = vpack.c.b16 %v3220, %v3212
    %v3909 = vpack.c.b16 %v3221, %v3213
    %v3910 = vpack.c.b16 %v3222, %v3214
    %v3911 = vpack.c.b16 %v3223, %v3215
    %v3912 = vpack.c.b16 %v3224, %v3216
    %v3913 = vpack.c.b16 %v3225, %v3217
    %v3914 = vpack.c.b16 %v3226, %v3218
    %v3915 = vpack.c.b16 %v3227, %v3219
    %v3916 = vpack.c.b16 %v3236, %v3228
    %v3917 = vpack.c.b16 %v3237, %v3229
    %v3918 = vpack.c.b16 %v3238, %v3230
    %v3919 = vpack.c.b16 %v3239, %v3231
    %v3920 = vpack.c.b16 %v3240, %v3232
    %v3921 = vpack.c.b16 %v3241, %v3233
    %v3922 = vpack.c.b16 %v3242, %v3234
    %v3923 = vpack.c.b16 %v3243, %v3235
    %v3924 = vpack.c.b16 %v3252, %v3244
    %v3925 = vpack.c.b16 %v3253, %v3245
    %v3926 = vpack.c.b16 %v3254, %v3246
    %v3927 = vpack.c.b16 %v3255, %v3247
    %v3928 = vpack.c.b16 %v3256, %v3248
    %v3929 = vpack.c.b16 %v3257, %v3249
    %v3930 = vpack.c.b16 %v3258, %v3250
    %v3931 = vpack.c.b16 %v3259, %v3251
    %v3932 = vpack.c.b16 %v3268, %v3260
    %v3933 = vpack.c.b16 %v3269, %v3261
    %v3934 = vpack.c.b16 %v3270, %v3262
    %v3935 = vpack.c.b16 %v3271, %v3263
    %v3936 = vpack.c.b16 %v3272, %v3264
    %v3937 = vpack.c.b16 %v3273, %v3265
    %v3938 = vpack.c.b16 %v3274, %v3266
    %v3939 = vpack.c.b16 %v3275, %v3267
    %v3940 = vpack.c.b16 %v3284, %v3276
    %v3941 = vpack.c.b16 %v3285, %v3277
    %v3942 = vpack.c.b16 %v3286, %v3278
    %v3943 = vpack.c.b16 %v3287, %v3279
    %v3944 = vpack.c.b16 %v3288, %v3280
    %v3945 = vpack.c.b16 %v3289, %v3281
    %v3946 = vpack.c.b16 %v3290, %v3282
    %v3947 = vpack.c.b16 %v3291, %v3283
    %v3948 = vpack.c.b16 %v3300, %v3292
    %v3949 = vpack.c.b16 %v3301, %v3293
    %v3950 = vpack.c.b16 %v3302, %v3294
    %v3951 = vpack.c.b16 %v3303, %v3295
    %v3952 = vpack.c.b16 %v3304, %v3296
    %v3953 = vpack.c.b16 %v3305, %v3297
    %v3954 = vpack.c.b16 %v3306, %v3298
    %v3955 = vpack.c.b16 %v3307, %v3299
    %v3956 = vpack.c.b16 %v3316, %v3308
    %v3957 = vpack.c.b16 %v3317, %v3309
    %v3958 = vpack.c.b16 %v3318, %v3310
    %v3959 = vpack.c.b16 %v3319, %v3311
    %v3960 = vpack.c.b16 %v3320, %v3312
    %v3961 = vpack.c.b16 %v3321, %v3313
    %v3962 = vpack.c.b16 %v3322, %v3314
    %v3963 = vpack.c.b16 %v3323, %v3315
    %v3964 = vpack.c.b16 %v3332, %v3324
    %v3965 = vpack.c.b16 %v3333, %v3325
    %v3966 = vpack.c.b16 %v3334, %v3326
    %v3967 = vpack.c.b16 %v3335, %v3327
    %v3968 = vpack.c.b16 %v3336, %v3328
    %v3969 = vpack.c.b16 %v3337, %v3329
    %v3970 = vpack.c.b16 %v3338, %v3330
    %v3971 = vpack.c.b16 %v3339, %v3331
    %v3972 = vpack.c.b16 %v3348, %v3340
    %v3973 = vpack.c.b16 %v3349, %v3341
    %v3974 = vpack.c.b16 %v3350, %v3342
    %v3975 = vpack.c.b16 %v3351, %v3343
    %v3976 = vpack.c.b16 %v3352, %v3344
    %v3977 = vpack.c.b16 %v3353, %v3345
    %v3978 = vpack.c.b16 %v3354, %v3346
    %v3979 = vpack.c.b16 %v3355, %v3347
    %v3980 = vpack.c.b16 %v3364, %v3356
    %v3981 = vpack.c.b16 %v3365, %v3357
    %v3982 = vpack.c.b16 %v3366, %v3358
    %v3983 = vpack.c.b16 %v3367, %v3359
    %v3984 = vpack.c.b16 %v3368, %v3360
    %v3985 = vpack.c.b16 %v3369, %v3361
    %v3986 = vpack.c.b16 %v3370, %v3362
    %v3987 = vpack.c.b16 %v3371, %v3363
    %v3988 = vpack.c.b16 %v3380, %v3372
    %v3989 = vpack.c.b16 %v3381, %v3373
    %v3990 = vpack.c.b16 %v3382, %v3374
    %v3991 = vpack.c.b16 %v3383, %v3375
    %v3992 = vpack.c.b16 %v3384, %v3376
    %v3993 = vpack.c.b16 %v3385, %v3377
    %v3994 = vpack.c.b16 %v3386, %v3378
    %v3995 = vpack.c.b16 %v3387, %v3379
    %v3996 = vpack.c.b16 %v3396, %v3388
    %v3997 = vpack.c.b16 %v3397, %v3389
    %v3998 = vpack.c.b16 %v3398, %v3390
    %v3999 = vpack.c.b16 %v3399, %v3391
    %v4000 = vpack.c.b16 %v3400, %v3392
    %v4001 = vpack.c.b16 %v3401, %v3393
    %v4002 = vpack.c.b16 %v3402, %v3394
    %v4003 = vpack.c.b16 %v3403, %v3395
    %v4004 = vpack.c.b16 %v3412, %v3404
    %v4005 = vpack.c.b16 %v3413, %v3405
    %v4006 = vpack.c.b16 %v3414, %v3406
    %v4007 = vpack.c.b16 %v3415, %v3407
    %v4008 = vpack.c.b16 %v3416, %v3408
    %v4009 = vpack.c.b16 %v3417, %v3409
    %v4010 = vpack.c.b16 %v3418, %v3410
    %v4011 = vpack.c.b16 %v3419, %v3411
    %v4012 = vpack.c.b16 %v3428, %v3420
    %v4013 = vpack.c.b16 %v3429, %v3421
    %v4014 = vpack.c.b16 %v3430, %v3422
    %v4015 = vpack.c.b16 %v3431, %v3423
    %v4016 = vpack.c.b16 %v3432, %v3424
    %v4017 = vpack.c.b16 %v3433, %v3425
    %v4018 = vpack.c.b16 %v3434, %v3426
    %v4019 = vpack.c.b16 %v3435, %v3427
    %v4020 = vpack.c.b16 %v3444, %v3436
    %v4021 = vpack.c.b16 %v3445, %v3437
    %v4022 = vpack.c.b16 %v3446, %v3438
    %v4023 = vpack.c.b16 %v3447, %v3439
    %v4024 = vpack.c.b16 %v3448, %v3440
    %v4025 = vpack.c.b16 %v3449, %v3441
    %v4026 = vpack.c.b16 %v3450, %v3442
    %v4027 = vpack.c.b16 %v3451, %v3443
    %v4028 = vpack.c.b16 %v3460, %v3452
    %v4029 = vpack.c.b16 %v3461, %v3453
    %v4030 = vpack.c.b16 %v3462, %v3454
    %v4031 = vpack.c.b16 %v3463, %v3455
    %v4032 = vpack.c.b16 %v3464, %v3456
    %v4033 = vpack.c.b16 %v3465, %v3457
    %v4034 = vpack.c.b16 %v3466, %v3458
    %v4035 = vpack.c.b16 %v3467, %v3459
    %v4036 = vpack.c.b16 %v3476, %v3468
    %v4037 = vpack.c.b16 %v3477, %v3469
    %v4038 = vpack.c.b16 %v3478, %v3470
    %v4039 = vpack.c.b16 %v3479, %v3471
    %v4040 = vpack.c.b16 %v3480, %v3472
    %v4041 = vpack.c.b16 %v3481, %v3473
    %v4042 = vpack.c.b16 %v3482, %v3474
    %v4043 = vpack.c.b16 %v3483, %v3475
    %v4044 = vpack.c.b16 %v3492, %v3484
    %v4045 = vpack.c.b16 %v3493, %v3485
    %v4046 = vpack.c.b16 %v3494, %v3486
    %v4047 = vpack.c.b16 %v3495, %v3487
    %v4048 = vpack.c.b16 %v3496, %v3488
    %v4049 = vpack.c.b16 %v3497, %v3489
    %v4050 = vpack.c.b16 %v3498, %v3490
    %v4051 = vpack.c.b16 %v3499, %v3491
    %v4052 = vpack.c.b16 %v3508, %v3500
    %v4053 = vpack.c.b16 %v3509, %v3501
    %v4054 = vpack.c.b16 %v3510, %v3502
    %v4055 = vpack.c.b16 %v3511, %v3503
    %v4056 = vpack.c.b16 %v3512, %v3504
    %v4057 = vpack.c.b16 %v3513, %v3505
    %v4058 = vpack.c.b16 %v3514, %v3506
    %v4059 = vpack.c.b16 %v3515, %v3507
    %v4060 = vpack.c.b16 %v3524, %v3516
    %v4061 = vpack.c.b16 %v3525, %v3517
    %v4062 = vpack.c.b16 %v3526, %v3518
    %v4063 = vpack.c.b16 %v3527, %v3519
    %v4064 = vpack.c.b16 %v3528, %v3520
    %v4065 = vpack.c.b16 %v3529, %v3521
    %v4066 = vpack.c.b16 %v3530, %v3522
    %v4067 = vpack.c.b16 %v3531, %v3523
    %v4068 = vpack.c.b16 %v3540, %v3532
    %v4069 = vpack.c.b16 %v3541, %v3533
    %v4070 = vpack.c.b16 %v3542, %v3534
    %v4071 = vpack.c.b16 %v3543, %v3535
    %v4072 = vpack.c.b16 %v3544, %v3536
    %v4073 = vpack.c.b16 %v3545, %v3537
    %v4074 = vpack.c.b16 %v3546, %v3538
    %v4075 = vpack.c.b16 %v3547, %v3539
    %v4076 = vpack.c.b16 %v3556, %v3548
    %v4077 = vpack.c.b16 %v3557, %v3549
    %v4078 = vpack.c.b16 %v3558, %v3550
    %v4079 = vpack.c.b16 %v3559, %v3551
    %v4080 = vpack.c.b16 %v3560, %v3552
    %v4081 = vpack.c.b16 %v3561, %v3553
    %v4082 = vpack.c.b16 %v3562, %v3554
    %v4083 = vpack.c.b16 %v3563, %v3555
    %v4084 = vpack.c.b16 %v3572, %v3564
    %v4085 = vpack.c.b16 %v3573, %v3565
    %v4086 = vpack.c.b16 %v3574, %v3566
    %v4087 = vpack.c.b16 %v3575, %v3567
    %v4088 = vpack.c.b16 %v3576, %v3568
    %v4089 = vpack.c.b16 %v3577, %v3569
    %v4090 = vpack.c.b16 %v3578, %v3570
    %v4091 = vpack.c.b16 %v3579, %v3571
    %4604 = vmatpush.bf16.msra.mxu0 %v3636
    %4605 = vmatpush.bf16.msra.mxu0 %v3628
    %4606 = vmatpush.bf16.msra.mxu0 %v3620
    %4607 = vmatpush.bf16.msra.mxu0 %v3612
    %4608 = vmatpush.bf16.msra.mxu0 %v3604
    %4609 = vmatpush.bf16.msra.mxu0 %v3596
    %4610 = vmatpush.bf16.msra.mxu0 %v3588
    %4611 = vmatpush.bf16.msra.mxu0 %v3580
    %4612 = vmatmul.bf16.gmra.mxu0 %v1505
    %v4613 = vpop.f32.mrf.mxu0
    %v4614 = vadd.f32 %v2028, %v4613
    %v4615 = vpop.f32.mrf.mxu0
    %v4616 = vadd.f32 %v2028, %v4615
    %4617 = vdwg.mxu0
    %4618 = vmatpush.bf16.msra.mxu0 %v3700
    %4619 = vmatpush.bf16.msra.mxu0 %v3692
    %4620 = vmatpush.bf16.msra.mxu0 %v3684
    %4621 = vmatpush.bf16.msra.mxu0 %v3676
    %4622 = vmatpush.bf16.msra.mxu0 %v3668
    %4623 = vmatpush.bf16.msra.mxu0 %v3660
    %4624 = vmatpush.bf16.msra.mxu0 %v3652
    %4625 = vmatpush.bf16.msra.mxu0 %v3644
    %4626 = vmatmul.bf16.gmra.mxu0 %v1506
    %v4627 = vpop.f32.mrf.mxu0
    %v4628 = vadd.f32 %v4614, %v4627
    %v4629 = vpop.f32.mrf.mxu0
    %v4630 = vadd.f32 %v4616, %v4629
    %4631 = vdwg.mxu0
    %4632 = vmatpush.bf16.msra.mxu0 %v3764
    %4633 = vmatpush.bf16.msra.mxu0 %v3756
    %4634 = vmatpush.bf16.msra.mxu0 %v3748
    %4635 = vmatpush.bf16.msra.mxu0 %v3740
    %4636 = vmatpush.bf16.msra.mxu0 %v3732
    %4637 = vmatpush.bf16.msra.mxu0 %v3724
    %4638 = vmatpush.bf16.msra.mxu0 %v3716
    %4639 = vmatpush.bf16.msra.mxu0 %v3708
    %4640 = vmatmul.bf16.gmra.mxu0 %v1507
    %v4641 = vpop.f32.mrf.mxu0
    %v4642 = vadd.f32 %v4628, %v4641
    %v4643 = vpop.f32.mrf.mxu0
    %v4644 = vadd.f32 %v4630, %v4643
    %4645 = vdwg.mxu0
    %4646 = vmatpush.bf16.msra.mxu0 %v3828
    %4647 = vmatpush.bf16.msra.mxu0 %v3820
    %4648 = vmatpush.bf16.msra.mxu0 %v3812
    %4649 = vmatpush.bf16.msra.mxu0 %v3804
    %4650 = vmatpush.bf16.msra.mxu0 %v3796
    %4651 = vmatpush.bf16.msra.mxu0 %v3788
    %4652 = vmatpush.bf16.msra.mxu0 %v3780
    %4653 = vmatpush.bf16.msra.mxu0 %v3772
    %4654 = vmatmul.bf16.gmra.mxu0 %v1508
    %v4655 = vpop.f32.mrf.mxu0
    %v4656 = vadd.f32 %v4642, %v4655
    %v4657 = vpop.f32.mrf.mxu0
    %v4658 = vadd.f32 %v4644, %v4657
    %4659 = vdwg.mxu0
    %4660 = vmatpush.bf16.msra.mxu0 %v3892
    %4661 = vmatpush.bf16.msra.mxu0 %v3884
    %4662 = vmatpush.bf16.msra.mxu0 %v3876
    %4663 = vmatpush.bf16.msra.mxu0 %v3868
    %4664 = vmatpush.bf16.msra.mxu0 %v3860
    %4665 = vmatpush.bf16.msra.mxu0 %v3852
    %4666 = vmatpush.bf16.msra.mxu0 %v3844
    %4667 = vmatpush.bf16.msra.mxu0 %v3836
    %4668 = vmatmul.bf16.gmra.mxu0 %v1509
    %v4669 = vpop.f32.mrf.mxu0
    %v4670 = vadd.f32 %v4656, %v4669
    %v4671 = vpop.f32.mrf.mxu0
    %v4672 = vadd.f32 %v4658, %v4671
    %4673 = vdwg.mxu0
    %4674 = vmatpush.bf16.msra.mxu0 %v3956
    %4675 = vmatpush.bf16.msra.mxu0 %v3948
    %4676 = vmatpush.bf16.msra.mxu0 %v3940
    %4677 = vmatpush.bf16.msra.mxu0 %v3932
    %4678 = vmatpush.bf16.msra.mxu0 %v3924
    %4679 = vmatpush.bf16.msra.mxu0 %v3916
    %4680 = vmatpush.bf16.msra.mxu0 %v3908
    %4681 = vmatpush.bf16.msra.mxu0 %v3900
    %4682 = vmatmul.bf16.gmra.mxu0 %v1510
    %v4683 = vpop.f32.mrf.mxu0
    %v4684 = vadd.f32 %v4670, %v4683
    %v4685 = vpop.f32.mrf.mxu0
    %v4686 = vadd.f32 %v4672, %v4685
    %4687 = vdwg.mxu0
    %4688 = vmatpush.bf16.msra.mxu0 %v4020
    %4689 = vmatpush.bf16.msra.mxu0 %v4012
    %4690 = vmatpush.bf16.msra.mxu0 %v4004
    %4691 = vmatpush.bf16.msra.mxu0 %v3996
    %4692 = vmatpush.bf16.msra.mxu0 %v3988
    %4693 = vmatpush.bf16.msra.mxu0 %v3980
    %4694 = vmatpush.bf16.msra.mxu0 %v3972
    %4695 = vmatpush.bf16.msra.mxu0 %v3964
    %4696 = vmatmul.bf16.gmra.mxu0 %v1511
    %v4697 = vpop.f32.mrf.mxu0
    %v4698 = vadd.f32 %v4684, %v4697
    %v4699 = vpop.f32.mrf.mxu0
    %v4700 = vadd.f32 %v4686, %v4699
    %4701 = vdwg.mxu0
    %4702 = vmatpush.bf16.msra.mxu0 %v4084
    %4703 = vmatpush.bf16.msra.mxu0 %v4076
    %4704 = vmatpush.bf16.msra.mxu0 %v4068
    %4705 = vmatpush.bf16.msra.mxu0 %v4060
    %4706 = vmatpush.bf16.msra.mxu0 %v4052
    %4707 = vmatpush.bf16.msra.mxu0 %v4044
    %4708 = vmatpush.bf16.msra.mxu0 %v4036
    %4709 = vmatpush.bf16.msra.mxu0 %v4028
    %4710 = vmatmul.bf16.gmra.mxu0 %v1512
    %v4711 = vpop.f32.mrf.mxu0
    %v4712 = vadd.f32 %v4698, %v4711
    %v4713 = vpop.f32.mrf.mxu0
    %v4714 = vadd.f32 %v4700, %v4713
    %4715 = vdwg.mxu0
    %4716 = vmatpush.bf16.msra.mxu0 %v3637
    %4717 = vmatpush.bf16.msra.mxu0 %v3629
    %4718 = vmatpush.bf16.msra.mxu0 %v3621
    %4719 = vmatpush.bf16.msra.mxu0 %v3613
    %4720 = vmatpush.bf16.msra.mxu0 %v3605
    %4721 = vmatpush.bf16.msra.mxu0 %v3597
    %4722 = vmatpush.bf16.msra.mxu0 %v3589
    %4723 = vmatpush.bf16.msra.mxu0 %v3581
    %4724 = vmatmul.bf16.gmra.mxu0 %v1505
    %v4725 = vpop.f32.mrf.mxu0
    %v4726 = vadd.f32 %v2029, %v4725
    %v4727 = vpop.f32.mrf.mxu0
    %v4728 = vadd.f32 %v2029, %v4727
    %4729 = vdwg.mxu0
    %4730 = vmatpush.bf16.msra.mxu0 %v3701
    %4731 = vmatpush.bf16.msra.mxu0 %v3693
    %4732 = vmatpush.bf16.msra.mxu0 %v3685
    %4733 = vmatpush.bf16.msra.mxu0 %v3677
    %4734 = vmatpush.bf16.msra.mxu0 %v3669
    %4735 = vmatpush.bf16.msra.mxu0 %v3661
    %4736 = vmatpush.bf16.msra.mxu0 %v3653
    %4737 = vmatpush.bf16.msra.mxu0 %v3645
    %4738 = vmatmul.bf16.gmra.mxu0 %v1506
    %v4739 = vpop.f32.mrf.mxu0
    %v4740 = vadd.f32 %v4726, %v4739
    %v4741 = vpop.f32.mrf.mxu0
    %v4742 = vadd.f32 %v4728, %v4741
    %4743 = vdwg.mxu0
    %4744 = vmatpush.bf16.msra.mxu0 %v3765
    %4745 = vmatpush.bf16.msra.mxu0 %v3757
    %4746 = vmatpush.bf16.msra.mxu0 %v3749
    %4747 = vmatpush.bf16.msra.mxu0 %v3741
    %4748 = vmatpush.bf16.msra.mxu0 %v3733
    %4749 = vmatpush.bf16.msra.mxu0 %v3725
    %4750 = vmatpush.bf16.msra.mxu0 %v3717
    %4751 = vmatpush.bf16.msra.mxu0 %v3709
    %4752 = vmatmul.bf16.gmra.mxu0 %v1507
    %v4753 = vpop.f32.mrf.mxu0
    %v4754 = vadd.f32 %v4740, %v4753
    %v4755 = vpop.f32.mrf.mxu0
    %v4756 = vadd.f32 %v4742, %v4755
    %4757 = vdwg.mxu0
    %4758 = vmatpush.bf16.msra.mxu0 %v3829
    %4759 = vmatpush.bf16.msra.mxu0 %v3821
    %4760 = vmatpush.bf16.msra.mxu0 %v3813
    %4761 = vmatpush.bf16.msra.mxu0 %v3805
    %4762 = vmatpush.bf16.msra.mxu0 %v3797
    %4763 = vmatpush.bf16.msra.mxu0 %v3789
    %4764 = vmatpush.bf16.msra.mxu0 %v3781
    %4765 = vmatpush.bf16.msra.mxu0 %v3773
    %4766 = vmatmul.bf16.gmra.mxu0 %v1508
    %v4767 = vpop.f32.mrf.mxu0
    %v4768 = vadd.f32 %v4754, %v4767
    %v4769 = vpop.f32.mrf.mxu0
    %v4770 = vadd.f32 %v4756, %v4769
    %4771 = vdwg.mxu0
    %4772 = vmatpush.bf16.msra.mxu0 %v3893
    %4773 = vmatpush.bf16.msra.mxu0 %v3885
    %4774 = vmatpush.bf16.msra.mxu0 %v3877
    %4775 = vmatpush.bf16.msra.mxu0 %v3869
    %4776 = vmatpush.bf16.msra.mxu0 %v3861
    %4777 = vmatpush.bf16.msra.mxu0 %v3853
    %4778 = vmatpush.bf16.msra.mxu0 %v3845
    %4779 = vmatpush.bf16.msra.mxu0 %v3837
    %4780 = vmatmul.bf16.gmra.mxu0 %v1509
    %v4781 = vpop.f32.mrf.mxu0
    %v4782 = vadd.f32 %v4768, %v4781
    %v4783 = vpop.f32.mrf.mxu0
    %v4784 = vadd.f32 %v4770, %v4783
    %4785 = vdwg.mxu0
    %4786 = vmatpush.bf16.msra.mxu0 %v3957
    %4787 = vmatpush.bf16.msra.mxu0 %v3949
    %4788 = vmatpush.bf16.msra.mxu0 %v3941
    %4789 = vmatpush.bf16.msra.mxu0 %v3933
    %4790 = vmatpush.bf16.msra.mxu0 %v3925
    %4791 = vmatpush.bf16.msra.mxu0 %v3917
    %4792 = vmatpush.bf16.msra.mxu0 %v3909
    %4793 = vmatpush.bf16.msra.mxu0 %v3901
    %4794 = vmatmul.bf16.gmra.mxu0 %v1510
    %v4795 = vpop.f32.mrf.mxu0
    %v4796 = vadd.f32 %v4782, %v4795
    %v4797 = vpop.f32.mrf.mxu0
    %v4798 = vadd.f32 %v4784, %v4797
    %4799 = vdwg.mxu0
    %4800 = vmatpush.bf16.msra.mxu0 %v4021
    %4801 = vmatpush.bf16.msra.mxu0 %v4013
    %4802 = vmatpush.bf16.msra.mxu0 %v4005
    %4803 = vmatpush.bf16.msra.mxu0 %v3997
    %4804 = vmatpush.bf16.msra.mxu0 %v3989
    %4805 = vmatpush.bf16.msra.mxu0 %v3981
    %4806 = vmatpush.bf16.msra.mxu0 %v3973
    %4807 = vmatpush.bf16.msra.mxu0 %v3965
    %4808 = vmatmul.bf16.gmra.mxu0 %v1511
    %v4809 = vpop.f32.mrf.mxu0
    %v4810 = vadd.f32 %v4796, %v4809
    %v4811 = vpop.f32.mrf.mxu0
    %v4812 = vadd.f32 %v4798, %v4811
    %4813 = vdwg.mxu0
    %4814 = vmatpush.bf16.msra.mxu0 %v4085
    %4815 = vmatpush.bf16.msra.mxu0 %v4077
    %4816 = vmatpush.bf16.msra.mxu0 %v4069
    %4817 = vmatpush.bf16.msra.mxu0 %v4061
    %4818 = vmatpush.bf16.msra.mxu0 %v4053
    %4819 = vmatpush.bf16.msra.mxu0 %v4045
    %4820 = vmatpush.bf16.msra.mxu0 %v4037
    %4821 = vmatpush.bf16.msra.mxu0 %v4029
    %4822 = vmatmul.bf16.gmra.mxu0 %v1512
    %v4823 = vpop.f32.mrf.mxu0
    %v4824 = vadd.f32 %v4810, %v4823
    %v4825 = vpop.f32.mrf.mxu0
    %v4826 = vadd.f32 %v4812, %v4825
    %4827 = vdwg.mxu0
    %4828 = vmatpush.bf16.msra.mxu0 %v3638
    %4829 = vmatpush.bf16.msra.mxu0 %v3630
    %4830 = vmatpush.bf16.msra.mxu0 %v3622
    %4831 = vmatpush.bf16.msra.mxu0 %v3614
    %4832 = vmatpush.bf16.msra.mxu0 %v3606
    %4833 = vmatpush.bf16.msra.mxu0 %v3598
    %4834 = vmatpush.bf16.msra.mxu0 %v3590
    %4835 = vmatpush.bf16.msra.mxu0 %v3582
    %4836 = vmatmul.bf16.gmra.mxu0 %v1505
    %v4837 = vpop.f32.mrf.mxu0
    %v4838 = vadd.f32 %v2030, %v4837
    %v4839 = vpop.f32.mrf.mxu0
    %v4840 = vadd.f32 %v2030, %v4839
    %4841 = vdwg.mxu0
    %4842 = vmatpush.bf16.msra.mxu0 %v3702
    %4843 = vmatpush.bf16.msra.mxu0 %v3694
    %4844 = vmatpush.bf16.msra.mxu0 %v3686
    %4845 = vmatpush.bf16.msra.mxu0 %v3678
    %4846 = vmatpush.bf16.msra.mxu0 %v3670
    %4847 = vmatpush.bf16.msra.mxu0 %v3662
    %4848 = vmatpush.bf16.msra.mxu0 %v3654
    %4849 = vmatpush.bf16.msra.mxu0 %v3646
    %4850 = vmatmul.bf16.gmra.mxu0 %v1506
    %v4851 = vpop.f32.mrf.mxu0
    %v4852 = vadd.f32 %v4838, %v4851
    %v4853 = vpop.f32.mrf.mxu0
    %v4854 = vadd.f32 %v4840, %v4853
    %4855 = vdwg.mxu0
    %4856 = vmatpush.bf16.msra.mxu0 %v3766
    %4857 = vmatpush.bf16.msra.mxu0 %v3758
    %4858 = vmatpush.bf16.msra.mxu0 %v3750
    %4859 = vmatpush.bf16.msra.mxu0 %v3742
    %4860 = vmatpush.bf16.msra.mxu0 %v3734
    %4861 = vmatpush.bf16.msra.mxu0 %v3726
    %4862 = vmatpush.bf16.msra.mxu0 %v3718
    %4863 = vmatpush.bf16.msra.mxu0 %v3710
    %4864 = vmatmul.bf16.gmra.mxu0 %v1507
    %v4865 = vpop.f32.mrf.mxu0
    %v4866 = vadd.f32 %v4852, %v4865
    %v4867 = vpop.f32.mrf.mxu0
    %v4868 = vadd.f32 %v4854, %v4867
    %4869 = vdwg.mxu0
    %4870 = vmatpush.bf16.msra.mxu0 %v3830
    %4871 = vmatpush.bf16.msra.mxu0 %v3822
    %4872 = vmatpush.bf16.msra.mxu0 %v3814
    %4873 = vmatpush.bf16.msra.mxu0 %v3806
    %4874 = vmatpush.bf16.msra.mxu0 %v3798
    %4875 = vmatpush.bf16.msra.mxu0 %v3790
    %4876 = vmatpush.bf16.msra.mxu0 %v3782
    %4877 = vmatpush.bf16.msra.mxu0 %v3774
    %4878 = vmatmul.bf16.gmra.mxu0 %v1508
    %v4879 = vpop.f32.mrf.mxu0
    %v4880 = vadd.f32 %v4866, %v4879
    %v4881 = vpop.f32.mrf.mxu0
    %v4882 = vadd.f32 %v4868, %v4881
    %4883 = vdwg.mxu0
    %4884 = vmatpush.bf16.msra.mxu0 %v3894
    %4885 = vmatpush.bf16.msra.mxu0 %v3886
    %4886 = vmatpush.bf16.msra.mxu0 %v3878
    %4887 = vmatpush.bf16.msra.mxu0 %v3870
    %4888 = vmatpush.bf16.msra.mxu0 %v3862
    %4889 = vmatpush.bf16.msra.mxu0 %v3854
    %4890 = vmatpush.bf16.msra.mxu0 %v3846
    %4891 = vmatpush.bf16.msra.mxu0 %v3838
    %4892 = vmatmul.bf16.gmra.mxu0 %v1509
    %v4893 = vpop.f32.mrf.mxu0
    %v4894 = vadd.f32 %v4880, %v4893
    %v4895 = vpop.f32.mrf.mxu0
    %v4896 = vadd.f32 %v4882, %v4895
    %4897 = vdwg.mxu0
    %4898 = vmatpush.bf16.msra.mxu0 %v3958
    %4899 = vmatpush.bf16.msra.mxu0 %v3950
    %4900 = vmatpush.bf16.msra.mxu0 %v3942
    %4901 = vmatpush.bf16.msra.mxu0 %v3934
    %4902 = vmatpush.bf16.msra.mxu0 %v3926
    %4903 = vmatpush.bf16.msra.mxu0 %v3918
    %4904 = vmatpush.bf16.msra.mxu0 %v3910
    %4905 = vmatpush.bf16.msra.mxu0 %v3902
    %4906 = vmatmul.bf16.gmra.mxu0 %v1510
    %v4907 = vpop.f32.mrf.mxu0
    %v4908 = vadd.f32 %v4894, %v4907
    %v4909 = vpop.f32.mrf.mxu0
    %v4910 = vadd.f32 %v4896, %v4909
    %4911 = vdwg.mxu0
    %4912 = vmatpush.bf16.msra.mxu0 %v4022
    %4913 = vmatpush.bf16.msra.mxu0 %v4014
    %4914 = vmatpush.bf16.msra.mxu0 %v4006
    %4915 = vmatpush.bf16.msra.mxu0 %v3998
    %4916 = vmatpush.bf16.msra.mxu0 %v3990
    %4917 = vmatpush.bf16.msra.mxu0 %v3982
    %4918 = vmatpush.bf16.msra.mxu0 %v3974
    %4919 = vmatpush.bf16.msra.mxu0 %v3966
    %4920 = vmatmul.bf16.gmra.mxu0 %v1511
    %v4921 = vpop.f32.mrf.mxu0
    %v4922 = vadd.f32 %v4908, %v4921
    %v4923 = vpop.f32.mrf.mxu0
    %v4924 = vadd.f32 %v4910, %v4923
    %4925 = vdwg.mxu0
    %4926 = vmatpush.bf16.msra.mxu0 %v4086
    %4927 = vmatpush.bf16.msra.mxu0 %v4078
    %4928 = vmatpush.bf16.msra.mxu0 %v4070
    %4929 = vmatpush.bf16.msra.mxu0 %v4062
    %4930 = vmatpush.bf16.msra.mxu0 %v4054
    %4931 = vmatpush.bf16.msra.mxu0 %v4046
    %4932 = vmatpush.bf16.msra.mxu0 %v4038
    %4933 = vmatpush.bf16.msra.mxu0 %v4030
    %4934 = vmatmul.bf16.gmra.mxu0 %v1512
    %v4935 = vpop.f32.mrf.mxu0
    %v4936 = vadd.f32 %v4922, %v4935
    %v4937 = vpop.f32.mrf.mxu0
    %v4938 = vadd.f32 %v4924, %v4937
    %4939 = vdwg.mxu0
    %4940 = vmatpush.bf16.msra.mxu0 %v3639
    %4941 = vmatpush.bf16.msra.mxu0 %v3631
    %4942 = vmatpush.bf16.msra.mxu0 %v3623
    %4943 = vmatpush.bf16.msra.mxu0 %v3615
    %4944 = vmatpush.bf16.msra.mxu0 %v3607
    %4945 = vmatpush.bf16.msra.mxu0 %v3599
    %4946 = vmatpush.bf16.msra.mxu0 %v3591
    %4947 = vmatpush.bf16.msra.mxu0 %v3583
    %4948 = vmatmul.bf16.gmra.mxu0 %v1505
    %v4949 = vpop.f32.mrf.mxu0
    %v4950 = vadd.f32 %v2031, %v4949
    %v4951 = vpop.f32.mrf.mxu0
    %v4952 = vadd.f32 %v2031, %v4951
    %4953 = vdwg.mxu0
    %4954 = vmatpush.bf16.msra.mxu0 %v3703
    %4955 = vmatpush.bf16.msra.mxu0 %v3695
    %4956 = vmatpush.bf16.msra.mxu0 %v3687
    %4957 = vmatpush.bf16.msra.mxu0 %v3679
    %4958 = vmatpush.bf16.msra.mxu0 %v3671
    %4959 = vmatpush.bf16.msra.mxu0 %v3663
    %4960 = vmatpush.bf16.msra.mxu0 %v3655
    %4961 = vmatpush.bf16.msra.mxu0 %v3647
    %4962 = vmatmul.bf16.gmra.mxu0 %v1506
    %v4963 = vpop.f32.mrf.mxu0
    %v4964 = vadd.f32 %v4950, %v4963
    %v4965 = vpop.f32.mrf.mxu0
    %v4966 = vadd.f32 %v4952, %v4965
    %4967 = vdwg.mxu0
    %4968 = vmatpush.bf16.msra.mxu0 %v3767
    %4969 = vmatpush.bf16.msra.mxu0 %v3759
    %4970 = vmatpush.bf16.msra.mxu0 %v3751
    %4971 = vmatpush.bf16.msra.mxu0 %v3743
    %4972 = vmatpush.bf16.msra.mxu0 %v3735
    %4973 = vmatpush.bf16.msra.mxu0 %v3727
    %4974 = vmatpush.bf16.msra.mxu0 %v3719
    %4975 = vmatpush.bf16.msra.mxu0 %v3711
    %4976 = vmatmul.bf16.gmra.mxu0 %v1507
    %v4977 = vpop.f32.mrf.mxu0
    %v4978 = vadd.f32 %v4964, %v4977
    %v4979 = vpop.f32.mrf.mxu0
    %v4980 = vadd.f32 %v4966, %v4979
    %4981 = vdwg.mxu0
    %4982 = vmatpush.bf16.msra.mxu0 %v3831
    %4983 = vmatpush.bf16.msra.mxu0 %v3823
    %4984 = vmatpush.bf16.msra.mxu0 %v3815
    %4985 = vmatpush.bf16.msra.mxu0 %v3807
    %4986 = vmatpush.bf16.msra.mxu0 %v3799
    %4987 = vmatpush.bf16.msra.mxu0 %v3791
    %4988 = vmatpush.bf16.msra.mxu0 %v3783
    %4989 = vmatpush.bf16.msra.mxu0 %v3775
    %4990 = vmatmul.bf16.gmra.mxu0 %v1508
    %v4991 = vpop.f32.mrf.mxu0
    %v4992 = vadd.f32 %v4978, %v4991
    %v4993 = vpop.f32.mrf.mxu0
    %v4994 = vadd.f32 %v4980, %v4993
    %4995 = vdwg.mxu0
    %4996 = vmatpush.bf16.msra.mxu0 %v3895
    %4997 = vmatpush.bf16.msra.mxu0 %v3887
    %4998 = vmatpush.bf16.msra.mxu0 %v3879
    %4999 = vmatpush.bf16.msra.mxu0 %v3871
    %5000 = vmatpush.bf16.msra.mxu0 %v3863
    %5001 = vmatpush.bf16.msra.mxu0 %v3855
    %5002 = vmatpush.bf16.msra.mxu0 %v3847
    %5003 = vmatpush.bf16.msra.mxu0 %v3839
    %5004 = vmatmul.bf16.gmra.mxu0 %v1509
    %v5005 = vpop.f32.mrf.mxu0
    %v5006 = vadd.f32 %v4992, %v5005
    %v5007 = vpop.f32.mrf.mxu0
    %v5008 = vadd.f32 %v4994, %v5007
    %5009 = vdwg.mxu0
    %5010 = vmatpush.bf16.msra.mxu0 %v3959
    %5011 = vmatpush.bf16.msra.mxu0 %v3951
    %5012 = vmatpush.bf16.msra.mxu0 %v3943
    %5013 = vmatpush.bf16.msra.mxu0 %v3935
    %5014 = vmatpush.bf16.msra.mxu0 %v3927
    %5015 = vmatpush.bf16.msra.mxu0 %v3919
    %5016 = vmatpush.bf16.msra.mxu0 %v3911
    %5017 = vmatpush.bf16.msra.mxu0 %v3903
    %5018 = vmatmul.bf16.gmra.mxu0 %v1510
    %v5019 = vpop.f32.mrf.mxu0
    %v5020 = vadd.f32 %v5006, %v5019
    %v5021 = vpop.f32.mrf.mxu0
    %v5022 = vadd.f32 %v5008, %v5021
    %5023 = vdwg.mxu0
    %5024 = vmatpush.bf16.msra.mxu0 %v4023
    %5025 = vmatpush.bf16.msra.mxu0 %v4015
    %5026 = vmatpush.bf16.msra.mxu0 %v4007
    %5027 = vmatpush.bf16.msra.mxu0 %v3999
    %5028 = vmatpush.bf16.msra.mxu0 %v3991
    %5029 = vmatpush.bf16.msra.mxu0 %v3983
    %5030 = vmatpush.bf16.msra.mxu0 %v3975
    %5031 = vmatpush.bf16.msra.mxu0 %v3967
    %5032 = vmatmul.bf16.gmra.mxu0 %v1511
    %v5033 = vpop.f32.mrf.mxu0
    %v5034 = vadd.f32 %v5020, %v5033
    %v5035 = vpop.f32.mrf.mxu0
    %v5036 = vadd.f32 %v5022, %v5035
    %5037 = vdwg.mxu0
    %5038 = vmatpush.bf16.msra.mxu0 %v4087
    %5039 = vmatpush.bf16.msra.mxu0 %v4079
    %5040 = vmatpush.bf16.msra.mxu0 %v4071
    %5041 = vmatpush.bf16.msra.mxu0 %v4063
    %5042 = vmatpush.bf16.msra.mxu0 %v4055
    %5043 = vmatpush.bf16.msra.mxu0 %v4047
    %5044 = vmatpush.bf16.msra.mxu0 %v4039
    %5045 = vmatpush.bf16.msra.mxu0 %v4031
    %5046 = vmatmul.bf16.gmra.mxu0 %v1512
    %v5047 = vpop.f32.mrf.mxu0
    %v5048 = vadd.f32 %v5034, %v5047
    %v5049 = vpop.f32.mrf.mxu0
    %v5050 = vadd.f32 %v5036, %v5049
    %5051 = vdwg.mxu0
    %5052 = vmatpush.bf16.msra.mxu0 %v3640
    %5053 = vmatpush.bf16.msra.mxu0 %v3632
    %5054 = vmatpush.bf16.msra.mxu0 %v3624
    %5055 = vmatpush.bf16.msra.mxu0 %v3616
    %5056 = vmatpush.bf16.msra.mxu0 %v3608
    %5057 = vmatpush.bf16.msra.mxu0 %v3600
    %5058 = vmatpush.bf16.msra.mxu0 %v3592
    %5059 = vmatpush.bf16.msra.mxu0 %v3584
    %5060 = vmatmul.bf16.gmra.mxu0 %v1505
    %v5061 = vpop.f32.mrf.mxu0
    %v5062 = vadd.f32 %v2032, %v5061
    %v5063 = vpop.f32.mrf.mxu0
    %v5064 = vadd.f32 %v2032, %v5063
    %5065 = vdwg.mxu0
    %5066 = vmatpush.bf16.msra.mxu0 %v3704
    %5067 = vmatpush.bf16.msra.mxu0 %v3696
    %5068 = vmatpush.bf16.msra.mxu0 %v3688
    %5069 = vmatpush.bf16.msra.mxu0 %v3680
    %5070 = vmatpush.bf16.msra.mxu0 %v3672
    %5071 = vmatpush.bf16.msra.mxu0 %v3664
    %5072 = vmatpush.bf16.msra.mxu0 %v3656
    %5073 = vmatpush.bf16.msra.mxu0 %v3648
    %5074 = vmatmul.bf16.gmra.mxu0 %v1506
    %v5075 = vpop.f32.mrf.mxu0
    %v5076 = vadd.f32 %v5062, %v5075
    %v5077 = vpop.f32.mrf.mxu0
    %v5078 = vadd.f32 %v5064, %v5077
    %5079 = vdwg.mxu0
    %5080 = vmatpush.bf16.msra.mxu0 %v3768
    %5081 = vmatpush.bf16.msra.mxu0 %v3760
    %5082 = vmatpush.bf16.msra.mxu0 %v3752
    %5083 = vmatpush.bf16.msra.mxu0 %v3744
    %5084 = vmatpush.bf16.msra.mxu0 %v3736
    %5085 = vmatpush.bf16.msra.mxu0 %v3728
    %5086 = vmatpush.bf16.msra.mxu0 %v3720
    %5087 = vmatpush.bf16.msra.mxu0 %v3712
    %5088 = vmatmul.bf16.gmra.mxu0 %v1507
    %v5089 = vpop.f32.mrf.mxu0
    %v5090 = vadd.f32 %v5076, %v5089
    %v5091 = vpop.f32.mrf.mxu0
    %v5092 = vadd.f32 %v5078, %v5091
    %5093 = vdwg.mxu0
    %5094 = vmatpush.bf16.msra.mxu0 %v3832
    %5095 = vmatpush.bf16.msra.mxu0 %v3824
    %5096 = vmatpush.bf16.msra.mxu0 %v3816
    %5097 = vmatpush.bf16.msra.mxu0 %v3808
    %5098 = vmatpush.bf16.msra.mxu0 %v3800
    %5099 = vmatpush.bf16.msra.mxu0 %v3792
    %5100 = vmatpush.bf16.msra.mxu0 %v3784
    %5101 = vmatpush.bf16.msra.mxu0 %v3776
    %5102 = vmatmul.bf16.gmra.mxu0 %v1508
    %v5103 = vpop.f32.mrf.mxu0
    %v5104 = vadd.f32 %v5090, %v5103
    %v5105 = vpop.f32.mrf.mxu0
    %v5106 = vadd.f32 %v5092, %v5105
    %5107 = vdwg.mxu0
    %5108 = vmatpush.bf16.msra.mxu0 %v3896
    %5109 = vmatpush.bf16.msra.mxu0 %v3888
    %5110 = vmatpush.bf16.msra.mxu0 %v3880
    %5111 = vmatpush.bf16.msra.mxu0 %v3872
    %5112 = vmatpush.bf16.msra.mxu0 %v3864
    %5113 = vmatpush.bf16.msra.mxu0 %v3856
    %5114 = vmatpush.bf16.msra.mxu0 %v3848
    %5115 = vmatpush.bf16.msra.mxu0 %v3840
    %5116 = vmatmul.bf16.gmra.mxu0 %v1509
    %v5117 = vpop.f32.mrf.mxu0
    %v5118 = vadd.f32 %v5104, %v5117
    %v5119 = vpop.f32.mrf.mxu0
    %v5120 = vadd.f32 %v5106, %v5119
    %5121 = vdwg.mxu0
    %5122 = vmatpush.bf16.msra.mxu0 %v3960
    %5123 = vmatpush.bf16.msra.mxu0 %v3952
    %5124 = vmatpush.bf16.msra.mxu0 %v3944
    %5125 = vmatpush.bf16.msra.mxu0 %v3936
    %5126 = vmatpush.bf16.msra.mxu0 %v3928
    %5127 = vmatpush.bf16.msra.mxu0 %v3920
    %5128 = vmatpush.bf16.msra.mxu0 %v3912
    %5129 = vmatpush.bf16.msra.mxu0 %v3904
    %5130 = vmatmul.bf16.gmra.mxu0 %v1510
    %v5131 = vpop.f32.mrf.mxu0
    %v5132 = vadd.f32 %v5118, %v5131
    %v5133 = vpop.f32.mrf.mxu0
    %v5134 = vadd.f32 %v5120, %v5133
    %5135 = vdwg.mxu0
    %5136 = vmatpush.bf16.msra.mxu0 %v4024
    %5137 = vmatpush.bf16.msra.mxu0 %v4016
    %5138 = vmatpush.bf16.msra.mxu0 %v4008
    %5139 = vmatpush.bf16.msra.mxu0 %v4000
    %5140 = vmatpush.bf16.msra.mxu0 %v3992
    %5141 = vmatpush.bf16.msra.mxu0 %v3984
    %5142 = vmatpush.bf16.msra.mxu0 %v3976
    %5143 = vmatpush.bf16.msra.mxu0 %v3968
    %5144 = vmatmul.bf16.gmra.mxu0 %v1511
    %v5145 = vpop.f32.mrf.mxu0
    %v5146 = vadd.f32 %v5132, %v5145
    %v5147 = vpop.f32.mrf.mxu0
    %v5148 = vadd.f32 %v5134, %v5147
    %5149 = vdwg.mxu0
    %5150 = vmatpush.bf16.msra.mxu0 %v4088
    %5151 = vmatpush.bf16.msra.mxu0 %v4080
    %5152 = vmatpush.bf16.msra.mxu0 %v4072
    %5153 = vmatpush.bf16.msra.mxu0 %v4064
    %5154 = vmatpush.bf16.msra.mxu0 %v4056
    %5155 = vmatpush.bf16.msra.mxu0 %v4048
    %5156 = vmatpush.bf16.msra.mxu0 %v4040
    %5157 = vmatpush.bf16.msra.mxu0 %v4032
    %5158 = vmatmul.bf16.gmra.mxu0 %v1512
    %v5159 = vpop.f32.mrf.mxu0
    %v5160 = vadd.f32 %v5146, %v5159
    %v5161 = vpop.f32.mrf.mxu0
    %v5162 = vadd.f32 %v5148, %v5161
    %5163 = vdwg.mxu0
    %5164 = vmatpush.bf16.msra.mxu0 %v3641
    %5165 = vmatpush.bf16.msra.mxu0 %v3633
    %5166 = vmatpush.bf16.msra.mxu0 %v3625
    %5167 = vmatpush.bf16.msra.mxu0 %v3617
    %5168 = vmatpush.bf16.msra.mxu0 %v3609
    %5169 = vmatpush.bf16.msra.mxu0 %v3601
    %5170 = vmatpush.bf16.msra.mxu0 %v3593
    %5171 = vmatpush.bf16.msra.mxu0 %v3585
    %5172 = vmatmul.bf16.gmra.mxu0 %v1505
    %v5173 = vpop.f32.mrf.mxu0
    %v5174 = vadd.f32 %v2033, %v5173
    %v5175 = vpop.f32.mrf.mxu0
    %v5176 = vadd.f32 %v2033, %v5175
    %5177 = vdwg.mxu0
    %5178 = vmatpush.bf16.msra.mxu0 %v3705
    %5179 = vmatpush.bf16.msra.mxu0 %v3697
    %5180 = vmatpush.bf16.msra.mxu0 %v3689
    %5181 = vmatpush.bf16.msra.mxu0 %v3681
    %5182 = vmatpush.bf16.msra.mxu0 %v3673
    %5183 = vmatpush.bf16.msra.mxu0 %v3665
    %5184 = vmatpush.bf16.msra.mxu0 %v3657
    %5185 = vmatpush.bf16.msra.mxu0 %v3649
    %5186 = vmatmul.bf16.gmra.mxu0 %v1506
    %v5187 = vpop.f32.mrf.mxu0
    %v5188 = vadd.f32 %v5174, %v5187
    %v5189 = vpop.f32.mrf.mxu0
    %v5190 = vadd.f32 %v5176, %v5189
    %5191 = vdwg.mxu0
    %5192 = vmatpush.bf16.msra.mxu0 %v3769
    %5193 = vmatpush.bf16.msra.mxu0 %v3761
    %5194 = vmatpush.bf16.msra.mxu0 %v3753
    %5195 = vmatpush.bf16.msra.mxu0 %v3745
    %5196 = vmatpush.bf16.msra.mxu0 %v3737
    %5197 = vmatpush.bf16.msra.mxu0 %v3729
    %5198 = vmatpush.bf16.msra.mxu0 %v3721
    %5199 = vmatpush.bf16.msra.mxu0 %v3713
    %5200 = vmatmul.bf16.gmra.mxu0 %v1507
    %v5201 = vpop.f32.mrf.mxu0
    %v5202 = vadd.f32 %v5188, %v5201
    %v5203 = vpop.f32.mrf.mxu0
    %v5204 = vadd.f32 %v5190, %v5203
    %5205 = vdwg.mxu0
    %5206 = vmatpush.bf16.msra.mxu0 %v3833
    %5207 = vmatpush.bf16.msra.mxu0 %v3825
    %5208 = vmatpush.bf16.msra.mxu0 %v3817
    %5209 = vmatpush.bf16.msra.mxu0 %v3809
    %5210 = vmatpush.bf16.msra.mxu0 %v3801
    %5211 = vmatpush.bf16.msra.mxu0 %v3793
    %5212 = vmatpush.bf16.msra.mxu0 %v3785
    %5213 = vmatpush.bf16.msra.mxu0 %v3777
    %5214 = vmatmul.bf16.gmra.mxu0 %v1508
    %v5215 = vpop.f32.mrf.mxu0
    %v5216 = vadd.f32 %v5202, %v5215
    %v5217 = vpop.f32.mrf.mxu0
    %v5218 = vadd.f32 %v5204, %v5217
    %5219 = vdwg.mxu0
    %5220 = vmatpush.bf16.msra.mxu0 %v3897
    %5221 = vmatpush.bf16.msra.mxu0 %v3889
    %5222 = vmatpush.bf16.msra.mxu0 %v3881
    %5223 = vmatpush.bf16.msra.mxu0 %v3873
    %5224 = vmatpush.bf16.msra.mxu0 %v3865
    %5225 = vmatpush.bf16.msra.mxu0 %v3857
    %5226 = vmatpush.bf16.msra.mxu0 %v3849
    %5227 = vmatpush.bf16.msra.mxu0 %v3841
    %5228 = vmatmul.bf16.gmra.mxu0 %v1509
    %v5229 = vpop.f32.mrf.mxu0
    %v5230 = vadd.f32 %v5216, %v5229
    %v5231 = vpop.f32.mrf.mxu0
    %v5232 = vadd.f32 %v5218, %v5231
    %5233 = vdwg.mxu0
    %5234 = vmatpush.bf16.msra.mxu0 %v3961
    %5235 = vmatpush.bf16.msra.mxu0 %v3953
    %5236 = vmatpush.bf16.msra.mxu0 %v3945
    %5237 = vmatpush.bf16.msra.mxu0 %v3937
    %5238 = vmatpush.bf16.msra.mxu0 %v3929
    %5239 = vmatpush.bf16.msra.mxu0 %v3921
    %5240 = vmatpush.bf16.msra.mxu0 %v3913
    %5241 = vmatpush.bf16.msra.mxu0 %v3905
    %5242 = vmatmul.bf16.gmra.mxu0 %v1510
    %v5243 = vpop.f32.mrf.mxu0
    %v5244 = vadd.f32 %v5230, %v5243
    %v5245 = vpop.f32.mrf.mxu0
    %v5246 = vadd.f32 %v5232, %v5245
    %5247 = vdwg.mxu0
    %5248 = vmatpush.bf16.msra.mxu0 %v4025
    %5249 = vmatpush.bf16.msra.mxu0 %v4017
    %5250 = vmatpush.bf16.msra.mxu0 %v4009
    %5251 = vmatpush.bf16.msra.mxu0 %v4001
    %5252 = vmatpush.bf16.msra.mxu0 %v3993
    %5253 = vmatpush.bf16.msra.mxu0 %v3985
    %5254 = vmatpush.bf16.msra.mxu0 %v3977
    %5255 = vmatpush.bf16.msra.mxu0 %v3969
    %5256 = vmatmul.bf16.gmra.mxu0 %v1511
    %v5257 = vpop.f32.mrf.mxu0
    %v5258 = vadd.f32 %v5244, %v5257
    %v5259 = vpop.f32.mrf.mxu0
    %v5260 = vadd.f32 %v5246, %v5259
    %5261 = vdwg.mxu0
    %5262 = vmatpush.bf16.msra.mxu0 %v4089
    %5263 = vmatpush.bf16.msra.mxu0 %v4081
    %5264 = vmatpush.bf16.msra.mxu0 %v4073
    %5265 = vmatpush.bf16.msra.mxu0 %v4065
    %5266 = vmatpush.bf16.msra.mxu0 %v4057
    %5267 = vmatpush.bf16.msra.mxu0 %v4049
    %5268 = vmatpush.bf16.msra.mxu0 %v4041
    %5269 = vmatpush.bf16.msra.mxu0 %v4033
    %5270 = vmatmul.bf16.gmra.mxu0 %v1512
    %v5271 = vpop.f32.mrf.mxu0
    %v5272 = vadd.f32 %v5258, %v5271
    %v5273 = vpop.f32.mrf.mxu0
    %v5274 = vadd.f32 %v5260, %v5273
    %5275 = vdwg.mxu0
    %5276 = vmatpush.bf16.msra.mxu0 %v3642
    %5277 = vmatpush.bf16.msra.mxu0 %v3634
    %5278 = vmatpush.bf16.msra.mxu0 %v3626
    %5279 = vmatpush.bf16.msra.mxu0 %v3618
    %5280 = vmatpush.bf16.msra.mxu0 %v3610
    %5281 = vmatpush.bf16.msra.mxu0 %v3602
    %5282 = vmatpush.bf16.msra.mxu0 %v3594
    %5283 = vmatpush.bf16.msra.mxu0 %v3586
    %5284 = vmatmul.bf16.gmra.mxu0 %v1505
    %v5285 = vpop.f32.mrf.mxu0
    %v5286 = vadd.f32 %v2034, %v5285
    %v5287 = vpop.f32.mrf.mxu0
    %v5288 = vadd.f32 %v2034, %v5287
    %5289 = vdwg.mxu0
    %5290 = vmatpush.bf16.msra.mxu0 %v3706
    %5291 = vmatpush.bf16.msra.mxu0 %v3698
    %5292 = vmatpush.bf16.msra.mxu0 %v3690
    %5293 = vmatpush.bf16.msra.mxu0 %v3682
    %5294 = vmatpush.bf16.msra.mxu0 %v3674
    %5295 = vmatpush.bf16.msra.mxu0 %v3666
    %5296 = vmatpush.bf16.msra.mxu0 %v3658
    %5297 = vmatpush.bf16.msra.mxu0 %v3650
    %5298 = vmatmul.bf16.gmra.mxu0 %v1506
    %v5299 = vpop.f32.mrf.mxu0
    %v5300 = vadd.f32 %v5286, %v5299
    %v5301 = vpop.f32.mrf.mxu0
    %v5302 = vadd.f32 %v5288, %v5301
    %5303 = vdwg.mxu0
    %5304 = vmatpush.bf16.msra.mxu0 %v3770
    %5305 = vmatpush.bf16.msra.mxu0 %v3762
    %5306 = vmatpush.bf16.msra.mxu0 %v3754
    %5307 = vmatpush.bf16.msra.mxu0 %v3746
    %5308 = vmatpush.bf16.msra.mxu0 %v3738
    %5309 = vmatpush.bf16.msra.mxu0 %v3730
    %5310 = vmatpush.bf16.msra.mxu0 %v3722
    %5311 = vmatpush.bf16.msra.mxu0 %v3714
    %5312 = vmatmul.bf16.gmra.mxu0 %v1507
    %v5313 = vpop.f32.mrf.mxu0
    %v5314 = vadd.f32 %v5300, %v5313
    %v5315 = vpop.f32.mrf.mxu0
    %v5316 = vadd.f32 %v5302, %v5315
    %5317 = vdwg.mxu0
    %5318 = vmatpush.bf16.msra.mxu0 %v3834
    %5319 = vmatpush.bf16.msra.mxu0 %v3826
    %5320 = vmatpush.bf16.msra.mxu0 %v3818
    %5321 = vmatpush.bf16.msra.mxu0 %v3810
    %5322 = vmatpush.bf16.msra.mxu0 %v3802
    %5323 = vmatpush.bf16.msra.mxu0 %v3794
    %5324 = vmatpush.bf16.msra.mxu0 %v3786
    %5325 = vmatpush.bf16.msra.mxu0 %v3778
    %5326 = vmatmul.bf16.gmra.mxu0 %v1508
    %v5327 = vpop.f32.mrf.mxu0
    %v5328 = vadd.f32 %v5314, %v5327
    %v5329 = vpop.f32.mrf.mxu0
    %v5330 = vadd.f32 %v5316, %v5329
    %5331 = vdwg.mxu0
    %5332 = vmatpush.bf16.msra.mxu0 %v3898
    %5333 = vmatpush.bf16.msra.mxu0 %v3890
    %5334 = vmatpush.bf16.msra.mxu0 %v3882
    %5335 = vmatpush.bf16.msra.mxu0 %v3874
    %5336 = vmatpush.bf16.msra.mxu0 %v3866
    %5337 = vmatpush.bf16.msra.mxu0 %v3858
    %5338 = vmatpush.bf16.msra.mxu0 %v3850
    %5339 = vmatpush.bf16.msra.mxu0 %v3842
    %5340 = vmatmul.bf16.gmra.mxu0 %v1509
    %v5341 = vpop.f32.mrf.mxu0
    %v5342 = vadd.f32 %v5328, %v5341
    %v5343 = vpop.f32.mrf.mxu0
    %v5344 = vadd.f32 %v5330, %v5343
    %5345 = vdwg.mxu0
    %5346 = vmatpush.bf16.msra.mxu0 %v3962
    %5347 = vmatpush.bf16.msra.mxu0 %v3954
    %5348 = vmatpush.bf16.msra.mxu0 %v3946
    %5349 = vmatpush.bf16.msra.mxu0 %v3938
    %5350 = vmatpush.bf16.msra.mxu0 %v3930
    %5351 = vmatpush.bf16.msra.mxu0 %v3922
    %5352 = vmatpush.bf16.msra.mxu0 %v3914
    %5353 = vmatpush.bf16.msra.mxu0 %v3906
    %5354 = vmatmul.bf16.gmra.mxu0 %v1510
    %v5355 = vpop.f32.mrf.mxu0
    %v5356 = vadd.f32 %v5342, %v5355
    %v5357 = vpop.f32.mrf.mxu0
    %v5358 = vadd.f32 %v5344, %v5357
    %5359 = vdwg.mxu0
    %5360 = vmatpush.bf16.msra.mxu0 %v4026
    %5361 = vmatpush.bf16.msra.mxu0 %v4018
    %5362 = vmatpush.bf16.msra.mxu0 %v4010
    %5363 = vmatpush.bf16.msra.mxu0 %v4002
    %5364 = vmatpush.bf16.msra.mxu0 %v3994
    %5365 = vmatpush.bf16.msra.mxu0 %v3986
    %5366 = vmatpush.bf16.msra.mxu0 %v3978
    %5367 = vmatpush.bf16.msra.mxu0 %v3970
    %5368 = vmatmul.bf16.gmra.mxu0 %v1511
    %v5369 = vpop.f32.mrf.mxu0
    %v5370 = vadd.f32 %v5356, %v5369
    %v5371 = vpop.f32.mrf.mxu0
    %v5372 = vadd.f32 %v5358, %v5371
    %5373 = vdwg.mxu0
    %5374 = vmatpush.bf16.msra.mxu0 %v4090
    %5375 = vmatpush.bf16.msra.mxu0 %v4082
    %5376 = vmatpush.bf16.msra.mxu0 %v4074
    %5377 = vmatpush.bf16.msra.mxu0 %v4066
    %5378 = vmatpush.bf16.msra.mxu0 %v4058
    %5379 = vmatpush.bf16.msra.mxu0 %v4050
    %5380 = vmatpush.bf16.msra.mxu0 %v4042
    %5381 = vmatpush.bf16.msra.mxu0 %v4034
    %5382 = vmatmul.bf16.gmra.mxu0 %v1512
    %v5383 = vpop.f32.mrf.mxu0
    %v5384 = vadd.f32 %v5370, %v5383
    %v5385 = vpop.f32.mrf.mxu0
    %v5386 = vadd.f32 %v5372, %v5385
    %5387 = vdwg.mxu0
    %5388 = vmatpush.bf16.msra.mxu0 %v3643
    %5389 = vmatpush.bf16.msra.mxu0 %v3635
    %5390 = vmatpush.bf16.msra.mxu0 %v3627
    %5391 = vmatpush.bf16.msra.mxu0 %v3619
    %5392 = vmatpush.bf16.msra.mxu0 %v3611
    %5393 = vmatpush.bf16.msra.mxu0 %v3603
    %5394 = vmatpush.bf16.msra.mxu0 %v3595
    %5395 = vmatpush.bf16.msra.mxu0 %v3587
    %5396 = vmatmul.bf16.gmra.mxu0 %v1505
    %v5397 = vpop.f32.mrf.mxu0
    %v5398 = vadd.f32 %v2035, %v5397
    %v5399 = vpop.f32.mrf.mxu0
    %v5400 = vadd.f32 %v2035, %v5399
    %5401 = vdwg.mxu0
    %5402 = vmatpush.bf16.msra.mxu0 %v3707
    %5403 = vmatpush.bf16.msra.mxu0 %v3699
    %5404 = vmatpush.bf16.msra.mxu0 %v3691
    %5405 = vmatpush.bf16.msra.mxu0 %v3683
    %5406 = vmatpush.bf16.msra.mxu0 %v3675
    %5407 = vmatpush.bf16.msra.mxu0 %v3667
    %5408 = vmatpush.bf16.msra.mxu0 %v3659
    %5409 = vmatpush.bf16.msra.mxu0 %v3651
    %5410 = vmatmul.bf16.gmra.mxu0 %v1506
    %v5411 = vpop.f32.mrf.mxu0
    %v5412 = vadd.f32 %v5398, %v5411
    %v5413 = vpop.f32.mrf.mxu0
    %v5414 = vadd.f32 %v5400, %v5413
    %5415 = vdwg.mxu0
    %5416 = vmatpush.bf16.msra.mxu0 %v3771
    %5417 = vmatpush.bf16.msra.mxu0 %v3763
    %5418 = vmatpush.bf16.msra.mxu0 %v3755
    %5419 = vmatpush.bf16.msra.mxu0 %v3747
    %5420 = vmatpush.bf16.msra.mxu0 %v3739
    %5421 = vmatpush.bf16.msra.mxu0 %v3731
    %5422 = vmatpush.bf16.msra.mxu0 %v3723
    %5423 = vmatpush.bf16.msra.mxu0 %v3715
    %5424 = vmatmul.bf16.gmra.mxu0 %v1507
    %v5425 = vpop.f32.mrf.mxu0
    %v5426 = vadd.f32 %v5412, %v5425
    %v5427 = vpop.f32.mrf.mxu0
    %v5428 = vadd.f32 %v5414, %v5427
    %5429 = vdwg.mxu0
    %5430 = vmatpush.bf16.msra.mxu0 %v3835
    %5431 = vmatpush.bf16.msra.mxu0 %v3827
    %5432 = vmatpush.bf16.msra.mxu0 %v3819
    %5433 = vmatpush.bf16.msra.mxu0 %v3811
    %5434 = vmatpush.bf16.msra.mxu0 %v3803
    %5435 = vmatpush.bf16.msra.mxu0 %v3795
    %5436 = vmatpush.bf16.msra.mxu0 %v3787
    %5437 = vmatpush.bf16.msra.mxu0 %v3779
    %5438 = vmatmul.bf16.gmra.mxu0 %v1508
    %v5439 = vpop.f32.mrf.mxu0
    %v5440 = vadd.f32 %v5426, %v5439
    %v5441 = vpop.f32.mrf.mxu0
    %v5442 = vadd.f32 %v5428, %v5441
    %5443 = vdwg.mxu0
    %5444 = vmatpush.bf16.msra.mxu0 %v3899
    %5445 = vmatpush.bf16.msra.mxu0 %v3891
    %5446 = vmatpush.bf16.msra.mxu0 %v3883
    %5447 = vmatpush.bf16.msra.mxu0 %v3875
    %5448 = vmatpush.bf16.msra.mxu0 %v3867
    %5449 = vmatpush.bf16.msra.mxu0 %v3859
    %5450 = vmatpush.bf16.msra.mxu0 %v3851
    %5451 = vmatpush.bf16.msra.mxu0 %v3843
    %5452 = vmatmul.bf16.gmra.mxu0 %v1509
    %v5453 = vpop.f32.mrf.mxu0
    %v5454 = vadd.f32 %v5440, %v5453
    %v5455 = vpop.f32.mrf.mxu0
    %v5456 = vadd.f32 %v5442, %v5455
    %5457 = vdwg.mxu0
    %5458 = vmatpush.bf16.msra.mxu0 %v3963
    %5459 = vmatpush.bf16.msra.mxu0 %v3955
    %5460 = vmatpush.bf16.msra.mxu0 %v3947
    %5461 = vmatpush.bf16.msra.mxu0 %v3939
    %5462 = vmatpush.bf16.msra.mxu0 %v3931
    %5463 = vmatpush.bf16.msra.mxu0 %v3923
    %5464 = vmatpush.bf16.msra.mxu0 %v3915
    %5465 = vmatpush.bf16.msra.mxu0 %v3907
    %5466 = vmatmul.bf16.gmra.mxu0 %v1510
    %v5467 = vpop.f32.mrf.mxu0
    %v5468 = vadd.f32 %v5454, %v5467
    %v5469 = vpop.f32.mrf.mxu0
    %v5470 = vadd.f32 %v5456, %v5469
    %5471 = vdwg.mxu0
    %5472 = vmatpush.bf16.msra.mxu0 %v4027
    %5473 = vmatpush.bf16.msra.mxu0 %v4019
    %5474 = vmatpush.bf16.msra.mxu0 %v4011
    %5475 = vmatpush.bf16.msra.mxu0 %v4003
    %5476 = vmatpush.bf16.msra.mxu0 %v3995
    %5477 = vmatpush.bf16.msra.mxu0 %v3987
    %5478 = vmatpush.bf16.msra.mxu0 %v3979
    %5479 = vmatpush.bf16.msra.mxu0 %v3971
    %5480 = vmatmul.bf16.gmra.mxu0 %v1511
    %v5481 = vpop.f32.mrf.mxu0
    %v5482 = vadd.f32 %v5468, %v5481
    %v5483 = vpop.f32.mrf.mxu0
    %v5484 = vadd.f32 %v5470, %v5483
    %5485 = vdwg.mxu0
    %5486 = vmatpush.bf16.msra.mxu0 %v4091
    %5487 = vmatpush.bf16.msra.mxu0 %v4083
    %5488 = vmatpush.bf16.msra.mxu0 %v4075
    %5489 = vmatpush.bf16.msra.mxu0 %v4067
    %5490 = vmatpush.bf16.msra.mxu0 %v4059
    %5491 = vmatpush.bf16.msra.mxu0 %v4051
    %5492 = vmatpush.bf16.msra.mxu0 %v4043
    %5493 = vmatpush.bf16.msra.mxu0 %v4035
    %5494 = vmatmul.bf16.gmra.mxu0 %v1512
    %v5495 = vpop.f32.mrf.mxu0
    %v5496 = vadd.f32 %v5482, %v5495
    %v5497 = vpop.f32.mrf.mxu0
    %v5498 = vadd.f32 %v5484, %v5497
    %5499 = vdwg.mxu0
    %v5500 = vtanh.pop %v4712
    %v5501 = vtanh.pop %v4824
    %v5502 = vtanh.pop %v4936
    %v5503 = vtanh.pop %v5048
    %v5504 = vtanh.pop %v5160
    %v5505 = vtanh.pop %v5272
    %v5506 = vtanh.pop %v5384
    %v5507 = vtanh.pop %v5496
    %v5508 = vtanh.pop %v4714
    %v5509 = vtanh.pop %v4826
    %v5510 = vtanh.pop %v4938
    %v5511 = vtanh.pop %v5050
    %v5512 = vtanh.pop %v5162
    %v5513 = vtanh.pop %v5274
    %v5514 = vtanh.pop %v5386
    %v5515 = vtanh.pop %v5498
    %v5516 = vpack.c.bf16 %v5508, %v5500
    %v5517 = vpack.c.bf16 %v5509, %v5501
    %v5518 = vpack.c.bf16 %v5510, %v5502
    %v5519 = vpack.c.bf16 %v5511, %v5503
    %v5520 = vpack.c.bf16 %v5512, %v5504
    %v5521 = vpack.c.bf16 %v5513, %v5505
    %v5522 = vpack.c.bf16 %v5514, %v5506
    %v5523 = vpack.c.bf16 %v5515, %v5507
    %v5524 = vld [vmem:[#allocation2 + $0x20] sm:$0xf]
    %v5525 = vld [vmem:[#allocation2 + $0x44] sm:$0xf]
    %v5526 = vld [vmem:[#allocation2 + $0x68] sm:$0xf]
    %v5527 = vld [vmem:[#allocation2 + $0x8c] sm:$0xf]
    %v5528 = vld [vmem:[#allocation2 + $0xb0] sm:$0xf]
    %v5529 = vld [vmem:[#allocation2 + $0xd4] sm:$0xf]
    %v5530 = vld [vmem:[#allocation2 + $0xf8] sm:$0xf]
    %v5531 = vld [vmem:[#allocation2 + $0x11c] sm:$0xf]
    %v5532 = vld [vmem:[#allocation2 + $0x140] sm:$0xf]
    %v5533 = vld [vmem:[#allocation2 + $0x164] sm:$0xf]
    %v5534 = vld [vmem:[#allocation2 + $0x188] sm:$0xf]
    %v5535 = vld [vmem:[#allocation2 + $0x1ac] sm:$0xf]
    %v5536 = vld [vmem:[#allocation2 + $0x1d0] sm:$0xf]
    %v5537 = vld [vmem:[#allocation2 + $0x1f4] sm:$0xf]
    %v5538 = vld [vmem:[#allocation2 + $0x218] sm:$0xf]
    %v5539 = vld [vmem:[#allocation2 + $0x23c] sm:$0xf]
    %v5540 = vld [vmem:[#allocation2 + $0x260] sm:$0xf]
    %v5541 = vld [vmem:[#allocation2 + $0x284] sm:$0xf]
    %v5542 = vld [vmem:[#allocation2 + $0x2a8] sm:$0xf]
    %v5543 = vld [vmem:[#allocation2 + $0x2cc] sm:$0xf]
    %v5544 = vld [vmem:[#allocation2 + $0x2f0] sm:$0xf]
    %v5545 = vld [vmem:[#allocation2 + $0x314] sm:$0xf]
    %v5546 = vld [vmem:[#allocation2 + $0x338] sm:$0xf]
    %v5547 = vld [vmem:[#allocation2 + $0x35c] sm:$0xf]
    %v5548 = vld [vmem:[#allocation2 + $0x380] sm:$0xf]
    %v5549 = vld [vmem:[#allocation2 + $0x3a4] sm:$0xf]
    %v5550 = vld [vmem:[#allocation2 + $0x3c8] sm:$0xf]
    %v5551 = vld [vmem:[#allocation2 + $0x3ec] sm:$0xf]
    %v5552 = vld [vmem:[#allocation2 + $0x410] sm:$0xf]
    %v5553 = vld [vmem:[#allocation2 + $0x434] sm:$0xf]
    %v5554 = vld [vmem:[#allocation2 + $0x458] sm:$0xf]
    %v5555 = vld [vmem:[#allocation2 + $0x47c] sm:$0xf]
    %v5556 = vld [vmem:[#allocation2 + $0x4a0] sm:$0xf]
    %v5557 = vld [vmem:[#allocation2 + $0x4c4] sm:$0xf]
    %v5558 = vld [vmem:[#allocation2 + $0x4e8] sm:$0xf]
    %v5559 = vld [vmem:[#allocation2 + $0x50c] sm:$0xf]
    %v5560 = vld [vmem:[#allocation2 + $0x530] sm:$0xf]
    %v5561 = vld [vmem:[#allocation2 + $0x554] sm:$0xf]
    %v5562 = vld [vmem:[#allocation2 + $0x578] sm:$0xf]
    %v5563 = vld [vmem:[#allocation2 + $0x59c] sm:$0xf]
    %v5564 = vld [vmem:[#allocation2 + $0x5c0] sm:$0xf]
    %v5565 = vld [vmem:[#allocation2 + $0x5e4] sm:$0xf]
    %v5566 = vld [vmem:[#allocation2 + $0x608] sm:$0xf]
    %v5567 = vld [vmem:[#allocation2 + $0x62c] sm:$0xf]
    %v5568 = vld [vmem:[#allocation2 + $0x650] sm:$0xf]
    %v5569 = vld [vmem:[#allocation2 + $0x674] sm:$0xf]
    %v5570 = vld [vmem:[#allocation2 + $0x698] sm:$0xf]
    %v5571 = vld [vmem:[#allocation2 + $0x6bc] sm:$0xf]
    %v5572 = vld [vmem:[#allocation2 + $0x6e0] sm:$0xf]
    %v5573 = vld [vmem:[#allocation2 + $0x704] sm:$0xf]
    %v5574 = vld [vmem:[#allocation2 + $0x728] sm:$0xf]
    %v5575 = vld [vmem:[#allocation2 + $0x74c] sm:$0xf]
    %v5576 = vld [vmem:[#allocation2 + $0x770] sm:$0xf]
    %v5577 = vld [vmem:[#allocation2 + $0x794] sm:$0xf]
    %v5578 = vld [vmem:[#allocation2 + $0x7b8] sm:$0xf]
    %v5579 = vld [vmem:[#allocation2 + $0x7dc] sm:$0xf]
    %v5580 = vld [vmem:[#allocation2 + $0x800] sm:$0xf]
    %v5581 = vld [vmem:[#allocation2 + $0x824] sm:$0xf]
    %v5582 = vld [vmem:[#allocation2 + $0x848] sm:$0xf]
    %v5583 = vld [vmem:[#allocation2 + $0x86c] sm:$0xf]
    %v5584 = vld [vmem:[#allocation2 + $0x890] sm:$0xf]
    %v5585 = vld [vmem:[#allocation2 + $0x8b4] sm:$0xf]
    %v5586 = vld [vmem:[#allocation2 + $0x8d8] sm:$0xf]
    %v5587 = vld [vmem:[#allocation2 + $0x8fc] sm:$0xf]
    %v5588 = vld [vmem:[#allocation2 + $0x920] sm:$0xf]
    %v5589 = vld [vmem:[#allocation2 + $0x944] sm:$0xf]
    %v5590 = vld [vmem:[#allocation2 + $0x968] sm:$0xf]
    %v5591 = vld [vmem:[#allocation2 + $0x98c] sm:$0xf]
    %v5592 = vld [vmem:[#allocation2 + $0x9b0] sm:$0xf]
    %v5593 = vld [vmem:[#allocation2 + $0x9d4] sm:$0xf]
    %v5594 = vld [vmem:[#allocation2 + $0x9f8] sm:$0xf]
    %v5595 = vld [vmem:[#allocation2 + $0xa1c] sm:$0xf]
    %v5596 = vld [vmem:[#allocation2 + $0xa40] sm:$0xf]
    %v5597 = vld [vmem:[#allocation2 + $0xa64] sm:$0xf]
    %v5598 = vld [vmem:[#allocation2 + $0xa88] sm:$0xf]
    %v5599 = vld [vmem:[#allocation2 + $0xaac] sm:$0xf]
    %v5600 = vld [vmem:[#allocation2 + $0xad0] sm:$0xf]
    %v5601 = vld [vmem:[#allocation2 + $0xaf4] sm:$0xf]
    %v5602 = vld [vmem:[#allocation2 + $0xb18] sm:$0xf]
    %v5603 = vld [vmem:[#allocation2 + $0xb3c] sm:$0xf]
    %v5604 = vld [vmem:[#allocation2 + $0xb60] sm:$0xf]
    %v5605 = vld [vmem:[#allocation2 + $0xb84] sm:$0xf]
    %v5606 = vld [vmem:[#allocation2 + $0xba8] sm:$0xf]
    %v5607 = vld [vmem:[#allocation2 + $0xbcc] sm:$0xf]
    %v5608 = vld [vmem:[#allocation2 + $0xbf0] sm:$0xf]
    %v5609 = vld [vmem:[#allocation2 + $0xc14] sm:$0xf]
    %v5610 = vld [vmem:[#allocation2 + $0xc38] sm:$0xf]
    %v5611 = vld [vmem:[#allocation2 + $0xc5c] sm:$0xf]
    %v5612 = vld [vmem:[#allocation2 + $0xc80] sm:$0xf]
    %v5613 = vld [vmem:[#allocation2 + $0xca4] sm:$0xf]
    %v5614 = vld [vmem:[#allocation2 + $0xcc8] sm:$0xf]
    %v5615 = vld [vmem:[#allocation2 + $0xcec] sm:$0xf]
    %v5616 = vld [vmem:[#allocation2 + $0xd10] sm:$0xf]
    %v5617 = vld [vmem:[#allocation2 + $0xd34] sm:$0xf]
    %v5618 = vld [vmem:[#allocation2 + $0xd58] sm:$0xf]
    %v5619 = vld [vmem:[#allocation2 + $0xd7c] sm:$0xf]
    %v5620 = vld [vmem:[#allocation2 + $0xda0] sm:$0xf]
    %v5621 = vld [vmem:[#allocation2 + $0xdc4] sm:$0xf]
    %v5622 = vld [vmem:[#allocation2 + $0xde8] sm:$0xf]
    %v5623 = vld [vmem:[#allocation2 + $0xe0c] sm:$0xf]
    %v5624 = vld [vmem:[#allocation2 + $0xe30] sm:$0xf]
    %v5625 = vld [vmem:[#allocation2 + $0xe54] sm:$0xf]
    %v5626 = vld [vmem:[#allocation2 + $0xe78] sm:$0xf]
    %v5627 = vld [vmem:[#allocation2 + $0xe9c] sm:$0xf]
    %v5628 = vld [vmem:[#allocation2 + $0xec0] sm:$0xf]
    %v5629 = vld [vmem:[#allocation2 + $0xee4] sm:$0xf]
    %v5630 = vld [vmem:[#allocation2 + $0xf08] sm:$0xf]
    %v5631 = vld [vmem:[#allocation2 + $0xf2c] sm:$0xf]
    %v5632 = vld [vmem:[#allocation2 + $0xf50] sm:$0xf]
    %v5633 = vld [vmem:[#allocation2 + $0xf74] sm:$0xf]
    %v5634 = vld [vmem:[#allocation2 + $0xf98] sm:$0xf]
    %v5635 = vld [vmem:[#allocation2 + $0xfbc] sm:$0xf]
    %v5636 = vld [vmem:[#allocation2 + $0xfe0] sm:$0xf]
    %v5637 = vld [vmem:[#allocation2 + $0x1004] sm:$0xf]
    %v5638 = vld [vmem:[#allocation2 + $0x1028] sm:$0xf]
    %v5639 = vld [vmem:[#allocation2 + $0x104c] sm:$0xf]
    %v5640 = vld [vmem:[#allocation2 + $0x1070] sm:$0xf]
    %v5641 = vld [vmem:[#allocation2 + $0x1094] sm:$0xf]
    %v5642 = vld [vmem:[#allocation2 + $0x10b8] sm:$0xf]
    %v5643 = vld [vmem:[#allocation2 + $0x10dc] sm:$0xf]
    %v5644 = vld [vmem:[#allocation2 + $0x1100] sm:$0xf]
    %v5645 = vld [vmem:[#allocation2 + $0x1124] sm:$0xf]
    %v5646 = vld [vmem:[#allocation2 + $0x1148] sm:$0xf]
    %v5647 = vld [vmem:[#allocation2 + $0x116c] sm:$0xf]
    %v5648 = vld [vmem:[#allocation2 + $0x1190] sm:$0xf]
    %v5649 = vld [vmem:[#allocation2 + $0x11b4] sm:$0xf]
    %v5650 = vld [vmem:[#allocation2 + $0x11d8] sm:$0xf]
    %v5651 = vld [vmem:[#allocation2 + $0x11fc] sm:$0xf]
    %v5652 = vld [vmem:[#allocation9 + $0x2] sm:$0x1]
    %v5653 = vperm.slane %v5652, 0
    %v5782 = vunpack.c.l.b16 %v5524
    %v5783 = vunpack.c.l.b16 %v5525
    %v5784 = vunpack.c.l.b16 %v5526
    %v5785 = vunpack.c.l.b16 %v5527
    %v5786 = vunpack.c.l.b16 %v5528
    %v5787 = vunpack.c.l.b16 %v5529
    %v5788 = vunpack.c.l.b16 %v5530
    %v5789 = vunpack.c.l.b16 %v5531
    %v5790 = vunpack.c.l.b16 %v5532
    %v5791 = vunpack.c.l.b16 %v5533
    %v5792 = vunpack.c.l.b16 %v5534
    %v5793 = vunpack.c.l.b16 %v5535
    %v5794 = vunpack.c.l.b16 %v5536
    %v5795 = vunpack.c.l.b16 %v5537
    %v5796 = vunpack.c.l.b16 %v5538
    %v5797 = vunpack.c.l.b16 %v5539
    %v5798 = vunpack.c.l.b16 %v5540
    %v5799 = vunpack.c.l.b16 %v5541
    %v5800 = vunpack.c.l.b16 %v5542
    %v5801 = vunpack.c.l.b16 %v5543
    %v5802 = vunpack.c.l.b16 %v5544
    %v5803 = vunpack.c.l.b16 %v5545
    %v5804 = vunpack.c.l.b16 %v5546
    %v5805 = vunpack.c.l.b16 %v5547
    %v5806 = vunpack.c.l.b16 %v5548
    %v5807 = vunpack.c.l.b16 %v5549
    %v5808 = vunpack.c.l.b16 %v5550
    %v5809 = vunpack.c.l.b16 %v5551
    %v5810 = vunpack.c.l.b16 %v5552
    %v5811 = vunpack.c.l.b16 %v5553
    %v5812 = vunpack.c.l.b16 %v5554
    %v5813 = vunpack.c.l.b16 %v5555
    %v5814 = vunpack.c.l.b16 %v5556
    %v5815 = vunpack.c.l.b16 %v5557
    %v5816 = vunpack.c.l.b16 %v5558
    %v5817 = vunpack.c.l.b16 %v5559
    %v5818 = vunpack.c.l.b16 %v5560
    %v5819 = vunpack.c.l.b16 %v5561
    %v5820 = vunpack.c.l.b16 %v5562
    %v5821 = vunpack.c.l.b16 %v5563
    %v5822 = vunpack.c.l.b16 %v5564
    %v5823 = vunpack.c.l.b16 %v5565
    %v5824 = vunpack.c.l.b16 %v5566
    %v5825 = vunpack.c.l.b16 %v5567
    %v5826 = vunpack.c.l.b16 %v5568
    %v5827 = vunpack.c.l.b16 %v5569
    %v5828 = vunpack.c.l.b16 %v5570
    %v5829 = vunpack.c.l.b16 %v5571
    %v5830 = vunpack.c.l.b16 %v5572
    %v5831 = vunpack.c.l.b16 %v5573
    %v5832 = vunpack.c.l.b16 %v5574
    %v5833 = vunpack.c.l.b16 %v5575
    %v5834 = vunpack.c.l.b16 %v5576
    %v5835 = vunpack.c.l.b16 %v5577
    %v5836 = vunpack.c.l.b16 %v5578
    %v5837 = vunpack.c.l.b16 %v5579
    %v5838 = vunpack.c.l.b16 %v5580
    %v5839 = vunpack.c.l.b16 %v5581
    %v5840 = vunpack.c.l.b16 %v5582
    %v5841 = vunpack.c.l.b16 %v5583
    %v5842 = vunpack.c.l.b16 %v5584
    %v5843 = vunpack.c.l.b16 %v5585
    %v5844 = vunpack.c.l.b16 %v5586
    %v5845 = vunpack.c.l.b16 %v5587
    %v5846 = vunpack.c.l.b16 %v5588
    %v5847 = vunpack.c.l.b16 %v5589
    %v5848 = vunpack.c.l.b16 %v5590
    %v5849 = vunpack.c.l.b16 %v5591
    %v5850 = vunpack.c.l.b16 %v5592
    %v5851 = vunpack.c.l.b16 %v5593
    %v5852 = vunpack.c.l.b16 %v5594
    %v5853 = vunpack.c.l.b16 %v5595
    %v5854 = vunpack.c.l.b16 %v5596
    %v5855 = vunpack.c.l.b16 %v5597
    %v5856 = vunpack.c.l.b16 %v5598
    %v5857 = vunpack.c.l.b16 %v5599
    %v5858 = vunpack.c.l.b16 %v5600
    %v5859 = vunpack.c.l.b16 %v5601
    %v5860 = vunpack.c.l.b16 %v5602
    %v5861 = vunpack.c.l.b16 %v5603
    %v5862 = vunpack.c.l.b16 %v5604
    %v5863 = vunpack.c.l.b16 %v5605
    %v5864 = vunpack.c.l.b16 %v5606
    %v5865 = vunpack.c.l.b16 %v5607
    %v5866 = vunpack.c.l.b16 %v5608
    %v5867 = vunpack.c.l.b16 %v5609
    %v5868 = vunpack.c.l.b16 %v5610
    %v5869 = vunpack.c.l.b16 %v5611
    %v5870 = vunpack.c.l.b16 %v5612
    %v5871 = vunpack.c.l.b16 %v5613
    %v5872 = vunpack.c.l.b16 %v5614
    %v5873 = vunpack.c.l.b16 %v5615
    %v5874 = vunpack.c.l.b16 %v5616
    %v5875 = vunpack.c.l.b16 %v5617
    %v5876 = vunpack.c.l.b16 %v5618
    %v5877 = vunpack.c.l.b16 %v5619
    %v5878 = vunpack.c.l.b16 %v5620
    %v5879 = vunpack.c.l.b16 %v5621
    %v5880 = vunpack.c.l.b16 %v5622
    %v5881 = vunpack.c.l.b16 %v5623
    %v5882 = vunpack.c.l.b16 %v5624
    %v5883 = vunpack.c.l.b16 %v5625
    %v5884 = vunpack.c.l.b16 %v5626
    %v5885 = vunpack.c.l.b16 %v5627
    %v5886 = vunpack.c.l.b16 %v5628
    %v5887 = vunpack.c.l.b16 %v5629
    %v5888 = vunpack.c.l.b16 %v5630
    %v5889 = vunpack.c.l.b16 %v5631
    %v5890 = vunpack.c.l.b16 %v5632
    %v5891 = vunpack.c.l.b16 %v5633
    %v5892 = vunpack.c.l.b16 %v5634
    %v5893 = vunpack.c.l.b16 %v5635
    %v5894 = vunpack.c.l.b16 %v5636
    %v5895 = vunpack.c.l.b16 %v5637
    %v5896 = vunpack.c.l.b16 %v5638
    %v5897 = vunpack.c.l.b16 %v5639
    %v5898 = vunpack.c.l.b16 %v5640
    %v5899 = vunpack.c.l.b16 %v5641
    %v5900 = vunpack.c.l.b16 %v5642
    %v5901 = vunpack.c.l.b16 %v5643
    %v5902 = vunpack.c.l.b16 %v5644
    %v5903 = vunpack.c.l.b16 %v5645
    %v5904 = vunpack.c.l.b16 %v5646
    %v5905 = vunpack.c.l.b16 %v5647
    %v5906 = vunpack.c.l.b16 %v5648
    %v5907 = vunpack.c.l.b16 %v5649
    %v5908 = vunpack.c.l.b16 %v5650
    %v5909 = vunpack.c.l.b16 %v5651
    %v5910 = vpack.c.b16 %v5783, %v5782
    %v5911 = vpack.c.b16 %v5785, %v5784
    %v5912 = vpack.c.b16 %v5787, %v5786
    %v5913 = vpack.c.b16 %v5789, %v5788
    %v5914 = vpack.c.b16 %v5791, %v5790
    %v5915 = vpack.c.b16 %v5793, %v5792
    %v5916 = vpack.c.b16 %v5795, %v5794
    %v5917 = vpack.c.b16 %v5797, %v5796
    %v5918 = vpack.c.b16 %v5799, %v5798
    %v5919 = vpack.c.b16 %v5801, %v5800
    %v5920 = vpack.c.b16 %v5803, %v5802
    %v5921 = vpack.c.b16 %v5805, %v5804
    %v5922 = vpack.c.b16 %v5807, %v5806
    %v5923 = vpack.c.b16 %v5809, %v5808
    %v5924 = vpack.c.b16 %v5811, %v5810
    %v5925 = vpack.c.b16 %v5813, %v5812
    %v5926 = vpack.c.b16 %v5815, %v5814
    %v5927 = vpack.c.b16 %v5817, %v5816
    %v5928 = vpack.c.b16 %v5819, %v5818
    %v5929 = vpack.c.b16 %v5821, %v5820
    %v5930 = vpack.c.b16 %v5823, %v5822
    %v5931 = vpack.c.b16 %v5825, %v5824
    %v5932 = vpack.c.b16 %v5827, %v5826
    %v5933 = vpack.c.b16 %v5829, %v5828
    %v5934 = vpack.c.b16 %v5831, %v5830
    %v5935 = vpack.c.b16 %v5833, %v5832
    %v5936 = vpack.c.b16 %v5835, %v5834
    %v5937 = vpack.c.b16 %v5837, %v5836
    %v5938 = vpack.c.b16 %v5839, %v5838
    %v5939 = vpack.c.b16 %v5841, %v5840
    %v5940 = vpack.c.b16 %v5843, %v5842
    %v5941 = vpack.c.b16 %v5845, %v5844
    %v5942 = vpack.c.b16 %v5847, %v5846
    %v5943 = vpack.c.b16 %v5849, %v5848
    %v5944 = vpack.c.b16 %v5851, %v5850
    %v5945 = vpack.c.b16 %v5853, %v5852
    %v5946 = vpack.c.b16 %v5855, %v5854
    %v5947 = vpack.c.b16 %v5857, %v5856
    %v5948 = vpack.c.b16 %v5859, %v5858
    %v5949 = vpack.c.b16 %v5861, %v5860
    %v5950 = vpack.c.b16 %v5863, %v5862
    %v5951 = vpack.c.b16 %v5865, %v5864
    %v5952 = vpack.c.b16 %v5867, %v5866
    %v5953 = vpack.c.b16 %v5869, %v5868
    %v5954 = vpack.c.b16 %v5871, %v5870
    %v5955 = vpack.c.b16 %v5873, %v5872
    %v5956 = vpack.c.b16 %v5875, %v5874
    %v5957 = vpack.c.b16 %v5877, %v5876
    %v5958 = vpack.c.b16 %v5879, %v5878
    %v5959 = vpack.c.b16 %v5881, %v5880
    %v5960 = vpack.c.b16 %v5883, %v5882
    %v5961 = vpack.c.b16 %v5885, %v5884
    %v5962 = vpack.c.b16 %v5887, %v5886
    %v5963 = vpack.c.b16 %v5889, %v5888
    %v5964 = vpack.c.b16 %v5891, %v5890
    %v5965 = vpack.c.b16 %v5893, %v5892
    %v5966 = vpack.c.b16 %v5895, %v5894
    %v5967 = vpack.c.b16 %v5897, %v5896
    %v5968 = vpack.c.b16 %v5899, %v5898
    %v5969 = vpack.c.b16 %v5901, %v5900
    %v5970 = vpack.c.b16 %v5903, %v5902
    %v5971 = vpack.c.b16 %v5905, %v5904
    %v5972 = vpack.c.b16 %v5907, %v5906
    %v5973 = vpack.c.b16 %v5909, %v5908
    %6038 = vmatpush.bf16.msra.mxu0 %v5917
    %6039 = vmatpush.bf16.msra.mxu0 %v5916
    %6040 = vmatpush.bf16.msra.mxu0 %v5915
    %6041 = vmatpush.bf16.msra.mxu0 %v5914
    %6042 = vmatpush.bf16.msra.mxu0 %v5913
    %6043 = vmatpush.bf16.msra.mxu0 %v5912
    %6044 = vmatpush.bf16.msra.mxu0 %v5911
    %6045 = vmatpush.bf16.msra.mxu0 %v5910
    %6046 = vmatmul.bf16.gmra.mxu0 %v5516
    %v6047 = vpop.f32.mrf.mxu0
    %v6048 = vadd.f32 %v5653, %v6047
    %v6049 = vpop.f32.mrf.mxu0
    %v6050 = vadd.f32 %v5653, %v6049
    %6051 = vdwg.mxu0
    %6052 = vmatpush.bf16.msra.mxu0 %v5925
    %6053 = vmatpush.bf16.msra.mxu0 %v5924
    %6054 = vmatpush.bf16.msra.mxu0 %v5923
    %6055 = vmatpush.bf16.msra.mxu0 %v5922
    %6056 = vmatpush.bf16.msra.mxu0 %v5921
    %6057 = vmatpush.bf16.msra.mxu0 %v5920
    %6058 = vmatpush.bf16.msra.mxu0 %v5919
    %6059 = vmatpush.bf16.msra.mxu0 %v5918
    %6060 = vmatmul.bf16.gmra.mxu0 %v5517
    %v6061 = vpop.f32.mrf.mxu0
    %v6062 = vadd.f32 %v6048, %v6061
    %v6063 = vpop.f32.mrf.mxu0
    %v6064 = vadd.f32 %v6050, %v6063
    %6065 = vdwg.mxu0
    %6066 = vmatpush.bf16.msra.mxu0 %v5933
    %6067 = vmatpush.bf16.msra.mxu0 %v5932
    %6068 = vmatpush.bf16.msra.mxu0 %v5931
    %6069 = vmatpush.bf16.msra.mxu0 %v5930
    %6070 = vmatpush.bf16.msra.mxu0 %v5929
    %6071 = vmatpush.bf16.msra.mxu0 %v5928
    %6072 = vmatpush.bf16.msra.mxu0 %v5927
    %6073 = vmatpush.bf16.msra.mxu0 %v5926
    %6074 = vmatmul.bf16.gmra.mxu0 %v5518
    %v6075 = vpop.f32.mrf.mxu0
    %v6076 = vadd.f32 %v6062, %v6075
    %v6077 = vpop.f32.mrf.mxu0
    %v6078 = vadd.f32 %v6064, %v6077
    %6079 = vdwg.mxu0
    %6080 = vmatpush.bf16.msra.mxu0 %v5941
    %6081 = vmatpush.bf16.msra.mxu0 %v5940
    %6082 = vmatpush.bf16.msra.mxu0 %v5939
    %6083 = vmatpush.bf16.msra.mxu0 %v5938
    %6084 = vmatpush.bf16.msra.mxu0 %v5937
    %6085 = vmatpush.bf16.msra.mxu0 %v5936
    %6086 = vmatpush.bf16.msra.mxu0 %v5935
    %6087 = vmatpush.bf16.msra.mxu0 %v5934
    %6088 = vmatmul.bf16.gmra.mxu0 %v5519
    %v6089 = vpop.f32.mrf.mxu0
    %v6090 = vadd.f32 %v6076, %v6089
    %v6091 = vpop.f32.mrf.mxu0
    %v6092 = vadd.f32 %v6078, %v6091
    %6093 = vdwg.mxu0
    %6094 = vmatpush.bf16.msra.mxu0 %v5949
    %6095 = vmatpush.bf16.msra.mxu0 %v5948
    %6096 = vmatpush.bf16.msra.mxu0 %v5947
    %6097 = vmatpush.bf16.msra.mxu0 %v5946
    %6098 = vmatpush.bf16.msra.mxu0 %v5945
    %6099 = vmatpush.bf16.msra.mxu0 %v5944
    %6100 = vmatpush.bf16.msra.mxu0 %v5943
    %6101 = vmatpush.bf16.msra.mxu0 %v5942
    %6102 = vmatmul.bf16.gmra.mxu0 %v5520
    %v6103 = vpop.f32.mrf.mxu0
    %v6104 = vadd.f32 %v6090, %v6103
    %v6105 = vpop.f32.mrf.mxu0
    %v6106 = vadd.f32 %v6092, %v6105
    %6107 = vdwg.mxu0
    %6108 = vmatpush.bf16.msra.mxu0 %v5957
    %6109 = vmatpush.bf16.msra.mxu0 %v5956
    %6110 = vmatpush.bf16.msra.mxu0 %v5955
    %6111 = vmatpush.bf16.msra.mxu0 %v5954
    %6112 = vmatpush.bf16.msra.mxu0 %v5953
    %6113 = vmatpush.bf16.msra.mxu0 %v5952
    %6114 = vmatpush.bf16.msra.mxu0 %v5951
    %6115 = vmatpush.bf16.msra.mxu0 %v5950
    %6116 = vmatmul.bf16.gmra.mxu0 %v5521
    %v6117 = vpop.f32.mrf.mxu0
    %v6118 = vadd.f32 %v6104, %v6117
    %v6119 = vpop.f32.mrf.mxu0
    %v6120 = vadd.f32 %v6106, %v6119
    %6121 = vdwg.mxu0
    %6122 = vmatpush.bf16.msra.mxu0 %v5965
    %6123 = vmatpush.bf16.msra.mxu0 %v5964
    %6124 = vmatpush.bf16.msra.mxu0 %v5963
    %6125 = vmatpush.bf16.msra.mxu0 %v5962
    %6126 = vmatpush.bf16.msra.mxu0 %v5961
    %6127 = vmatpush.bf16.msra.mxu0 %v5960
    %6128 = vmatpush.bf16.msra.mxu0 %v5959
    %6129 = vmatpush.bf16.msra.mxu0 %v5958
    %6130 = vmatmul.bf16.gmra.mxu0 %v5522
    %v6131 = vpop.f32.mrf.mxu0
    %v6132 = vadd.f32 %v6118, %v6131
    %v6133 = vpop.f32.mrf.mxu0
    %v6134 = vadd.f32 %v6120, %v6133
    %6135 = vdwg.mxu0
    %6136 = vmatpush.bf16.msra.mxu0 %v5973
    %6137 = vmatpush.bf16.msra.mxu0 %v5972
    %6138 = vmatpush.bf16.msra.mxu0 %v5971
    %6139 = vmatpush.bf16.msra.mxu0 %v5970
    %6140 = vmatpush.bf16.msra.mxu0 %v5969
    %6141 = vmatpush.bf16.msra.mxu0 %v5968
    %6142 = vmatpush.bf16.msra.mxu0 %v5967
    %6143 = vmatpush.bf16.msra.mxu0 %v5966
    %6144 = vmatmul.bf16.gmra.mxu0 %v5523
    %v6145 = vpop.f32.mrf.mxu0
    %v6146 = vadd.f32 %v6132, %v6145
    %v6147 = vpop.f32.mrf.mxu0
    %v6148 = vadd.f32 %v6134, %v6147
    %6149 = vdwg.mxu0
    %6150 = vst [vmem:[%s8] sm:$0xff] %v6146
    %6151 = vst [vmem:[%s8 + $0x8] sm:$0xff] %v6148
    // Predicated region
    $region50: #{forward.1} parent=1 // pred_check
      _
    $region51: #{forward.1} parent=1 // pred_check_branch
      %6153 = sbr.rel (0) target = $region53
    $region52: #{forward.1} parent=1 // pred_region
      _
    $region53: #{forward.1} parent=1 // pred_fallthru
      _
    // Predicated region
    $region54: #{forward.1} parent=1 // pred_check
      _
    $region55: #{forward.1} parent=1 // pred_check_branch
      %6155 = sbr.rel (0) target = $region57
    $region56: #{forward.1} parent=1 // pred_region
      _
    $region57: #{forward.1} parent=1 // pred_fallthru
      _
    %6156 = vsyncpa [#allocation5], 1
    %6157 = vsyncpa [#allocation7], 1
    %6158 = vsyncpa [#allocation10], 1
  %6159 = vsyncmov [#allocation3]
  %s6160 = vpop.sfrf %6159
  %p6161 = scmp.eq.s32.totalorder %s6160, 0
  %p6162 = pneg %p6161
  %6164 = shalt.err (%p6162)

</llo_original>
